<compile_context>
chip_gen: v7x
topology: tpu7x:2x2x1
jax: 0.10.0
libtpu: 0.0.40
codegen_flags: <defaults>
</compile_context>

<pallas_src>
import functools
import math

import jax
import jax.numpy as jnp
import numpy as np
from jax import lax
from jax.experimental import pallas as pl
from jax.experimental.pallas import tpu as pltpu


# ----------------------------- Fused forward kernel -----------------------------

def _fused_forward_kernel(
    x_ref, logit_ref, mask_ref,
    wqkv_ref, bqkv_ref, woc_ref, boc_ref,
    o_ref,
    qkv_scr,
    *, num_heads, bt,
):
    N = x_ref.shape[1]
    d = x_ref.shape[2]
    hd = d // num_heads

    # --- fused Q/K/V projection over the whole per-step batch slab ---------
    # (1/sqrt(hd) is pre-folded into the Q columns of wqkv/bqkv by the wrapper;
    #  bf16 operands, f32 accumulation, result stored bf16 ready for the MXU.)
    x = x_ref[...].reshape(bt * N, d).astype(jnp.bfloat16)
    qkv_scr[...] = (
        jnp.dot(x, wqkv_ref[...], preferred_element_type=jnp.float32)
        + bqkv_ref[...]
    ).astype(jnp.bfloat16)

    for b in range(bt):                                   # static unroll (bt small)
        r0 = b * N
        head_outs = []
        for h in range(num_heads):                        # static unroll (H small)
            q_h = qkv_scr[r0:r0 + N, h * hd:(h + 1) * hd]                  # [N, hd] bf16
            k_h = qkv_scr[r0:r0 + N, d + h * hd:d + (h + 1) * hd]          # [N, hd] bf16
            v_h = qkv_scr[r0:r0 + N, 2 * d + h * hd:2 * d + (h + 1) * hd]  # [N, hd] bf16
            # contract last dims directly — transpose absorbed into the MXU feed
            s = lax.dot_general(
                q_h, k_h, (((1,), (1,)), ((), ())),
                preferred_element_type=jnp.float32,
            )                                                              # [N, N] f32
            m = jnp.max(s, axis=-1, keepdims=True)
            p = jnp.exp(s - m)
            # approx reciprocal is fine here (throughput path, benign error)
            p = p * pl.reciprocal(jnp.sum(p, axis=-1, keepdims=True), approx=True)
            head_outs.append(
                jnp.dot(p.astype(jnp.bfloat16), v_h,
                        preferred_element_type=jnp.float32))               # [N, hd]
        # lane-dense [N, d] attention slab kept in vregs (no narrow writebacks)
        attn_b = jnp.concatenate(head_outs, axis=-1).astype(jnp.bfloat16)

        # --- fused (out_proj ∘ classifier): offsets = A @ (Wo@Wc) + (bo@Wc+bc) ---
        offs = (
            jnp.dot(attn_b, woc_ref[...], preferred_element_type=jnp.float32)
            + boc_ref[...]
        )                                                                  # [N, C] f32

        # --- log(logit)+offset -> class softmax -> masked token mean -------
        lg = jnp.log(logit_ref[b] + 1e-8) + offs                           # [N, C]
        m2 = jnp.max(lg, axis=-1, keepdims=True)
        p2 = jnp.exp(lg - m2)
        p2 = p2 / jnp.sum(p2, axis=-1, keepdims=True)      # exact (accuracy path)
        mask = mask_ref[b]                                 # [N, 1]
        ssum = jnp.sum(p2 * mask, axis=0, keepdims=True)   # [1, C]
        denom = jnp.sum(mask, axis=0, keepdims=True)       # [1, 1]
        o_ref[b] = ssum / denom                            # exact scalar divide


# ----------------------------- Wrapper -----------------------------

def _dual_tensorcore():
    """Best-effort: does one device expose 2 TensorCores to Pallas (megacore)?"""
    try:
        kind = jax.devices()[0].device_kind.lower()
    except Exception:
        return False
    return ("v4" in kind) or ("v5p" in kind) or ("7" in kind)


def multi_head_attention_classifier(params, feature_stack, logit_stack, non_padding_mask):
    B, N, d = feature_stack.shape
    H = params["num_heads"]
    hd = d // H
    C = params["wc"].shape[1]
    assert d % H == 0

    # ---- one-time parameter fusion (would live at module init in practice) ----
    scale = 1.0 / math.sqrt(hd)
    wq = params["wq"] * scale                         # fold 1/sqrt(hd) into Q proj
    bq = params["bq"] * scale
    wqkv = jnp.concatenate([wq, params["wk"], params["wv"]], axis=1)          # [d, 3d]
    bqkv = jnp.concatenate([bq, params["bk"], params["bv"]]).reshape(1, 3 * d)
    # fold classifier into out_proj: (A@Wo+bo)@Wc+bc == A@(Wo@Wc) + (bo@Wc+bc)
    woc = params["wo"] @ params["wc"]                                          # [d, C]
    boc = (params["bo"] @ params["wc"] + params["bc"]).reshape(1, C)
    # MXU-friendly operand dtype; biases stay f32 (added to f32 accumulators)
    wqkv = wqkv.astype(jnp.bfloat16)
    woc = woc.astype(jnp.bfloat16)

    mask3 = non_padding_mask.reshape(B, N, 1).astype(jnp.float32)

    # One grid step on single-TC chips (v5e/v6e): whole batch folded into the M
    # dim of the QKV matmul. One step per batch element on dual-TC chips (v7x /
    # megacore) so the "parallel" axis puts one step on each core.
    num_steps = B if (_dual_tensorcore() and B > 1) else 1
    bt = B // num_steps

    kernel = functools.partial(_fused_forward_kernel, num_heads=H, bt=bt)

    out = pl.pallas_call(
        kernel,
        out_shape=jax.ShapeDtypeStruct((B, 1, C), jnp.float32),
        grid=(num_steps,),
        in_specs=[
            pl.BlockSpec((bt, N, d), lambda i: (i, 0, 0)),    # feature_stack
            pl.BlockSpec((bt, N, C), lambda i: (i, 0, 0)),    # logit_stack
            pl.BlockSpec((bt, N, 1), lambda i: (i, 0, 0)),    # mask
            pl.BlockSpec((d, 3 * d), lambda i: (0, 0)),       # wqkv (resident, bf16)
            pl.BlockSpec((1, 3 * d), lambda i: (0, 0)),       # bqkv (f32)
            pl.BlockSpec((d, C), lambda i: (0, 0)),           # W_oc (resident, bf16)
            pl.BlockSpec((1, C), lambda i: (0, 0)),           # b_oc (f32)
        ],
        out_specs=pl.BlockSpec((bt, 1, C), lambda i: (i, 0, 0)),
        scratch_shapes=[
            pltpu.VMEM((bt * N, 3 * d), jnp.bfloat16),        # fused qkv slab
        ],
        compiler_params=pltpu.CompilerParams(dimension_semantics=("parallel",)),
    )(feature_stack, logit_stack, mask3, wqkv, bqkv, woc, boc)
    return out.reshape(B, C)


# ----------------------------- Pure JAX reference -----------------------------

def reference_forward(params, feature_stack, logit_stack, non_padding_mask):
    B, N, d = feature_stack.shape
    H = params["num_heads"]
    hd = d // H
    q = (feature_stack @ params["wq"] + params["bq"]).reshape(B, N, H, hd).transpose(0, 2, 1, 3)
    k = (feature_stack @ params["wk"] + params["bk"]).reshape(B, N, H, hd).transpose(0, 2, 1, 3)
    v = (feature_stack @ params["wv"] + params["bv"]).reshape(B, N, H, hd).transpose(0, 2, 1, 3)
    s = jnp.einsum("bhqd,bhkd->bhqk", q, k) / math.sqrt(hd)
    p = jax.nn.softmax(s, axis=-1)
    a = jnp.einsum("bhqk,bhkd->bhqd", p, v).transpose(0, 2, 1, 3).reshape(B, N, d)
    out = a @ params["wo"] + params["bo"]
    offsets = out @ params["wc"] + params["bc"]
    logits = jax.nn.softmax(jnp.log(logit_stack + 1e-8) + offsets, axis=-1)
    logits = logits * non_padding_mask[:, :, None]
    return logits.sum(axis=1) / non_padding_mask.sum(axis=1, keepdims=True)


# ----------------------------- Main -----------------------------

if __name__ == "__main__":
    # Small shapes consistent with the module (d_model % num_heads == 0).
    B, N, d_model, H, C, d_out = 2, 128, 128, 4, 9, 128

    key = jax.random.PRNGKey(0)
    keys = jax.random.split(key, 12)

    def init_w(k, shape):
        return jax.random.normal(k, shape, dtype=jnp.float32) * 0.02

    params = {
        "num_heads": H,
        "wq": init_w(keys[0], (d_model, d_model)), "bq": init_w(keys[1], (d_model,)),
        "wk": init_w(keys[2], (d_model, d_model)), "bk": init_w(keys[3], (d_model,)),
        "wv": init_w(keys[4], (d_model, d_model)), "bv": init_w(keys[5], (d_model,)),
        "wo": init_w(keys[6], (d_model, d_out)),   "bo": init_w(keys[7], (d_out,)),
        "wc": init_w(keys[8], (d_out, C)),         "bc": init_w(keys[9], (C,)),
    }

    feature_stack = jax.random.normal(keys[10], (B, N, d_model), dtype=jnp.float32)
    # Positive "probabilities" for logit_stack (it gets log()'d).
    logit_stack = jax.nn.softmax(
        jax.random.normal(keys[11], (B, N, C), dtype=jnp.float32), axis=-1
    )
    # Non-padding mask: batch 0 fully valid, batch 1 has padding at the tail.
    lengths = jnp.array([N, N - 28], dtype=jnp.int32)
    non_padding_mask = (
        jnp.arange(N, dtype=jnp.int32)[None, :] < lengths[:, None]
    ).astype(jnp.float32)

    diff = multi_head_attention_classifier(
        params, feature_stack, logit_stack, non_padding_mask
    )
    diff = jax.block_until_ready(diff)

    ref = reference_forward(params, feature_stack, logit_stack, non_padding_mask)
    # Tolerance accounts for bf16 MXU operands (f32 accumulation) and the approx
    # EUP reciprocal used only inside the attention softmax; the pooling and
    # class-softmax denominators use exact division.
    np.testing.assert_allclose(np.asarray(diff), np.asarray(ref), rtol=1e-2, atol=1e-4)

    print("KERNEL_OK")
</pallas_src>

<mosaic_0001>
module attributes {stable_mosaic.version = 11 : i64} {
  func.func @_fused_forward_kernel(%arg0: i32, %arg1: memref<2x128x128xf32, #tpu.memory_space<vmem>>, %arg2: memref<2x128x9xf32, #tpu.memory_space<vmem>>, %arg3: memref<2x128x1xf32, #tpu.memory_space<vmem>>, %arg4: memref<128x384xbf16, #tpu.memory_space<vmem>>, %arg5: memref<1x384xf32, #tpu.memory_space<vmem>>, %arg6: memref<128x9xbf16, #tpu.memory_space<vmem>>, %arg7: memref<1x9xf32, #tpu.memory_space<vmem>>, %arg8: memref<2x1x9xf32, #tpu.memory_space<vmem>>, %arg9: memref<256x384xbf16, #tpu.memory_space<vmem>>) attributes {dimension_semantics = [#tpu.dimension_semantics<parallel>], iteration_bounds = array<i64: 1>, scalar_prefetch = 0 : i64, scratch_operands = 1 : i64, tpu.core_type = #tpu.core_type<tc>, window_params = [{transform_indices = @transform_0, window_bounds = array<i64: 2, 128, 128>}, {transform_indices = @transform_1, window_bounds = array<i64: 2, 128, 9>}, {transform_indices = @transform_2, window_bounds = array<i64: 2, 128, 1>}, {pipeline_mode = #tpu.pipeline_mode<synchronous>, transform_indices = @transform_3, window_bounds = array<i64: 128, 384>}, {pipeline_mode = #tpu.pipeline_mode<synchronous>, transform_indices = @transform_4, window_bounds = array<i64: 1, 384>}, {pipeline_mode = #tpu.pipeline_mode<synchronous>, transform_indices = @transform_5, window_bounds = array<i64: 128, 9>}, {pipeline_mode = #tpu.pipeline_mode<synchronous>, transform_indices = @transform_6, window_bounds = array<i64: 1, 9>}, {transform_indices = @transform_7, window_bounds = array<i64: 2, 1, 9>}]} {
    %c0 = arith.constant 0 : index
    %c0_0 = arith.constant 0 : index
    %c0_1 = arith.constant 0 : index
    %0 = vector.load %arg1[%c0, %c0_0, %c0_1] : memref<2x128x128xf32, #tpu.memory_space<vmem>>, vector<2x128x128xf32>
    %1 = vector.shape_cast %0 : vector<2x128x128xf32> to vector<256x128xf32>
    %2 = arith.truncf %1 : vector<256x128xf32> to vector<256x128xbf16>
    %c0_2 = arith.constant 0 : index
    %c0_3 = arith.constant 0 : index
    %3 = vector.load %arg4[%c0_2, %c0_3] : memref<128x384xbf16, #tpu.memory_space<vmem>>, vector<128x384xbf16>
    %cst = arith.constant dense<0.000000e+00> : vector<256x384xf32>
    %4 = tpu.matmul %2, %3, %cst {dimension_numbers = #tpu.dot_dimension_numbers<[1], [0], [0], [1], [0, 0, 1, 1], [], []>} : vector<256x128xbf16>, vector<128x384xbf16>, vector<256x384xf32> -> vector<256x384xf32>
    %c0_4 = arith.constant 0 : index
    %c0_5 = arith.constant 0 : index
    %5 = vector.load %arg5[%c0_4, %c0_5] : memref<1x384xf32, #tpu.memory_space<vmem>>, vector<1x384xf32>
    %6 = vector.broadcast %5 : vector<1x384xf32> to vector<256x384xf32>
    %7 = arith.addf %4, %6 : vector<256x384xf32>
    %8 = arith.truncf %7 : vector<256x384xf32> to vector<256x384xbf16>
    %c0_6 = arith.constant 0 : index
    %c0_7 = arith.constant 0 : index
    %9 = vector.load %arg9[%c0_6, %c0_7] : memref<256x384xbf16, #tpu.memory_space<vmem>>, vector<256x384xbf16>
    tpu.vector_store %arg9[%c0_6, %c0_7], %8 {strides = array<i32>} : memref<256x384xbf16, #tpu.memory_space<vmem>>, vector<256x384xbf16>,
    %c0_8 = arith.constant 0 : index
    %c0_9 = arith.constant 0 : index
    %10 = vector.load %arg9[%c0_8, %c0_9] : memref<256x384xbf16, #tpu.memory_space<vmem>>, vector<128x32xbf16>
    %c0_10 = arith.constant 0 : index
    %c128 = arith.constant 128 : index
    %11 = vector.load %arg9[%c0_10, %c128] : memref<256x384xbf16, #tpu.memory_space<vmem>>, vector<128x32xbf16>
    %c0_11 = arith.constant 0 : index
    %c256 = arith.constant 256 : index
    %12 = vector.load %arg9[%c0_11, %c256] : memref<256x384xbf16, #tpu.memory_space<vmem>>, vector<128x32xbf16>
    %cst_12 = arith.constant dense<0.000000e+00> : vector<128x128xf32>
    %13 = tpu.matmul %10, %11, %cst_12 {dimension_numbers = #tpu.dot_dimension_numbers<[1], [1], [0], [0], [0, 0, 1, 0], [], []>} : vector<128x32xbf16>, vector<128x32xbf16>, vector<128x128xf32> -> vector<128x128xf32>
    %cst_13 = arith.constant dense<0xFF800000> : vector<128xf32>
    %14 = vector.multi_reduction <maximumf>, %13, %cst_13 [1] : vector<128x128xf32> to vector<128xf32>
    %15 = vector.shape_cast %14 : vector<128xf32> to vector<128x1xf32>
    %16 = vector.broadcast %15 : vector<128x1xf32> to vector<128x128xf32>
    %17 = arith.subf %13, %16 : vector<128x128xf32>
    %18 = math.exp %17 : vector<128x128xf32>
    %cst_14 = arith.constant dense<0.000000e+00> : vector<128xf32>
    %19 = vector.multi_reduction <add>, %18, %cst_14 [1] : vector<128x128xf32> to vector<128xf32>
    %20 = vector.shape_cast %19 : vector<128xf32> to vector<128x1xf32>
    %21 = tpu.reciprocal %20 {approx = true} : vector<128x1xf32> -> vector<128x1xf32>
    %22 = vector.broadcast %21 : vector<128x1xf32> to vector<128x128xf32>
    %23 = arith.mulf %18, %22 : vector<128x128xf32>
    %24 = arith.truncf %23 : vector<128x128xf32> to vector<128x128xbf16>
    %cst_15 = arith.constant dense<0.000000e+00> : vector<128x32xf32>
    %25 = tpu.matmul %24, %12, %cst_15 {dimension_numbers = #tpu.dot_dimension_numbers<[1], [0], [0], [1], [0, 0, 1, 1], [], []>} : vector<128x128xbf16>, vector<128x32xbf16>, vector<128x32xf32> -> vector<128x32xf32>
    %c0_16 = arith.constant 0 : index
    %c32 = arith.constant 32 : index
    %26 = vector.load %arg9[%c0_16, %c32] : memref<256x384xbf16, #tpu.memory_space<vmem>>, vector<128x32xbf16>
    %c0_17 = arith.constant 0 : index
    %c160 = arith.constant 160 : index
    %27 = vector.load %arg9[%c0_17, %c160] : memref<256x384xbf16, #tpu.memory_space<vmem>>, vector<128x32xbf16>
    %c0_18 = arith.constant 0 : index
    %c288 = arith.constant 288 : index
    %28 = vector.load %arg9[%c0_18, %c288] : memref<256x384xbf16, #tpu.memory_space<vmem>>, vector<128x32xbf16>
    %cst_19 = arith.constant dense<0.000000e+00> : vector<128x128xf32>
    %29 = tpu.matmul %26, %27, %cst_19 {dimension_numbers = #tpu.dot_dimension_numbers<[1], [1], [0], [0], [0, 0, 1, 0], [], []>} : vector<128x32xbf16>, vector<128x32xbf16>, vector<128x128xf32> -> vector<128x128xf32>
    %cst_20 = arith.constant dense<0xFF800000> : vector<128xf32>
    %30 = vector.multi_reduction <maximumf>, %29, %cst_20 [1] : vector<128x128xf32> to vector<128xf32>
    %31 = vector.shape_cast %30 : vector<128xf32> to vector<128x1xf32>
    %32 = vector.broadcast %31 : vector<128x1xf32> to vector<128x128xf32>
    %33 = arith.subf %29, %32 : vector<128x128xf32>
    %34 = math.exp %33 : vector<128x128xf32>
    %cst_21 = arith.constant dense<0.000000e+00> : vector<128xf32>
    %35 = vector.multi_reduction <add>, %34, %cst_21 [1] : vector<128x128xf32> to vector<128xf32>
    %36 = vector.shape_cast %35 : vector<128xf32> to vector<128x1xf32>
    %37 = tpu.reciprocal %36 {approx = true} : vector<128x1xf32> -> vector<128x1xf32>
    %38 = vector.broadcast %37 : vector<128x1xf32> to vector<128x128xf32>
    %39 = arith.mulf %34, %38 : vector<128x128xf32>
    %40 = arith.truncf %39 : vector<128x128xf32> to vector<128x128xbf16>
    %cst_22 = arith.constant dense<0.000000e+00> : vector<128x32xf32>
    %41 = tpu.matmul %40, %28, %cst_22 {dimension_numbers = #tpu.dot_dimension_numbers<[1], [0], [0], [1], [0, 0, 1, 1], [], []>} : vector<128x128xbf16>, vector<128x32xbf16>, vector<128x32xf32> -> vector<128x32xf32>
    %c0_23 = arith.constant 0 : index
    %c64 = arith.constant 64 : index
    %42 = vector.load %arg9[%c0_23, %c64] : memref<256x384xbf16, #tpu.memory_space<vmem>>, vector<128x32xbf16>
    %c0_24 = arith.constant 0 : index
    %c192 = arith.constant 192 : index
    %43 = vector.load %arg9[%c0_24, %c192] : memref<256x384xbf16, #tpu.memory_space<vmem>>, vector<128x32xbf16>
    %c0_25 = arith.constant 0 : index
    %c320 = arith.constant 320 : index
    %44 = vector.load %arg9[%c0_25, %c320] : memref<256x384xbf16, #tpu.memory_space<vmem>>, vector<128x32xbf16>
    %cst_26 = arith.constant dense<0.000000e+00> : vector<128x128xf32>
    %45 = tpu.matmul %42, %43, %cst_26 {dimension_numbers = #tpu.dot_dimension_numbers<[1], [1], [0], [0], [0, 0, 1, 0], [], []>} : vector<128x32xbf16>, vector<128x32xbf16>, vector<128x128xf32> -> vector<128x128xf32>
    %cst_27 = arith.constant dense<0xFF800000> : vector<128xf32>
    %46 = vector.multi_reduction <maximumf>, %45, %cst_27 [1] : vector<128x128xf32> to vector<128xf32>
    %47 = vector.shape_cast %46 : vector<128xf32> to vector<128x1xf32>
    %48 = vector.broadcast %47 : vector<128x1xf32> to vector<128x128xf32>
    %49 = arith.subf %45, %48 : vector<128x128xf32>
    %50 = math.exp %49 : vector<128x128xf32>
    %cst_28 = arith.constant dense<0.000000e+00> : vector<128xf32>
    %51 = vector.multi_reduction <add>, %50, %cst_28 [1] : vector<128x128xf32> to vector<128xf32>
    %52 = vector.shape_cast %51 : vector<128xf32> to vector<128x1xf32>
    %53 = tpu.reciprocal %52 {approx = true} : vector<128x1xf32> -> vector<128x1xf32>
    %54 = vector.broadcast %53 : vector<128x1xf32> to vector<128x128xf32>
    %55 = arith.mulf %50, %54 : vector<128x128xf32>
    %56 = arith.truncf %55 : vector<128x128xf32> to vector<128x128xbf16>
    %cst_29 = arith.constant dense<0.000000e+00> : vector<128x32xf32>
    %57 = tpu.matmul %56, %44, %cst_29 {dimension_numbers = #tpu.dot_dimension_numbers<[1], [0], [0], [1], [0, 0, 1, 1], [], []>} : vector<128x128xbf16>, vector<128x32xbf16>, vector<128x32xf32> -> vector<128x32xf32>
    %c0_30 = arith.constant 0 : index
    %c96 = arith.constant 96 : index
    %58 = vector.load %arg9[%c0_30, %c96] : memref<256x384xbf16, #tpu.memory_space<vmem>>, vector<128x32xbf16>
    %c0_31 = arith.constant 0 : index
    %c224 = arith.constant 224 : index
    %59 = vector.load %arg9[%c0_31, %c224] : memref<256x384xbf16, #tpu.memory_space<vmem>>, vector<128x32xbf16>
    %c0_32 = arith.constant 0 : index
    %c352 = arith.constant 352 : index
    %60 = vector.load %arg9[%c0_32, %c352] : memref<256x384xbf16, #tpu.memory_space<vmem>>, vector<128x32xbf16>
    %cst_33 = arith.constant dense<0.000000e+00> : vector<128x128xf32>
    %61 = tpu.matmul %58, %59, %cst_33 {dimension_numbers = #tpu.dot_dimension_numbers<[1], [1], [0], [0], [0, 0, 1, 0], [], []>} : vector<128x32xbf16>, vector<128x32xbf16>, vector<128x128xf32> -> vector<128x128xf32>
    %cst_34 = arith.constant dense<0xFF800000> : vector<128xf32>
    %62 = vector.multi_reduction <maximumf>, %61, %cst_34 [1] : vector<128x128xf32> to vector<128xf32>
    %63 = vector.shape_cast %62 : vector<128xf32> to vector<128x1xf32>
    %64 = vector.broadcast %63 : vector<128x1xf32> to vector<128x128xf32>
    %65 = arith.subf %61, %64 : vector<128x128xf32>
    %66 = math.exp %65 : vector<128x128xf32>
    %cst_35 = arith.constant dense<0.000000e+00> : vector<128xf32>
    %67 = vector.multi_reduction <add>, %66, %cst_35 [1] : vector<128x128xf32> to vector<128xf32>
    %68 = vector.shape_cast %67 : vector<128xf32> to vector<128x1xf32>
    %69 = tpu.reciprocal %68 {approx = true} : vector<128x1xf32> -> vector<128x1xf32>
    %70 = vector.broadcast %69 : vector<128x1xf32> to vector<128x128xf32>
    %71 = arith.mulf %66, %70 : vector<128x128xf32>
    %72 = arith.truncf %71 : vector<128x128xf32> to vector<128x128xbf16>
    %cst_36 = arith.constant dense<0.000000e+00> : vector<128x32xf32>
    %73 = tpu.matmul %72, %60, %cst_36 {dimension_numbers = #tpu.dot_dimension_numbers<[1], [0], [0], [1], [0, 0, 1, 1], [], []>} : vector<128x128xbf16>, vector<128x32xbf16>, vector<128x32xf32> -> vector<128x32xf32>
    %74 = tpu.concatenate %25, %41, %57, %73 in 1 : vector<128x32xf32>, vector<128x32xf32>, vector<128x32xf32>, vector<128x32xf32> -> vector<128x128xf32>
    %75 = arith.truncf %74 : vector<128x128xf32> to vector<128x128xbf16>
    %c0_37 = arith.constant 0 : index
    %c0_38 = arith.constant 0 : index
    %76 = vector.load %arg6[%c0_37, %c0_38] : memref<128x9xbf16, #tpu.memory_space<vmem>>, vector<128x9xbf16>
    %cst_39 = arith.constant dense<0.000000e+00> : vector<128x9xf32>
    %77 = tpu.matmul %75, %76, %cst_39 {dimension_numbers = #tpu.dot_dimension_numbers<[1], [0], [0], [1], [0, 0, 1, 1], [], []>} : vector<128x128xbf16>, vector<128x9xbf16>, vector<128x9xf32> -> vector<128x9xf32>
    %c0_40 = arith.constant 0 : index
    %c0_41 = arith.constant 0 : index
    %78 = vector.load %arg7[%c0_40, %c0_41] : memref<1x9xf32, #tpu.memory_space<vmem>>, vector<1x9xf32>
    %79 = vector.broadcast %78 : vector<1x9xf32> to vector<128x9xf32>
    %80 = arith.addf %77, %79 : vector<128x9xf32>
    %c0_42 = arith.constant 0 : index
    %c0_43 = arith.constant 0 : index
    %c0_44 = arith.constant 0 : index
    %81 = vector.load %arg2[%c0_42, %c0_43, %c0_44] : memref<2x128x9xf32, #tpu.memory_space<vmem>>, vector<1x128x9xf32>
    %82 = vector.shape_cast %81 : vector<1x128x9xf32> to vector<128x9xf32>
    %cst_45 = arith.constant 9.99999993E-9 : f32
    %83 = vector.broadcast %cst_45 : f32 to vector<128x9xf32>
    %84 = arith.addf %82, %83 : vector<128x9xf32>
    %85 = math.log %84 : vector<128x9xf32>
    %86 = arith.addf %85, %80 : vector<128x9xf32>
    %cst_46 = arith.constant dense<0xFF800000> : vector<128xf32>
    %87 = vector.multi_reduction <maximumf>, %86, %cst_46 [1] : vector<128x9xf32> to vector<128xf32>
    %88 = vector.shape_cast %87 : vector<128xf32> to vector<128x1xf32>
    %89 = vector.broadcast %88 : vector<128x1xf32> to vector<128x9xf32>
    %90 = arith.subf %86, %89 : vector<128x9xf32>
    %91 = math.exp %90 : vector<128x9xf32>
    %cst_47 = arith.constant dense<0.000000e+00> : vector<128xf32>
    %92 = vector.multi_reduction <add>, %91, %cst_47 [1] : vector<128x9xf32> to vector<128xf32>
    %93 = vector.shape_cast %92 : vector<128xf32> to vector<128x1xf32>
    %94 = vector.broadcast %93 : vector<128x1xf32> to vector<128x9xf32>
    %95 = arith.divf %91, %94 : vector<128x9xf32>
    %c0_48 = arith.constant 0 : index
    %c0_49 = arith.constant 0 : index
    %c0_50 = arith.constant 0 : index
    %96 = vector.load %arg3[%c0_48, %c0_49, %c0_50] : memref<2x128x1xf32, #tpu.memory_space<vmem>>, vector<1x128x1xf32>
    %97 = vector.shape_cast %96 : vector<1x128x1xf32> to vector<128x1xf32>
    %98 = vector.broadcast %97 : vector<128x1xf32> to vector<128x9xf32>
    %99 = arith.mulf %95, %98 : vector<128x9xf32>
    %cst_51 = arith.constant dense<0.000000e+00> : vector<9xf32>
    %100 = vector.multi_reduction <add>, %99, %cst_51 [0] : vector<128x9xf32> to vector<9xf32>
    %101 = vector.shape_cast %100 : vector<9xf32> to vector<1x9xf32>
    %cst_52 = arith.constant dense<0.000000e+00> : vector<1xf32>
    %102 = vector.multi_reduction <add>, %97, %cst_52 [0] : vector<128x1xf32> to vector<1xf32>
    %103 = vector.shape_cast %102 : vector<1xf32> to vector<1x1xf32>
    %104 = vector.broadcast %103 : vector<1x1xf32> to vector<1x9xf32>
    %105 = arith.divf %101, %104 : vector<1x9xf32>
    %c0_53 = arith.constant 0 : index
    %c0_54 = arith.constant 0 : index
    %c0_55 = arith.constant 0 : index
    %106 = vector.load %arg8[%c0_53, %c0_54, %c0_55] : memref<2x1x9xf32, #tpu.memory_space<vmem>>, vector<1x1x9xf32>
    %107 = vector.shape_cast %106 : vector<1x1x9xf32> to vector<1x9xf32>
    %108 = vector.shape_cast %105 : vector<1x9xf32> to vector<1x1x9xf32>
    tpu.vector_store %arg8[%c0_53, %c0_54, %c0_55], %108 {strides = array<i32>} : memref<2x1x9xf32, #tpu.memory_space<vmem>>, vector<1x1x9xf32>,
    %c128_56 = arith.constant 128 : index
    %c0_57 = arith.constant 0 : index
    %109 = vector.load %arg9[%c128_56, %c0_57] : memref<256x384xbf16, #tpu.memory_space<vmem>>, vector<128x32xbf16>
    %c128_58 = arith.constant 128 : index
    %c128_59 = arith.constant 128 : index
    %110 = vector.load %arg9[%c128_58, %c128_59] : memref<256x384xbf16, #tpu.memory_space<vmem>>, vector<128x32xbf16>
    %c128_60 = arith.constant 128 : index
    %c256_61 = arith.constant 256 : index
    %111 = vector.load %arg9[%c128_60, %c256_61] : memref<256x384xbf16, #tpu.memory_space<vmem>>, vector<128x32xbf16>
    %cst_62 = arith.constant dense<0.000000e+00> : vector<128x128xf32>
    %112 = tpu.matmul %109, %110, %cst_62 {dimension_numbers = #tpu.dot_dimension_numbers<[1], [1], [0], [0], [0, 0, 1, 0], [], []>} : vector<128x32xbf16>, vector<128x32xbf16>, vector<128x128xf32> -> vector<128x128xf32>
    %cst_63 = arith.constant dense<0xFF800000> : vector<128xf32>
    %113 = vector.multi_reduction <maximumf>, %112, %cst_63 [1] : vector<128x128xf32> to vector<128xf32>
    %114 = vector.shape_cast %113 : vector<128xf32> to vector<128x1xf32>
    %115 = vector.broadcast %114 : vector<128x1xf32> to vector<128x128xf32>
    %116 = arith.subf %112, %115 : vector<128x128xf32>
    %117 = math.exp %116 : vector<128x128xf32>
    %cst_64 = arith.constant dense<0.000000e+00> : vector<128xf32>
    %118 = vector.multi_reduction <add>, %117, %cst_64 [1] : vector<128x128xf32> to vector<128xf32>
    %119 = vector.shape_cast %118 : vector<128xf32> to vector<128x1xf32>
    %120 = tpu.reciprocal %119 {approx = true} : vector<128x1xf32> -> vector<128x1xf32>
    %121 = vector.broadcast %120 : vector<128x1xf32> to vector<128x128xf32>
    %122 = arith.mulf %117, %121 : vector<128x128xf32>
    %123 = arith.truncf %122 : vector<128x128xf32> to vector<128x128xbf16>
    %cst_65 = arith.constant dense<0.000000e+00> : vector<128x32xf32>
    %124 = tpu.matmul %123, %111, %cst_65 {dimension_numbers = #tpu.dot_dimension_numbers<[1], [0], [0], [1], [0, 0, 1, 1], [], []>} : vector<128x128xbf16>, vector<128x32xbf16>, vector<128x32xf32> -> vector<128x32xf32>
    %c128_66 = arith.constant 128 : index
    %c32_67 = arith.constant 32 : index
    %125 = vector.load %arg9[%c128_66, %c32_67] : memref<256x384xbf16, #tpu.memory_space<vmem>>, vector<128x32xbf16>
    %c128_68 = arith.constant 128 : index
    %c160_69 = arith.constant 160 : index
    %126 = vector.load %arg9[%c128_68, %c160_69] : memref<256x384xbf16, #tpu.memory_space<vmem>>, vector<128x32xbf16>
    %c128_70 = arith.constant 128 : index
    %c288_71 = arith.constant 288 : index
    %127 = vector.load %arg9[%c128_70, %c288_71] : memref<256x384xbf16, #tpu.memory_space<vmem>>, vector<128x32xbf16>
    %cst_72 = arith.constant dense<0.000000e+00> : vector<128x128xf32>
    %128 = tpu.matmul %125, %126, %cst_72 {dimension_numbers = #tpu.dot_dimension_numbers<[1], [1], [0], [0], [0, 0, 1, 0], [], []>} : vector<128x32xbf16>, vector<128x32xbf16>, vector<128x128xf32> -> vector<128x128xf32>
    %cst_73 = arith.constant dense<0xFF800000> : vector<128xf32>
    %129 = vector.multi_reduction <maximumf>, %128, %cst_73 [1] : vector<128x128xf32> to vector<128xf32>
    %130 = vector.shape_cast %129 : vector<128xf32> to vector<128x1xf32>
    %131 = vector.broadcast %130 : vector<128x1xf32> to vector<128x128xf32>
    %132 = arith.subf %128, %131 : vector<128x128xf32>
    %133 = math.exp %132 : vector<128x128xf32>
    %cst_74 = arith.constant dense<0.000000e+00> : vector<128xf32>
    %134 = vector.multi_reduction <add>, %133, %cst_74 [1] : vector<128x128xf32> to vector<128xf32>
    %135 = vector.shape_cast %134 : vector<128xf32> to vector<128x1xf32>
    %136 = tpu.reciprocal %135 {approx = true} : vector<128x1xf32> -> vector<128x1xf32>
    %137 = vector.broadcast %136 : vector<128x1xf32> to vector<128x128xf32>
    %138 = arith.mulf %133, %137 : vector<128x128xf32>
    %139 = arith.truncf %138 : vector<128x128xf32> to vector<128x128xbf16>
    %cst_75 = arith.constant dense<0.000000e+00> : vector<128x32xf32>
    %140 = tpu.matmul %139, %127, %cst_75 {dimension_numbers = #tpu.dot_dimension_numbers<[1], [0], [0], [1], [0, 0, 1, 1], [], []>} : vector<128x128xbf16>, vector<128x32xbf16>, vector<128x32xf32> -> vector<128x32xf32>
    %c128_76 = arith.constant 128 : index
    %c64_77 = arith.constant 64 : index
    %141 = vector.load %arg9[%c128_76, %c64_77] : memref<256x384xbf16, #tpu.memory_space<vmem>>, vector<128x32xbf16>
    %c128_78 = arith.constant 128 : index
    %c192_79 = arith.constant 192 : index
    %142 = vector.load %arg9[%c128_78, %c192_79] : memref<256x384xbf16, #tpu.memory_space<vmem>>, vector<128x32xbf16>
    %c128_80 = arith.constant 128 : index
    %c320_81 = arith.constant 320 : index
    %143 = vector.load %arg9[%c128_80, %c320_81] : memref<256x384xbf16, #tpu.memory_space<vmem>>, vector<128x32xbf16>
    %cst_82 = arith.constant dense<0.000000e+00> : vector<128x128xf32>
    %144 = tpu.matmul %141, %142, %cst_82 {dimension_numbers = #tpu.dot_dimension_numbers<[1], [1], [0], [0], [0, 0, 1, 0], [], []>} : vector<128x32xbf16>, vector<128x32xbf16>, vector<128x128xf32> -> vector<128x128xf32>
    %cst_83 = arith.constant dense<0xFF800000> : vector<128xf32>
    %145 = vector.multi_reduction <maximumf>, %144, %cst_83 [1] : vector<128x128xf32> to vector<128xf32>
    %146 = vector.shape_cast %145 : vector<128xf32> to vector<128x1xf32>
    %147 = vector.broadcast %146 : vector<128x1xf32> to vector<128x128xf32>
    %148 = arith.subf %144, %147 : vector<128x128xf32>
    %149 = math.exp %148 : vector<128x128xf32>
    %cst_84 = arith.constant dense<0.000000e+00> : vector<128xf32>
    %150 = vector.multi_reduction <add>, %149, %cst_84 [1] : vector<128x128xf32> to vector<128xf32>
    %151 = vector.shape_cast %150 : vector<128xf32> to vector<128x1xf32>
    %152 = tpu.reciprocal %151 {approx = true} : vector<128x1xf32> -> vector<128x1xf32>
    %153 = vector.broadcast %152 : vector<128x1xf32> to vector<128x128xf32>
    %154 = arith.mulf %149, %153 : vector<128x128xf32>
    %155 = arith.truncf %154 : vector<128x128xf32> to vector<128x128xbf16>
    %cst_85 = arith.constant dense<0.000000e+00> : vector<128x32xf32>
    %156 = tpu.matmul %155, %143, %cst_85 {dimension_numbers = #tpu.dot_dimension_numbers<[1], [0], [0], [1], [0, 0, 1, 1], [], []>} : vector<128x128xbf16>, vector<128x32xbf16>, vector<128x32xf32> -> vector<128x32xf32>
    %c128_86 = arith.constant 128 : index
    %c96_87 = arith.constant 96 : index
    %157 = vector.load %arg9[%c128_86, %c96_87] : memref<256x384xbf16, #tpu.memory_space<vmem>>, vector<128x32xbf16>
    %c128_88 = arith.constant 128 : index
    %c224_89 = arith.constant 224 : index
    %158 = vector.load %arg9[%c128_88, %c224_89] : memref<256x384xbf16, #tpu.memory_space<vmem>>, vector<128x32xbf16>
    %c128_90 = arith.constant 128 : index
    %c352_91 = arith.constant 352 : index
    %159 = vector.load %arg9[%c128_90, %c352_91] : memref<256x384xbf16, #tpu.memory_space<vmem>>, vector<128x32xbf16>
    %cst_92 = arith.constant dense<0.000000e+00> : vector<128x128xf32>
    %160 = tpu.matmul %157, %158, %cst_92 {dimension_numbers = #tpu.dot_dimension_numbers<[1], [1], [0], [0], [0, 0, 1, 0], [], []>} : vector<128x32xbf16>, vector<128x32xbf16>, vector<128x128xf32> -> vector<128x128xf32>
    %cst_93 = arith.constant dense<0xFF800000> : vector<128xf32>
    %161 = vector.multi_reduction <maximumf>, %160, %cst_93 [1] : vector<128x128xf32> to vector<128xf32>
    %162 = vector.shape_cast %161 : vector<128xf32> to vector<128x1xf32>
    %163 = vector.broadcast %162 : vector<128x1xf32> to vector<128x128xf32>
    %164 = arith.subf %160, %163 : vector<128x128xf32>
    %165 = math.exp %164 : vector<128x128xf32>
    %cst_94 = arith.constant dense<0.000000e+00> : vector<128xf32>
    %166 = vector.multi_reduction <add>, %165, %cst_94 [1] : vector<128x128xf32> to vector<128xf32>
    %167 = vector.shape_cast %166 : vector<128xf32> to vector<128x1xf32>
    %168 = tpu.reciprocal %167 {approx = true} : vector<128x1xf32> -> vector<128x1xf32>
    %169 = vector.broadcast %168 : vector<128x1xf32> to vector<128x128xf32>
    %170 = arith.mulf %165, %169 : vector<128x128xf32>
    %171 = arith.truncf %170 : vector<128x128xf32> to vector<128x128xbf16>
    %cst_95 = arith.constant dense<0.000000e+00> : vector<128x32xf32>
    %172 = tpu.matmul %171, %159, %cst_95 {dimension_numbers = #tpu.dot_dimension_numbers<[1], [0], [0], [1], [0, 0, 1, 1], [], []>} : vector<128x128xbf16>, vector<128x32xbf16>, vector<128x32xf32> -> vector<128x32xf32>
    %173 = tpu.concatenate %124, %140, %156, %172 in 1 : vector<128x32xf32>, vector<128x32xf32>, vector<128x32xf32>, vector<128x32xf32> -> vector<128x128xf32>
    %174 = arith.truncf %173 : vector<128x128xf32> to vector<128x128xbf16>
    %c0_96 = arith.constant 0 : index
    %c0_97 = arith.constant 0 : index
    %175 = vector.load %arg6[%c0_96, %c0_97] : memref<128x9xbf16, #tpu.memory_space<vmem>>, vector<128x9xbf16>
    %cst_98 = arith.constant dense<0.000000e+00> : vector<128x9xf32>
    %176 = tpu.matmul %174, %175, %cst_98 {dimension_numbers = #tpu.dot_dimension_numbers<[1], [0], [0], [1], [0, 0, 1, 1], [], []>} : vector<128x128xbf16>, vector<128x9xbf16>, vector<128x9xf32> -> vector<128x9xf32>
    %c0_99 = arith.constant 0 : index
    %c0_100 = arith.constant 0 : index
    %177 = vector.load %arg7[%c0_99, %c0_100] : memref<1x9xf32, #tpu.memory_space<vmem>>, vector<1x9xf32>
    %178 = vector.broadcast %177 : vector<1x9xf32> to vector<128x9xf32>
    %179 = arith.addf %176, %178 : vector<128x9xf32>
    %c1 = arith.constant 1 : index
    %c0_101 = arith.constant 0 : index
    %c0_102 = arith.constant 0 : index
    %180 = vector.load %arg2[%c1, %c0_101, %c0_102] : memref<2x128x9xf32, #tpu.memory_space<vmem>>, vector<1x128x9xf32>
    %181 = vector.shape_cast %180 : vector<1x128x9xf32> to vector<128x9xf32>
    %cst_103 = arith.constant 9.99999993E-9 : f32
    %182 = vector.broadcast %cst_103 : f32 to vector<128x9xf32>
    %183 = arith.addf %181, %182 : vector<128x9xf32>
    %184 = math.log %183 : vector<128x9xf32>
    %185 = arith.addf %184, %179 : vector<128x9xf32>
    %cst_104 = arith.constant dense<0xFF800000> : vector<128xf32>
    %186 = vector.multi_reduction <maximumf>, %185, %cst_104 [1] : vector<128x9xf32> to vector<128xf32>
    %187 = vector.shape_cast %186 : vector<128xf32> to vector<128x1xf32>
    %188 = vector.broadcast %187 : vector<128x1xf32> to vector<128x9xf32>
    %189 = arith.subf %185, %188 : vector<128x9xf32>
    %190 = math.exp %189 : vector<128x9xf32>
    %cst_105 = arith.constant dense<0.000000e+00> : vector<128xf32>
    %191 = vector.multi_reduction <add>, %190, %cst_105 [1] : vector<128x9xf32> to vector<128xf32>
    %192 = vector.shape_cast %191 : vector<128xf32> to vector<128x1xf32>
    %193 = vector.broadcast %192 : vector<128x1xf32> to vector<128x9xf32>
    %194 = arith.divf %190, %193 : vector<128x9xf32>
    %c1_106 = arith.constant 1 : index
    %c0_107 = arith.constant 0 : index
    %c0_108 = arith.constant 0 : index
    %195 = vector.load %arg3[%c1_106, %c0_107, %c0_108] : memref<2x128x1xf32, #tpu.memory_space<vmem>>, vector<1x128x1xf32>
    %196 = vector.shape_cast %195 : vector<1x128x1xf32> to vector<128x1xf32>
    %197 = vector.broadcast %196 : vector<128x1xf32> to vector<128x9xf32>
    %198 = arith.mulf %194, %197 : vector<128x9xf32>
    %cst_109 = arith.constant dense<0.000000e+00> : vector<9xf32>
    %199 = vector.multi_reduction <add>, %198, %cst_109 [0] : vector<128x9xf32> to vector<9xf32>
    %200 = vector.shape_cast %199 : vector<9xf32> to vector<1x9xf32>
    %cst_110 = arith.constant dense<0.000000e+00> : vector<1xf32>
    %201 = vector.multi_reduction <add>, %196, %cst_110 [0] : vector<128x1xf32> to vector<1xf32>
    %202 = vector.shape_cast %201 : vector<1xf32> to vector<1x1xf32>
    %203 = vector.broadcast %202 : vector<1x1xf32> to vector<1x9xf32>
    %204 = arith.divf %200, %203 : vector<1x9xf32>
    %c1_111 = arith.constant 1 : index
    %c0_112 = arith.constant 0 : index
    %c0_113 = arith.constant 0 : index
    %205 = vector.load %arg8[%c1_111, %c0_112, %c0_113] : memref<2x1x9xf32, #tpu.memory_space<vmem>>, vector<1x1x9xf32>
    %206 = vector.shape_cast %205 : vector<1x1x9xf32> to vector<1x9xf32>
    %207 = vector.shape_cast %204 : vector<1x9xf32> to vector<1x1x9xf32>
    tpu.vector_store %arg8[%c1_111, %c0_112, %c0_113], %207 {strides = array<i32>} : memref<2x1x9xf32, #tpu.memory_space<vmem>>, vector<1x1x9xf32>,
    return
  }
  func.func @transform_0(%arg0: i32) -> (i32, i32, i32) {
    %c0_i32 = arith.constant 0 : i32
    %c0_i32_0 = arith.constant 0 : i32
    %c0_i32_1 = arith.constant 0 : i32
    return %arg0, %c0_i32, %c0_i32_0 : i32, i32, i32
  }
  func.func @transform_1(%arg0: i32) -> (i32, i32, i32) {
    %c0_i32 = arith.constant 0 : i32
    %c0_i32_0 = arith.constant 0 : i32
    %c0_i32_1 = arith.constant 0 : i32
    return %arg0, %c0_i32, %c0_i32_0 : i32, i32, i32
  }
  func.func @transform_2(%arg0: i32) -> (i32, i32, i32) {
    %c0_i32 = arith.constant 0 : i32
    %c0_i32_0 = arith.constant 0 : i32
    %c0_i32_1 = arith.constant 0 : i32
    return %arg0, %c0_i32, %c0_i32_0 : i32, i32, i32
  }
  func.func @transform_3(%arg0: i32) -> (i32, i32) {
    %c0_i32 = arith.constant 0 : i32
    %c0_i32_0 = arith.constant 0 : i32
    %c0_i32_1 = arith.constant 0 : i32
    return %c0_i32, %c0_i32_0 : i32, i32
  }
  func.func @transform_4(%arg0: i32) -> (i32, i32) {
    %c0_i32 = arith.constant 0 : i32
    %c0_i32_0 = arith.constant 0 : i32
    %c0_i32_1 = arith.constant 0 : i32
    return %c0_i32, %c0_i32_0 : i32, i32
  }
  func.func @transform_5(%arg0: i32) -> (i32, i32) {
    %c0_i32 = arith.constant 0 : i32
    %c0_i32_0 = arith.constant 0 : i32
    %c0_i32_1 = arith.constant 0 : i32
    return %c0_i32, %c0_i32_0 : i32, i32
  }
  func.func @transform_6(%arg0: i32) -> (i32, i32) {
    %c0_i32 = arith.constant 0 : i32
    %c0_i32_0 = arith.constant 0 : i32
    %c0_i32_1 = arith.constant 0 : i32
    return %c0_i32, %c0_i32_0 : i32, i32
  }
  func.func @transform_7(%arg0: i32) -> (i32, i32, i32) {
    %c0_i32 = arith.constant 0 : i32
    %c0_i32_0 = arith.constant 0 : i32
    %c0_i32_1 = arith.constant 0 : i32
    return %arg0, %c0_i32, %c0_i32_0 : i32, i32, i32
  }
}

</mosaic_0001>

<llo_original>
// kernel: tpu_custom_call.1
$region0: #{tpu_custom_call.1}
  #allocation0 [shape = 'u32[]', space=smem, size = 0x4, offset = 0x4, fixed_abs, tag = 'smem constant byte address 0x4 - core index']
  #allocation1 [shape = 'u32[144,128]{1,0:T(1,128)}', space=vmem, size = 0x12000, scoped, tag = 'internal scratch']
  #allocation2 [shape = 'bf16[256,384]{1,0:T(16,128)(2,1)}', space=vmem, size = 0x30000, scoped, tag = 'scratch operand']
  %s0 = inlined_call_operand.vmem [shape: f32[2,128,128], index: 0, kind: input, shape index: {}]
  %s1 = inlined_call_operand.vmem [shape: f32[2,128,9], index: 1, kind: input, shape index: {}]
  %s2 = inlined_call_operand.vmem [shape: f32[2,128,1], index: 2, kind: input, shape index: {}]
  %s3 = inlined_call_operand.vmem [shape: bf16[128,384], index: 3, kind: input, shape index: {}]
  %s4 = inlined_call_operand.vmem [shape: f32[1,384], index: 4, kind: input, shape index: {}]
  %s5 = inlined_call_operand.vmem [shape: bf16[128,9], index: 5, kind: input, shape index: {}]
  %s6 = inlined_call_operand.vmem [shape: f32[1,9], index: 6, kind: input, shape index: {}]
  %s7 = inlined_call_operand.hbm [shape: f32[2,1,9], index: 7, kind: output, shape index: {}]
  %s8 = sld [smem:[#allocation0]]
  $region38: #{tpu_custom_call.1} parent=0
    _
  %s10 = ssub.s32 1, %s8
  %s11 = scalar_select 0, %s10, %s8
  $region1: #{tpu_custom_call.1} parent=0
    #allocation3 [shape = 'u8[1024]{0}', space=vmem, size = 0x400, scoped, tag = 'output window, operand 0, single buffered']
    #allocation4 [shape = 's32[1]{0}', space=sflag, size = 0x4, scoped, tag = 'scoped memory for tpu_custom_call.1']
    %12 = vsyncpa [#allocation4], 0
    // Predicated region
    $region2: #{tpu_custom_call.1} parent=1 // pred_check
      _
    $region3: #{tpu_custom_call.1} parent=1 // pred_check_branch
      %14 = sbr.rel (0) target = $region5
    $region4: #{tpu_custom_call.1} parent=1 // pred_region
      _
    $region5: #{tpu_custom_call.1} parent=1 // pred_fallthru
      _
    // Predicated region
    $region6: #{tpu_custom_call.1} parent=1 // pred_check
      _
    $region7: #{tpu_custom_call.1} parent=1 // pred_check_branch
      %16 = sbr.rel (0) target = $region9
    $region8: #{tpu_custom_call.1} parent=1 // pred_region
      _
    $region9: #{tpu_custom_call.1} parent=1 // pred_fallthru
      _
    // Predicated region
    $region10: #{tpu_custom_call.1} parent=1 // pred_check
      _
    $region11: #{tpu_custom_call.1} parent=1 // pred_check_branch
      %18 = sbr.rel (0) target = $region13
    $region12: #{tpu_custom_call.1} parent=1 // pred_region
      _
    $region13: #{tpu_custom_call.1} parent=1 // pred_fallthru
      _
    // Predicated region
    $region14: #{tpu_custom_call.1} parent=1 // pred_check
      _
    $region15: #{tpu_custom_call.1} parent=1 // pred_check_branch
      %20 = sbr.rel (0) target = $region17
    $region16: #{tpu_custom_call.1} parent=1 // pred_region
      _
    $region17: #{tpu_custom_call.1} parent=1 // pred_fallthru
      _
    // Predicated region
    $region18: #{tpu_custom_call.1} parent=1 // pred_check
      _
    $region19: #{tpu_custom_call.1} parent=1 // pred_check_branch
      %22 = sbr.rel (0) target = $region21
    $region20: #{tpu_custom_call.1} parent=1 // pred_region
      _
    $region21: #{tpu_custom_call.1} parent=1 // pred_fallthru
      _
    // Predicated region
    $region22: #{tpu_custom_call.1} parent=1 // pred_check
      _
    $region23: #{tpu_custom_call.1} parent=1 // pred_check_branch
      %24 = sbr.rel (0) target = $region25
    $region24: #{tpu_custom_call.1} parent=1 // pred_region
      _
    $region25: #{tpu_custom_call.1} parent=1 // pred_fallthru
      _
    // Predicated region
    $region26: #{tpu_custom_call.1} parent=1 // pred_check
      _
    $region27: #{tpu_custom_call.1} parent=1 // pred_check_branch
      %26 = sbr.rel (0) target = $region29
    $region28: #{tpu_custom_call.1} parent=1 // pred_region
      _
    $region29: #{tpu_custom_call.1} parent=1 // pred_fallthru
      _
    %v28 = vld [vmem:[%s0] sm:$0xff]
    %v29 = vld [vmem:[%s0 + $0x8] sm:$0xff]
    %v30 = vld [vmem:[%s0 + $0x10] sm:$0xff]
    %v31 = vld [vmem:[%s0 + $0x18] sm:$0xff]
    %v32 = vld [vmem:[%s0 + $0x20] sm:$0xff]
    %v33 = vld [vmem:[%s0 + $0x28] sm:$0xff]
    %v34 = vld [vmem:[%s0 + $0x30] sm:$0xff]
    %v35 = vld [vmem:[%s0 + $0x38] sm:$0xff]
    %v36 = vld [vmem:[%s0 + $0x40] sm:$0xff]
    %v37 = vld [vmem:[%s0 + $0x48] sm:$0xff]
    %v38 = vld [vmem:[%s0 + $0x50] sm:$0xff]
    %v39 = vld [vmem:[%s0 + $0x58] sm:$0xff]
    %v40 = vld [vmem:[%s0 + $0x60] sm:$0xff]
    %v41 = vld [vmem:[%s0 + $0x68] sm:$0xff]
    %v42 = vld [vmem:[%s0 + $0x70] sm:$0xff]
    %v43 = vld [vmem:[%s0 + $0x78] sm:$0xff]
    %v44 = vld [vmem:[%s0 + $0x80] sm:$0xff]
    %v45 = vld [vmem:[%s0 + $0x88] sm:$0xff]
    %v46 = vld [vmem:[%s0 + $0x90] sm:$0xff]
    %v47 = vld [vmem:[%s0 + $0x98] sm:$0xff]
    %v48 = vld [vmem:[%s0 + $0xa0] sm:$0xff]
    %v49 = vld [vmem:[%s0 + $0xa8] sm:$0xff]
    %v50 = vld [vmem:[%s0 + $0xb0] sm:$0xff]
    %v51 = vld [vmem:[%s0 + $0xb8] sm:$0xff]
    %v52 = vld [vmem:[%s0 + $0xc0] sm:$0xff]
    %v53 = vld [vmem:[%s0 + $0xc8] sm:$0xff]
    %v54 = vld [vmem:[%s0 + $0xd0] sm:$0xff]
    %v55 = vld [vmem:[%s0 + $0xd8] sm:$0xff]
    %v56 = vld [vmem:[%s0 + $0xe0] sm:$0xff]
    %v57 = vld [vmem:[%s0 + $0xe8] sm:$0xff]
    %v58 = vld [vmem:[%s0 + $0xf0] sm:$0xff]
    %v59 = vld [vmem:[%s0 + $0xf8] sm:$0xff]
    %v60 = vpack.c.bf16 %v29, %v28
    %v61 = vpack.c.bf16 %v31, %v30
    %v62 = vpack.c.bf16 %v33, %v32
    %v63 = vpack.c.bf16 %v35, %v34
    %v64 = vpack.c.bf16 %v37, %v36
    %v65 = vpack.c.bf16 %v39, %v38
    %v66 = vpack.c.bf16 %v41, %v40
    %v67 = vpack.c.bf16 %v43, %v42
    %v68 = vpack.c.bf16 %v45, %v44
    %v69 = vpack.c.bf16 %v47, %v46
    %v70 = vpack.c.bf16 %v49, %v48
    %v71 = vpack.c.bf16 %v51, %v50
    %v72 = vpack.c.bf16 %v53, %v52
    %v73 = vpack.c.bf16 %v55, %v54
    %v74 = vpack.c.bf16 %v57, %v56
    %v75 = vpack.c.bf16 %v59, %v58
    %v76 = vld [vmem:[%s3] sm:$0xff]
    %v77 = vld [vmem:[%s3 + $0x8] sm:$0xf]
    %v78 = vld [vmem:[%s3 + $0xc] sm:$0xff]
    %v79 = vld [vmem:[%s3 + $0x14] sm:$0xf]
    %v80 = vld [vmem:[%s3 + $0x18] sm:$0xff]
    %v81 = vld [vmem:[%s3 + $0x20] sm:$0xf]
    %v82 = vld [vmem:[%s3 + $0x24] sm:$0xff]
    %v83 = vld [vmem:[%s3 + $0x2c] sm:$0xf]
    %v84 = vld [vmem:[%s3 + $0x30] sm:$0xff]
    %v85 = vld [vmem:[%s3 + $0x38] sm:$0xf]
    %v86 = vld [vmem:[%s3 + $0x3c] sm:$0xff]
    %v87 = vld [vmem:[%s3 + $0x44] sm:$0xf]
    %v88 = vld [vmem:[%s3 + $0x48] sm:$0xff]
    %v89 = vld [vmem:[%s3 + $0x50] sm:$0xf]
    %v90 = vld [vmem:[%s3 + $0x54] sm:$0xff]
    %v91 = vld [vmem:[%s3 + $0x5c] sm:$0xf]
    %v92 = vld [vmem:[%s3 + $0x60] sm:$0xff]
    %v93 = vld [vmem:[%s3 + $0x68] sm:$0xf]
    %v94 = vld [vmem:[%s3 + $0x6c] sm:$0xff]
    %v95 = vld [vmem:[%s3 + $0x74] sm:$0xf]
    %v96 = vld [vmem:[%s3 + $0x78] sm:$0xff]
    %v97 = vld [vmem:[%s3 + $0x80] sm:$0xf]
    %v98 = vld [vmem:[%s3 + $0x84] sm:$0xff]
    %v99 = vld [vmem:[%s3 + $0x8c] sm:$0xf]
    %v100 = vld [vmem:[%s3 + $0x90] sm:$0xff]
    %v101 = vld [vmem:[%s3 + $0x98] sm:$0xf]
    %v102 = vld [vmem:[%s3 + $0x9c] sm:$0xff]
    %v103 = vld [vmem:[%s3 + $0xa4] sm:$0xf]
    %v104 = vld [vmem:[%s3 + $0xa8] sm:$0xff]
    %v105 = vld [vmem:[%s3 + $0xb0] sm:$0xf]
    %v106 = vld [vmem:[%s3 + $0xb4] sm:$0xff]
    %v107 = vld [vmem:[%s3 + $0xbc] sm:$0xf]
    %v108 = vld [vmem:[%s4] sm:$0x7]
    %v110 = vlaneseq
    %v111 = vshrl.u32 %v110, 7
    %v112 = vsub.s32 0, %v111
    %v113 = vrot.slane %v108, %v112
    %v114 = vlaneseq
    %v115 = vshrl.u32 %v114, 7
    %v116 = vsub.s32 1, %v115
    %v117 = vrot.slane %v108, %v116
    %v118 = vlaneseq
    %v119 = vshrl.u32 %v118, 7
    %v120 = vsub.s32 2, %v119
    %v121 = vrot.slane %v108, %v120
    %v157 = vunpack.c.l.b16 %v76
    %v158 = vunpack.c.h.b16 %v76
    %v159 = vunpack.c.l.b16 %v77
    %v160 = vunpack.c.l.b16 %v78
    %v161 = vunpack.c.h.b16 %v78
    %v162 = vunpack.c.l.b16 %v79
    %v163 = vunpack.c.l.b16 %v80
    %v164 = vunpack.c.h.b16 %v80
    %v165 = vunpack.c.l.b16 %v81
    %v166 = vunpack.c.l.b16 %v82
    %v167 = vunpack.c.h.b16 %v82
    %v168 = vunpack.c.l.b16 %v83
    %v169 = vunpack.c.l.b16 %v84
    %v170 = vunpack.c.h.b16 %v84
    %v171 = vunpack.c.l.b16 %v85
    %v172 = vunpack.c.l.b16 %v86
    %v173 = vunpack.c.h.b16 %v86
    %v174 = vunpack.c.l.b16 %v87
    %v175 = vunpack.c.l.b16 %v88
    %v176 = vunpack.c.h.b16 %v88
    %v177 = vunpack.c.l.b16 %v89
    %v178 = vunpack.c.l.b16 %v90
    %v179 = vunpack.c.h.b16 %v90
    %v180 = vunpack.c.l.b16 %v91
    %v181 = vunpack.c.l.b16 %v92
    %v182 = vunpack.c.h.b16 %v92
    %v183 = vunpack.c.l.b16 %v93
    %v184 = vunpack.c.l.b16 %v94
    %v185 = vunpack.c.h.b16 %v94
    %v186 = vunpack.c.l.b16 %v95
    %v187 = vunpack.c.l.b16 %v96
    %v188 = vunpack.c.h.b16 %v96
    %v189 = vunpack.c.l.b16 %v97
    %v190 = vunpack.c.l.b16 %v98
    %v191 = vunpack.c.h.b16 %v98
    %v192 = vunpack.c.l.b16 %v99
    %v193 = vunpack.c.l.b16 %v100
    %v194 = vunpack.c.h.b16 %v100
    %v195 = vunpack.c.l.b16 %v101
    %v196 = vunpack.c.l.b16 %v102
    %v197 = vunpack.c.h.b16 %v102
    %v198 = vunpack.c.l.b16 %v103
    %v199 = vunpack.c.l.b16 %v104
    %v200 = vunpack.c.h.b16 %v104
    %v201 = vunpack.c.l.b16 %v105
    %v202 = vunpack.c.l.b16 %v106
    %v203 = vunpack.c.h.b16 %v106
    %v204 = vunpack.c.l.b16 %v107
    %v205 = vpack.c.b16 %v160, %v157
    %v206 = vpack.c.b16 %v161, %v158
    %v207 = vpack.c.b16 %v162, %v159
    %v208 = vpack.c.b16 %v166, %v163
    %v209 = vpack.c.b16 %v167, %v164
    %v210 = vpack.c.b16 %v168, %v165
    %v211 = vpack.c.b16 %v172, %v169
    %v212 = vpack.c.b16 %v173, %v170
    %v213 = vpack.c.b16 %v174, %v171
    %v214 = vpack.c.b16 %v178, %v175
    %v215 = vpack.c.b16 %v179, %v176
    %v216 = vpack.c.b16 %v180, %v177
    %v217 = vpack.c.b16 %v184, %v181
    %v218 = vpack.c.b16 %v185, %v182
    %v219 = vpack.c.b16 %v186, %v183
    %v220 = vpack.c.b16 %v190, %v187
    %v221 = vpack.c.b16 %v191, %v188
    %v222 = vpack.c.b16 %v192, %v189
    %v223 = vpack.c.b16 %v196, %v193
    %v224 = vpack.c.b16 %v197, %v194
    %v225 = vpack.c.b16 %v198, %v195
    %v226 = vpack.c.b16 %v202, %v199
    %v227 = vpack.c.b16 %v203, %v200
    %v228 = vpack.c.b16 %v204, %v201
    %253 = vmatprep.subr.bf16.mxu0 %v206
    %254 = vmatpush1.bf16.msra.mxu0 %v205
    %255 = vmatprep.subr.bf16.mxu0 %v209
    %256 = vmatpush1.bf16.msra.mxu0 %v208
    %257 = vmatprep.subr.bf16.mxu0 %v212
    %258 = vmatpush1.bf16.msra.mxu0 %v211
    %259 = vmatprep.subr.bf16.mxu0 %v215
    %260 = vmatpush1.bf16.msra.mxu0 %v214
    %261 = vmatprep.subr.bf16.mxu0 %v218
    %262 = vmatpush1.bf16.msra.mxu0 %v217
    %263 = vmatprep.subr.bf16.mxu0 %v221
    %264 = vmatpush1.bf16.msra.mxu0 %v220
    %265 = vmatprep.subr.bf16.mxu0 %v224
    %266 = vmatpush1.bf16.msra.mxu0 %v223
    %267 = vmatprep.subr.bf16.mxu0 %v227
    %268 = vmatpush1.bf16.msra.mxu0 %v226
    %269 = vmatprep.subr.bf16.mxu0 0
    %270 = vmatpush1.bf16.msra.mxu0 0
    %271 = vmatprep.subr.bf16.mxu0 0
    %272 = vmatpush1.bf16.msra.mxu0 0
    %273 = vmatprep.subr.bf16.mxu0 0
    %274 = vmatpush1.bf16.msra.mxu0 0
    %275 = vmatprep.subr.bf16.mxu0 0
    %276 = vmatpush1.bf16.msra.mxu0 0
    %277 = vmatprep.subr.bf16.mxu0 0
    %278 = vmatpush1.bf16.msra.mxu0 0
    %279 = vmatprep.subr.bf16.mxu0 0
    %280 = vmatpush1.bf16.msra.mxu0 0
    %281 = vmatprep.subr.bf16.mxu0 0
    %282 = vmatpush1.bf16.msra.mxu0 0
    %283 = vmatprep.subr.bf16.mxu0 0
    %284 = vmatpush1.bf16.msra.mxu0 0
    %285 = vmatprep.mubr.bf16.mxu0 0
    %286 = vmatmul.mubr.bf16.gmra.mrb[0].mxu0 %v60
    %v287 = vpop.f32.mrb[0].mxu0
    %v288 = vadd.f32 %v113, %v287
    %v289 = vpop.f32.mrb[0].mxu0
    %v290 = vadd.f32 %v117, %v289
    %v291 = vpop.f32.mrb[0].mxu0
    %v292 = vadd.f32 %v113, %v291
    %v293 = vpop.f32.mrb[0].mxu0
    %v294 = vadd.f32 %v117, %v293
    %295 = vmatprep.mubr.bf16.mxu0 0
    %296 = vmatmul.mubr.bf16.gmra.mrb[0].mxu0 %v61
    %v297 = vpop.f32.mrb[0].mxu0
    %v298 = vadd.f32 %v113, %v297
    %v299 = vpop.f32.mrb[0].mxu0
    %v300 = vadd.f32 %v117, %v299
    %v301 = vpop.f32.mrb[0].mxu0
    %v302 = vadd.f32 %v113, %v301
    %v303 = vpop.f32.mrb[0].mxu0
    %v304 = vadd.f32 %v117, %v303
    %305 = vmatprep.mubr.bf16.mxu0 0
    %306 = vmatmul.mubr.bf16.gmra.mrb[0].mxu0 %v62
    %v307 = vpop.f32.mrb[0].mxu0
    %v308 = vadd.f32 %v113, %v307
    %v309 = vpop.f32.mrb[0].mxu0
    %v310 = vadd.f32 %v117, %v309
    %v311 = vpop.f32.mrb[0].mxu0
    %v312 = vadd.f32 %v113, %v311
    %v313 = vpop.f32.mrb[0].mxu0
    %v314 = vadd.f32 %v117, %v313
    %315 = vmatprep.mubr.bf16.mxu0 0
    %316 = vmatmul.mubr.bf16.gmra.mrb[0].mxu0 %v63
    %v317 = vpop.f32.mrb[0].mxu0
    %v318 = vadd.f32 %v113, %v317
    %v319 = vpop.f32.mrb[0].mxu0
    %v320 = vadd.f32 %v117, %v319
    %v321 = vpop.f32.mrb[0].mxu0
    %v322 = vadd.f32 %v113, %v321
    %v323 = vpop.f32.mrb[0].mxu0
    %v324 = vadd.f32 %v117, %v323
    %325 = vmatprep.mubr.bf16.mxu0 0
    %326 = vmatmul.mubr.bf16.gmra.mrb[0].mxu0 %v64
    %v327 = vpop.f32.mrb[0].mxu0
    %v328 = vadd.f32 %v113, %v327
    %v329 = vpop.f32.mrb[0].mxu0
    %v330 = vadd.f32 %v117, %v329
    %v331 = vpop.f32.mrb[0].mxu0
    %v332 = vadd.f32 %v113, %v331
    %v333 = vpop.f32.mrb[0].mxu0
    %v334 = vadd.f32 %v117, %v333
    %335 = vmatprep.mubr.bf16.mxu0 0
    %336 = vmatmul.mubr.bf16.gmra.mrb[0].mxu0 %v65
    %v337 = vpop.f32.mrb[0].mxu0
    %v338 = vadd.f32 %v113, %v337
    %v339 = vpop.f32.mrb[0].mxu0
    %v340 = vadd.f32 %v117, %v339
    %v341 = vpop.f32.mrb[0].mxu0
    %v342 = vadd.f32 %v113, %v341
    %v343 = vpop.f32.mrb[0].mxu0
    %v344 = vadd.f32 %v117, %v343
    %345 = vmatprep.mubr.bf16.mxu0 0
    %346 = vmatmul.mubr.bf16.gmra.mrb[0].mxu0 %v66
    %v347 = vpop.f32.mrb[0].mxu0
    %v348 = vadd.f32 %v113, %v347
    %v349 = vpop.f32.mrb[0].mxu0
    %v350 = vadd.f32 %v117, %v349
    %v351 = vpop.f32.mrb[0].mxu0
    %v352 = vadd.f32 %v113, %v351
    %v353 = vpop.f32.mrb[0].mxu0
    %v354 = vadd.f32 %v117, %v353
    %355 = vmatprep.mubr.bf16.mxu0 0
    %356 = vmatmul.mubr.bf16.gmra.mrb[0].mxu0 %v67
    %v357 = vpop.f32.mrb[0].mxu0
    %v358 = vadd.f32 %v113, %v357
    %v359 = vpop.f32.mrb[0].mxu0
    %v360 = vadd.f32 %v117, %v359
    %v361 = vpop.f32.mrb[0].mxu0
    %v362 = vadd.f32 %v113, %v361
    %v363 = vpop.f32.mrb[0].mxu0
    %v364 = vadd.f32 %v117, %v363
    %365 = vmatprep.mubr.bf16.mxu0 0
    %366 = vmatmul.mubr.bf16.gmra.mrb[0].mxu0 %v68
    %v367 = vpop.f32.mrb[0].mxu0
    %v368 = vadd.f32 %v113, %v367
    %v369 = vpop.f32.mrb[0].mxu0
    %v370 = vadd.f32 %v117, %v369
    %v371 = vpop.f32.mrb[0].mxu0
    %v372 = vadd.f32 %v113, %v371
    %v373 = vpop.f32.mrb[0].mxu0
    %v374 = vadd.f32 %v117, %v373
    %375 = vmatprep.mubr.bf16.mxu0 0
    %376 = vmatmul.mubr.bf16.gmra.mrb[0].mxu0 %v69
    %v377 = vpop.f32.mrb[0].mxu0
    %v378 = vadd.f32 %v113, %v377
    %v379 = vpop.f32.mrb[0].mxu0
    %v380 = vadd.f32 %v117, %v379
    %v381 = vpop.f32.mrb[0].mxu0
    %v382 = vadd.f32 %v113, %v381
    %v383 = vpop.f32.mrb[0].mxu0
    %v384 = vadd.f32 %v117, %v383
    %385 = vmatprep.mubr.bf16.mxu0 0
    %386 = vmatmul.mubr.bf16.gmra.mrb[0].mxu0 %v70
    %v387 = vpop.f32.mrb[0].mxu0
    %v388 = vadd.f32 %v113, %v387
    %v389 = vpop.f32.mrb[0].mxu0
    %v390 = vadd.f32 %v117, %v389
    %v391 = vpop.f32.mrb[0].mxu0
    %v392 = vadd.f32 %v113, %v391
    %v393 = vpop.f32.mrb[0].mxu0
    %v394 = vadd.f32 %v117, %v393
    %395 = vmatprep.mubr.bf16.mxu0 0
    %396 = vmatmul.mubr.bf16.gmra.mrb[0].mxu0 %v71
    %v397 = vpop.f32.mrb[0].mxu0
    %v398 = vadd.f32 %v113, %v397
    %v399 = vpop.f32.mrb[0].mxu0
    %v400 = vadd.f32 %v117, %v399
    %v401 = vpop.f32.mrb[0].mxu0
    %v402 = vadd.f32 %v113, %v401
    %v403 = vpop.f32.mrb[0].mxu0
    %v404 = vadd.f32 %v117, %v403
    %405 = vmatprep.mubr.bf16.mxu0 0
    %406 = vmatmul.mubr.bf16.gmra.mrb[0].mxu0 %v72
    %v407 = vpop.f32.mrb[0].mxu0
    %v408 = vadd.f32 %v113, %v407
    %v409 = vpop.f32.mrb[0].mxu0
    %v410 = vadd.f32 %v117, %v409
    %v411 = vpop.f32.mrb[0].mxu0
    %v412 = vadd.f32 %v113, %v411
    %v413 = vpop.f32.mrb[0].mxu0
    %v414 = vadd.f32 %v117, %v413
    %415 = vmatprep.mubr.bf16.mxu0 0
    %416 = vmatmul.mubr.bf16.gmra.mrb[0].mxu0 %v73
    %v417 = vpop.f32.mrb[0].mxu0
    %v418 = vadd.f32 %v113, %v417
    %v419 = vpop.f32.mrb[0].mxu0
    %v420 = vadd.f32 %v117, %v419
    %v421 = vpop.f32.mrb[0].mxu0
    %v422 = vadd.f32 %v113, %v421
    %v423 = vpop.f32.mrb[0].mxu0
    %v424 = vadd.f32 %v117, %v423
    %425 = vmatprep.mubr.bf16.mxu0 0
    %426 = vmatmul.mubr.bf16.gmra.mrb[0].mxu0 %v74
    %v427 = vpop.f32.mrb[0].mxu0
    %v428 = vadd.f32 %v113, %v427
    %v429 = vpop.f32.mrb[0].mxu0
    %v430 = vadd.f32 %v117, %v429
    %v431 = vpop.f32.mrb[0].mxu0
    %v432 = vadd.f32 %v113, %v431
    %v433 = vpop.f32.mrb[0].mxu0
    %v434 = vadd.f32 %v117, %v433
    %435 = vmatprep.mubr.bf16.mxu0 0
    %436 = vmatmul.mubr.bf16.gmra.mrb[0].mxu0 %v75
    %v437 = vpop.f32.mrb[0].mxu0
    %v438 = vadd.f32 %v113, %v437
    %v439 = vpop.f32.mrb[0].mxu0
    %v440 = vadd.f32 %v117, %v439
    %v441 = vpop.f32.mrb[0].mxu0
    %v442 = vadd.f32 %v113, %v441
    %v443 = vpop.f32.mrb[0].mxu0
    %v444 = vadd.f32 %v117, %v443
    %445 = vdwg.mxu0
    %446 = vmatprep.subr.bf16.mxu0 0
    %447 = vmatpush1.bf16.msra.mxu0 %v207
    %448 = vmatprep.subr.bf16.mxu0 0
    %449 = vmatpush1.bf16.msra.mxu0 %v210
    %450 = vmatprep.subr.bf16.mxu0 0
    %451 = vmatpush1.bf16.msra.mxu0 %v213
    %452 = vmatprep.subr.bf16.mxu0 0
    %453 = vmatpush1.bf16.msra.mxu0 %v216
    %454 = vmatprep.subr.bf16.mxu0 0
    %455 = vmatpush1.bf16.msra.mxu0 %v219
    %456 = vmatprep.subr.bf16.mxu0 0
    %457 = vmatpush1.bf16.msra.mxu0 %v222
    %458 = vmatprep.subr.bf16.mxu0 0
    %459 = vmatpush1.bf16.msra.mxu0 %v225
    %460 = vmatprep.subr.bf16.mxu0 0
    %461 = vmatpush1.bf16.msra.mxu0 %v228
    %462 = vmatprep.subr.bf16.mxu0 0
    %463 = vmatpush1.bf16.msra.mxu0 0
    %464 = vmatprep.subr.bf16.mxu0 0
    %465 = vmatpush1.bf16.msra.mxu0 0
    %466 = vmatprep.subr.bf16.mxu0 0
    %467 = vmatpush1.bf16.msra.mxu0 0
    %468 = vmatprep.subr.bf16.mxu0 0
    %469 = vmatpush1.bf16.msra.mxu0 0
    %470 = vmatprep.subr.bf16.mxu0 0
    %471 = vmatpush1.bf16.msra.mxu0 0
    %472 = vmatprep.subr.bf16.mxu0 0
    %473 = vmatpush1.bf16.msra.mxu0 0
    %474 = vmatprep.subr.bf16.mxu0 0
    %475 = vmatpush1.bf16.msra.mxu0 0
    %476 = vmatprep.subr.bf16.mxu0 0
    %477 = vmatpush1.bf16.msra.mxu0 0
    %478 = vmatprep.mubr.bf16.mxu0 0
    %479 = vmatmul.mubr.bf16.gmra.mrb[0].mxu0 %v60
    %v480 = vpop.f32.mrb[0].mxu0
    %v481 = vadd.f32 %v121, %v480
    %v482 = vpop.f32.mrb[0].mxu0
    %v483 = vpop.f32.mrb[0].mxu0
    %v484 = vadd.f32 %v121, %v483
    %v485 = vpop.f32.mrb[0].mxu0
    %486 = vmatprep.mubr.bf16.mxu0 0
    %487 = vmatmul.mubr.bf16.gmra.mrb[0].mxu0 %v61
    %v488 = vpop.f32.mrb[0].mxu0
    %v489 = vadd.f32 %v121, %v488
    %v490 = vpop.f32.mrb[0].mxu0
    %v491 = vpop.f32.mrb[0].mxu0
    %v492 = vadd.f32 %v121, %v491
    %v493 = vpop.f32.mrb[0].mxu0
    %494 = vmatprep.mubr.bf16.mxu0 0
    %495 = vmatmul.mubr.bf16.gmra.mrb[0].mxu0 %v62
    %v496 = vpop.f32.mrb[0].mxu0
    %v497 = vadd.f32 %v121, %v496
    %v498 = vpop.f32.mrb[0].mxu0
    %v499 = vpop.f32.mrb[0].mxu0
    %v500 = vadd.f32 %v121, %v499
    %v501 = vpop.f32.mrb[0].mxu0
    %502 = vmatprep.mubr.bf16.mxu0 0
    %503 = vmatmul.mubr.bf16.gmra.mrb[0].mxu0 %v63
    %v504 = vpop.f32.mrb[0].mxu0
    %v505 = vadd.f32 %v121, %v504
    %v506 = vpop.f32.mrb[0].mxu0
    %v507 = vpop.f32.mrb[0].mxu0
    %v508 = vadd.f32 %v121, %v507
    %v509 = vpop.f32.mrb[0].mxu0
    %510 = vmatprep.mubr.bf16.mxu0 0
    %511 = vmatmul.mubr.bf16.gmra.mrb[0].mxu0 %v64
    %v512 = vpop.f32.mrb[0].mxu0
    %v513 = vadd.f32 %v121, %v512
    %v514 = vpop.f32.mrb[0].mxu0
    %v515 = vpop.f32.mrb[0].mxu0
    %v516 = vadd.f32 %v121, %v515
    %v517 = vpop.f32.mrb[0].mxu0
    %518 = vmatprep.mubr.bf16.mxu0 0
    %519 = vmatmul.mubr.bf16.gmra.mrb[0].mxu0 %v65
    %v520 = vpop.f32.mrb[0].mxu0
    %v521 = vadd.f32 %v121, %v520
    %v522 = vpop.f32.mrb[0].mxu0
    %v523 = vpop.f32.mrb[0].mxu0
    %v524 = vadd.f32 %v121, %v523
    %v525 = vpop.f32.mrb[0].mxu0
    %526 = vmatprep.mubr.bf16.mxu0 0
    %527 = vmatmul.mubr.bf16.gmra.mrb[0].mxu0 %v66
    %v528 = vpop.f32.mrb[0].mxu0
    %v529 = vadd.f32 %v121, %v528
    %v530 = vpop.f32.mrb[0].mxu0
    %v531 = vpop.f32.mrb[0].mxu0
    %v532 = vadd.f32 %v121, %v531
    %v533 = vpop.f32.mrb[0].mxu0
    %534 = vmatprep.mubr.bf16.mxu0 0
    %535 = vmatmul.mubr.bf16.gmra.mrb[0].mxu0 %v67
    %v536 = vpop.f32.mrb[0].mxu0
    %v537 = vadd.f32 %v121, %v536
    %v538 = vpop.f32.mrb[0].mxu0
    %v539 = vpop.f32.mrb[0].mxu0
    %v540 = vadd.f32 %v121, %v539
    %v541 = vpop.f32.mrb[0].mxu0
    %542 = vmatprep.mubr.bf16.mxu0 0
    %543 = vmatmul.mubr.bf16.gmra.mrb[0].mxu0 %v68
    %v544 = vpop.f32.mrb[0].mxu0
    %v545 = vadd.f32 %v121, %v544
    %v546 = vpop.f32.mrb[0].mxu0
    %v547 = vpop.f32.mrb[0].mxu0
    %v548 = vadd.f32 %v121, %v547
    %v549 = vpop.f32.mrb[0].mxu0
    %550 = vmatprep.mubr.bf16.mxu0 0
    %551 = vmatmul.mubr.bf16.gmra.mrb[0].mxu0 %v69
    %v552 = vpop.f32.mrb[0].mxu0
    %v553 = vadd.f32 %v121, %v552
    %v554 = vpop.f32.mrb[0].mxu0
    %v555 = vpop.f32.mrb[0].mxu0
    %v556 = vadd.f32 %v121, %v555
    %v557 = vpop.f32.mrb[0].mxu0
    %558 = vmatprep.mubr.bf16.mxu0 0
    %559 = vmatmul.mubr.bf16.gmra.mrb[0].mxu0 %v70
    %v560 = vpop.f32.mrb[0].mxu0
    %v561 = vadd.f32 %v121, %v560
    %v562 = vpop.f32.mrb[0].mxu0
    %v563 = vpop.f32.mrb[0].mxu0
    %v564 = vadd.f32 %v121, %v563
    %v565 = vpop.f32.mrb[0].mxu0
    %566 = vmatprep.mubr.bf16.mxu0 0
    %567 = vmatmul.mubr.bf16.gmra.mrb[0].mxu0 %v71
    %v568 = vpop.f32.mrb[0].mxu0
    %v569 = vadd.f32 %v121, %v568
    %v570 = vpop.f32.mrb[0].mxu0
    %v571 = vpop.f32.mrb[0].mxu0
    %v572 = vadd.f32 %v121, %v571
    %v573 = vpop.f32.mrb[0].mxu0
    %574 = vmatprep.mubr.bf16.mxu0 0
    %575 = vmatmul.mubr.bf16.gmra.mrb[0].mxu0 %v72
    %v576 = vpop.f32.mrb[0].mxu0
    %v577 = vadd.f32 %v121, %v576
    %v578 = vpop.f32.mrb[0].mxu0
    %v579 = vpop.f32.mrb[0].mxu0
    %v580 = vadd.f32 %v121, %v579
    %v581 = vpop.f32.mrb[0].mxu0
    %582 = vmatprep.mubr.bf16.mxu0 0
    %583 = vmatmul.mubr.bf16.gmra.mrb[0].mxu0 %v73
    %v584 = vpop.f32.mrb[0].mxu0
    %v585 = vadd.f32 %v121, %v584
    %v586 = vpop.f32.mrb[0].mxu0
    %v587 = vpop.f32.mrb[0].mxu0
    %v588 = vadd.f32 %v121, %v587
    %v589 = vpop.f32.mrb[0].mxu0
    %590 = vmatprep.mubr.bf16.mxu0 0
    %591 = vmatmul.mubr.bf16.gmra.mrb[0].mxu0 %v74
    %v592 = vpop.f32.mrb[0].mxu0
    %v593 = vadd.f32 %v121, %v592
    %v594 = vpop.f32.mrb[0].mxu0
    %v595 = vpop.f32.mrb[0].mxu0
    %v596 = vadd.f32 %v121, %v595
    %v597 = vpop.f32.mrb[0].mxu0
    %598 = vmatprep.mubr.bf16.mxu0 0
    %599 = vmatmul.mubr.bf16.gmra.mrb[0].mxu0 %v75
    %v600 = vpop.f32.mrb[0].mxu0
    %v601 = vadd.f32 %v121, %v600
    %v602 = vpop.f32.mrb[0].mxu0
    %v603 = vpop.f32.mrb[0].mxu0
    %v604 = vadd.f32 %v121, %v603
    %v605 = vpop.f32.mrb[0].mxu0
    %606 = vdwg.mxu0
    %v607 = vpack.c.bf16 %v292, %v288
    %v608 = vpack.c.bf16 %v294, %v290
    %v609 = vpack.c.bf16 %v484, %v481
    %v610 = vpack.c.bf16 %v302, %v298
    %v611 = vpack.c.bf16 %v304, %v300
    %v612 = vpack.c.bf16 %v492, %v489
    %v613 = vpack.c.bf16 %v312, %v308
    %v614 = vpack.c.bf16 %v314, %v310
    %v615 = vpack.c.bf16 %v500, %v497
    %v616 = vpack.c.bf16 %v322, %v318
    %v617 = vpack.c.bf16 %v324, %v320
    %v618 = vpack.c.bf16 %v508, %v505
    %v619 = vpack.c.bf16 %v332, %v328
    %v620 = vpack.c.bf16 %v334, %v330
    %v621 = vpack.c.bf16 %v516, %v513
    %v622 = vpack.c.bf16 %v342, %v338
    %v623 = vpack.c.bf16 %v344, %v340
    %v624 = vpack.c.bf16 %v524, %v521
    %v625 = vpack.c.bf16 %v352, %v348
    %v626 = vpack.c.bf16 %v354, %v350
    %v627 = vpack.c.bf16 %v532, %v529
    %v628 = vpack.c.bf16 %v362, %v358
    %v629 = vpack.c.bf16 %v364, %v360
    %v630 = vpack.c.bf16 %v540, %v537
    %v631 = vpack.c.bf16 %v372, %v368
    %v632 = vpack.c.bf16 %v374, %v370
    %v633 = vpack.c.bf16 %v548, %v545
    %v634 = vpack.c.bf16 %v382, %v378
    %v635 = vpack.c.bf16 %v384, %v380
    %v636 = vpack.c.bf16 %v556, %v553
    %v637 = vpack.c.bf16 %v392, %v388
    %v638 = vpack.c.bf16 %v394, %v390
    %v639 = vpack.c.bf16 %v564, %v561
    %v640 = vpack.c.bf16 %v402, %v398
    %v641 = vpack.c.bf16 %v404, %v400
    %v642 = vpack.c.bf16 %v572, %v569
    %v643 = vpack.c.bf16 %v412, %v408
    %v644 = vpack.c.bf16 %v414, %v410
    %v645 = vpack.c.bf16 %v580, %v577
    %v646 = vpack.c.bf16 %v422, %v418
    %v647 = vpack.c.bf16 %v424, %v420
    %v648 = vpack.c.bf16 %v588, %v585
    %v649 = vpack.c.bf16 %v432, %v428
    %v650 = vpack.c.bf16 %v434, %v430
    %v651 = vpack.c.bf16 %v596, %v593
    %v652 = vpack.c.bf16 %v442, %v438
    %v653 = vpack.c.bf16 %v444, %v440
    %v654 = vpack.c.bf16 %v604, %v601
    %655 = vst [vmem:[#allocation2] sm:$0xff] %v607
    %656 = vst [vmem:[#allocation2 + $0x8] sm:$0xff] %v608
    %657 = vst [vmem:[#allocation2 + $0x10] sm:$0xff] %v609
    %658 = vst [vmem:[#allocation2 + $0x18] sm:$0xff] %v610
    %659 = vst [vmem:[#allocation2 + $0x20] sm:$0xff] %v611
    %660 = vst [vmem:[#allocation2 + $0x28] sm:$0xff] %v612
    %661 = vst [vmem:[#allocation2 + $0x30] sm:$0xff] %v613
    %662 = vst [vmem:[#allocation2 + $0x38] sm:$0xff] %v614
    %663 = vst [vmem:[#allocation2 + $0x40] sm:$0xff] %v615
    %664 = vst [vmem:[#allocation2 + $0x48] sm:$0xff] %v616
    %665 = vst [vmem:[#allocation2 + $0x50] sm:$0xff] %v617
    %666 = vst [vmem:[#allocation2 + $0x58] sm:$0xff] %v618
    %667 = vst [vmem:[#allocation2 + $0x60] sm:$0xff] %v619
    %668 = vst [vmem:[#allocation2 + $0x68] sm:$0xff] %v620
    %669 = vst [vmem:[#allocation2 + $0x70] sm:$0xff] %v621
    %670 = vst [vmem:[#allocation2 + $0x78] sm:$0xff] %v622
    %671 = vst [vmem:[#allocation2 + $0x80] sm:$0xff] %v623
    %672 = vst [vmem:[#allocation2 + $0x88] sm:$0xff] %v624
    %673 = vst [vmem:[#allocation2 + $0x90] sm:$0xff] %v625
    %674 = vst [vmem:[#allocation2 + $0x98] sm:$0xff] %v626
    %675 = vst [vmem:[#allocation2 + $0xa0] sm:$0xff] %v627
    %676 = vst [vmem:[#allocation2 + $0xa8] sm:$0xff] %v628
    %677 = vst [vmem:[#allocation2 + $0xb0] sm:$0xff] %v629
    %678 = vst [vmem:[#allocation2 + $0xb8] sm:$0xff] %v630
    %679 = vst [vmem:[#allocation2 + $0xc0] sm:$0xff] %v631
    %680 = vst [vmem:[#allocation2 + $0xc8] sm:$0xff] %v632
    %681 = vst [vmem:[#allocation2 + $0xd0] sm:$0xff] %v633
    %682 = vst [vmem:[#allocation2 + $0xd8] sm:$0xff] %v634
    %683 = vst [vmem:[#allocation2 + $0xe0] sm:$0xff] %v635
    %684 = vst [vmem:[#allocation2 + $0xe8] sm:$0xff] %v636
    %685 = vst [vmem:[#allocation2 + $0xf0] sm:$0xff] %v637
    %686 = vst [vmem:[#allocation2 + $0xf8] sm:$0xff] %v638
    %687 = vst [vmem:[#allocation2 + $0x100] sm:$0xff] %v639
    %688 = vst [vmem:[#allocation2 + $0x108] sm:$0xff] %v640
    %689 = vst [vmem:[#allocation2 + $0x110] sm:$0xff] %v641
    %690 = vst [vmem:[#allocation2 + $0x118] sm:$0xff] %v642
    %691 = vst [vmem:[#allocation2 + $0x120] sm:$0xff] %v643
    %692 = vst [vmem:[#allocation2 + $0x128] sm:$0xff] %v644
    %693 = vst [vmem:[#allocation2 + $0x130] sm:$0xff] %v645
    %694 = vst [vmem:[#allocation2 + $0x138] sm:$0xff] %v646
    %695 = vst [vmem:[#allocation2 + $0x140] sm:$0xff] %v647
    %696 = vst [vmem:[#allocation2 + $0x148] sm:$0xff] %v648
    %697 = vst [vmem:[#allocation2 + $0x150] sm:$0xff] %v649
    %698 = vst [vmem:[#allocation2 + $0x158] sm:$0xff] %v650
    %699 = vst [vmem:[#allocation2 + $0x160] sm:$0xff] %v651
    %700 = vst [vmem:[#allocation2 + $0x168] sm:$0xff] %v652
    %701 = vst [vmem:[#allocation2 + $0x170] sm:$0xff] %v653
    %702 = vst [vmem:[#allocation2 + $0x178] sm:$0xff] %v654
    %v703 = vld [vmem:[#allocation2] sm:$0xff]
    %v704 = vld [vmem:[#allocation2 + $0x18] sm:$0xff]
    %v705 = vld [vmem:[#allocation2 + $0x30] sm:$0xff]
    %v706 = vld [vmem:[#allocation2 + $0x48] sm:$0xff]
    %v707 = vld [vmem:[#allocation2 + $0x60] sm:$0xff]
    %v708 = vld [vmem:[#allocation2 + $0x78] sm:$0xff]
    %v709 = vld [vmem:[#allocation2 + $0x90] sm:$0xff]
    %v710 = vld [vmem:[#allocation2 + $0xa8] sm:$0xff]
    %v711 = vld [vmem:[#allocation2 + $0x8] sm:$0xff]
    %v712 = vld [vmem:[#allocation2 + $0x20] sm:$0xff]
    %v713 = vld [vmem:[#allocation2 + $0x38] sm:$0xff]
    %v714 = vld [vmem:[#allocation2 + $0x50] sm:$0xff]
    %v715 = vld [vmem:[#allocation2 + $0x68] sm:$0xff]
    %v716 = vld [vmem:[#allocation2 + $0x80] sm:$0xff]
    %v717 = vld [vmem:[#allocation2 + $0x98] sm:$0xff]
    %v718 = vld [vmem:[#allocation2 + $0xb0] sm:$0xff]
    %v719 = vld [vmem:[#allocation2 + $0x10] sm:$0xff]
    %v720 = vld [vmem:[#allocation2 + $0x28] sm:$0xff]
    %v721 = vld [vmem:[#allocation2 + $0x40] sm:$0xff]
    %v722 = vld [vmem:[#allocation2 + $0x58] sm:$0xff]
    %v723 = vld [vmem:[#allocation2 + $0x70] sm:$0xff]
    %v724 = vld [vmem:[#allocation2 + $0x88] sm:$0xff]
    %v725 = vld [vmem:[#allocation2 + $0xa0] sm:$0xff]
    %v726 = vld [vmem:[#allocation2 + $0xb8] sm:$0xff]
    %vm727 = vcmask 261120
    %v729 = vsel %vm727, %v703, 0
    %v732 = vsel %vm727, %v704, 0
    %v735 = vsel %vm727, %v705, 0
    %v738 = vsel %vm727, %v706, 0
    %v741 = vsel %vm727, %v707, 0
    %v744 = vsel %vm727, %v708, 0
    %v747 = vsel %vm727, %v709, 0
    %v750 = vsel %vm727, %v710, 0
    %v753 = vsel %vm727, %v711, 0
    %v756 = vsel %vm727, %v712, 0
    %v759 = vsel %vm727, %v713, 0
    %v762 = vsel %vm727, %v714, 0
    %v765 = vsel %vm727, %v715, 0
    %v768 = vsel %vm727, %v716, 0
    %v771 = vsel %vm727, %v717, 0
    %v774 = vsel %vm727, %v718, 0
    %776 = vmatprep.subr.bf16.mxu0 0
    %777 = vmatpush1.bf16.xpose.msra.mxu0 %v753
    %778 = vmatprep.subr.bf16.mxu0 0
    %779 = vmatpush1.bf16.xpose.msra.mxu0 %v756
    %780 = vmatprep.subr.bf16.mxu0 0
    %781 = vmatpush1.bf16.xpose.msra.mxu0 %v759
    %782 = vmatprep.subr.bf16.mxu0 0
    %783 = vmatpush1.bf16.xpose.msra.mxu0 %v762
    %784 = vmatprep.subr.bf16.mxu0 0
    %785 = vmatpush1.bf16.xpose.msra.mxu0 %v765
    %786 = vmatprep.subr.bf16.mxu0 0
    %787 = vmatpush1.bf16.xpose.msra.mxu0 %v768
    %788 = vmatprep.subr.bf16.mxu0 0
    %789 = vmatpush1.bf16.xpose.msra.mxu0 %v771
    %790 = vmatprep.subr.bf16.mxu0 0
    %791 = vmatpush1.bf16.xpose.msra.mxu0 %v774
    %792 = vmatprep.subr.bf16.mxu0 0
    %793 = vmatpush1.bf16.xpose.msra.mxu0 0
    %794 = vmatprep.subr.bf16.mxu0 0
    %795 = vmatpush1.bf16.xpose.msra.mxu0 0
    %796 = vmatprep.subr.bf16.mxu0 0
    %797 = vmatpush1.bf16.xpose.msra.mxu0 0
    %798 = vmatprep.subr.bf16.mxu0 0
    %799 = vmatpush1.bf16.xpose.msra.mxu0 0
    %800 = vmatprep.subr.bf16.mxu0 0
    %801 = vmatpush1.bf16.xpose.msra.mxu0 0
    %802 = vmatprep.subr.bf16.mxu0 0
    %803 = vmatpush1.bf16.xpose.msra.mxu0 0
    %804 = vmatprep.subr.bf16.mxu0 0
    %805 = vmatpush1.bf16.xpose.msra.mxu0 0
    %806 = vmatprep.subr.bf16.mxu0 0
    %807 = vmatpush1.bf16.xpose.msra.mxu0 0
    %808 = vmatprep.mubr.bf16.mxu0 0
    %809 = vmatmul.mubr.bf16.gmra.mrb[0].mxu0 %v729
    %v810 = vpop.f32.mrb[0].mxu0
    %v811 = vadd.f32 0.0, %v810
    %v812 = vpop.f32.mrb[0].mxu0
    %v813 = vpop.f32.mrb[0].mxu0
    %v814 = vadd.f32 0.0, %v813
    %v815 = vpop.f32.mrb[0].mxu0
    %816 = vmatprep.mubr.bf16.mxu0 0
    %817 = vmatmul.mubr.bf16.gmra.mrb[0].mxu0 %v732
    %v818 = vpop.f32.mrb[0].mxu0
    %v819 = vadd.f32 0.0, %v818
    %v820 = vpop.f32.mrb[0].mxu0
    %v821 = vpop.f32.mrb[0].mxu0
    %v822 = vadd.f32 0.0, %v821
    %v823 = vpop.f32.mrb[0].mxu0
    %824 = vmatprep.mubr.bf16.mxu0 0
    %825 = vmatmul.mubr.bf16.gmra.mrb[0].mxu0 %v735
    %v826 = vpop.f32.mrb[0].mxu0
    %v827 = vadd.f32 0.0, %v826
    %v828 = vpop.f32.mrb[0].mxu0
    %v829 = vpop.f32.mrb[0].mxu0
    %v830 = vadd.f32 0.0, %v829
    %v831 = vpop.f32.mrb[0].mxu0
    %832 = vmatprep.mubr.bf16.mxu0 0
    %833 = vmatmul.mubr.bf16.gmra.mrb[0].mxu0 %v738
    %v834 = vpop.f32.mrb[0].mxu0
    %v835 = vadd.f32 0.0, %v834
    %v836 = vpop.f32.mrb[0].mxu0
    %v837 = vpop.f32.mrb[0].mxu0
    %v838 = vadd.f32 0.0, %v837
    %v839 = vpop.f32.mrb[0].mxu0
    %840 = vmatprep.mubr.bf16.mxu0 0
    %841 = vmatmul.mubr.bf16.gmra.mrb[0].mxu0 %v741
    %v842 = vpop.f32.mrb[0].mxu0
    %v843 = vadd.f32 0.0, %v842
    %v844 = vpop.f32.mrb[0].mxu0
    %v845 = vpop.f32.mrb[0].mxu0
    %v846 = vadd.f32 0.0, %v845
    %v847 = vpop.f32.mrb[0].mxu0
    %848 = vmatprep.mubr.bf16.mxu0 0
    %849 = vmatmul.mubr.bf16.gmra.mrb[0].mxu0 %v744
    %v850 = vpop.f32.mrb[0].mxu0
    %v851 = vadd.f32 0.0, %v850
    %v852 = vpop.f32.mrb[0].mxu0
    %v853 = vpop.f32.mrb[0].mxu0
    %v854 = vadd.f32 0.0, %v853
    %v855 = vpop.f32.mrb[0].mxu0
    %856 = vmatprep.mubr.bf16.mxu0 0
    %857 = vmatmul.mubr.bf16.gmra.mrb[0].mxu0 %v747
    %v858 = vpop.f32.mrb[0].mxu0
    %v859 = vadd.f32 0.0, %v858
    %v860 = vpop.f32.mrb[0].mxu0
    %v861 = vpop.f32.mrb[0].mxu0
    %v862 = vadd.f32 0.0, %v861
    %v863 = vpop.f32.mrb[0].mxu0
    %864 = vmatprep.mubr.bf16.mxu0 0
    %865 = vmatmul.mubr.bf16.gmra.mrb[0].mxu0 %v750
    %v866 = vpop.f32.mrb[0].mxu0
    %v867 = vadd.f32 0.0, %v866
    %v868 = vpop.f32.mrb[0].mxu0
    %v869 = vpop.f32.mrb[0].mxu0
    %v870 = vadd.f32 0.0, %v869
    %v871 = vpop.f32.mrb[0].mxu0
    %872 = vdwg.mxu0
    %873 = vmax.xlane.f32.xlu0 %v811
    %v874 = vpop.xlane.xlu0 %873
    %875 = vmax.xlane.f32.xlu0 %v814
    %v876 = vpop.xlane.xlu0 %875
    %877 = vmax.xlane.f32.xlu0 %v819
    %v878 = vpop.xlane.xlu0 %877
    %879 = vmax.xlane.f32.xlu0 %v822
    %v880 = vpop.xlane.xlu0 %879
    %881 = vmax.xlane.f32.xlu0 %v827
    %v882 = vpop.xlane.xlu0 %881
    %883 = vmax.xlane.f32.xlu0 %v830
    %v884 = vpop.xlane.xlu0 %883
    %885 = vmax.xlane.f32.xlu0 %v835
    %v886 = vpop.xlane.xlu0 %885
    %887 = vmax.xlane.f32.xlu0 %v838
    %v888 = vpop.xlane.xlu0 %887
    %889 = vmax.xlane.f32.xlu0 %v843
    %v890 = vpop.xlane.xlu0 %889
    %891 = vmax.xlane.f32.xlu0 %v846
    %v892 = vpop.xlane.xlu0 %891
    %893 = vmax.xlane.f32.xlu0 %v851
    %v894 = vpop.xlane.xlu0 %893
    %895 = vmax.xlane.f32.xlu0 %v854
    %v896 = vpop.xlane.xlu0 %895
    %897 = vmax.xlane.f32.xlu0 %v859
    %v898 = vpop.xlane.xlu0 %897
    %899 = vmax.xlane.f32.xlu0 %v862
    %v900 = vpop.xlane.xlu0 %899
    %901 = vmax.xlane.f32.xlu0 %v867
    %v902 = vpop.xlane.xlu0 %901
    %903 = vmax.xlane.f32.xlu0 %v870
    %v904 = vpop.xlane.xlu0 %903
    %v905 = vsub.f32 %v811, %v874
    %v906 = vsub.f32 %v814, %v876
    %v907 = vsub.f32 %v819, %v878
    %v908 = vsub.f32 %v822, %v880
    %v909 = vsub.f32 %v827, %v882
    %v910 = vsub.f32 %v830, %v884
    %v911 = vsub.f32 %v835, %v886
    %v912 = vsub.f32 %v838, %v888
    %v913 = vsub.f32 %v843, %v890
    %v914 = vsub.f32 %v846, %v892
    %v915 = vsub.f32 %v851, %v894
    %v916 = vsub.f32 %v854, %v896
    %v917 = vsub.f32 %v859, %v898
    %v918 = vsub.f32 %v862, %v900
    %v919 = vsub.f32 %v867, %v902
    %v920 = vsub.f32 %v870, %v904
    %v921 = vmul.f32 %v905, 1.442695
    %v922 = vpow.pop %v921
    %v923 = vmul.f32 %v906, 1.442695
    %v924 = vpow.pop %v923
    %v925 = vmul.f32 %v907, 1.442695
    %v926 = vpow.pop %v925
    %v927 = vmul.f32 %v908, 1.442695
    %v928 = vpow.pop %v927
    %v929 = vmul.f32 %v909, 1.442695
    %v930 = vpow.pop %v929
    %v931 = vmul.f32 %v910, 1.442695
    %v932 = vpow.pop %v931
    %v933 = vmul.f32 %v911, 1.442695
    %v934 = vpow.pop %v933
    %v935 = vmul.f32 %v912, 1.442695
    %v936 = vpow.pop %v935
    %v937 = vmul.f32 %v913, 1.442695
    %v938 = vpow.pop %v937
    %v939 = vmul.f32 %v914, 1.442695
    %v940 = vpow.pop %v939
    %v941 = vmul.f32 %v915, 1.442695
    %v942 = vpow.pop %v941
    %v943 = vmul.f32 %v916, 1.442695
    %v944 = vpow.pop %v943
    %v945 = vmul.f32 %v917, 1.442695
    %v946 = vpow.pop %v945
    %v947 = vmul.f32 %v918, 1.442695
    %v948 = vpow.pop %v947
    %v949 = vmul.f32 %v919, 1.442695
    %v950 = vpow.pop %v949
    %v951 = vmul.f32 %v920, 1.442695
    %v952 = vpow.pop %v951
    %953 = vadd.xlane.f32.xlu0 %v922
    %v954 = vpop.xlane.xlu0 %953
    %955 = vadd.xlane.f32.xlu0 %v924
    %v956 = vpop.xlane.xlu0 %955
    %957 = vadd.xlane.f32.xlu0 %v926
    %v958 = vpop.xlane.xlu0 %957
    %959 = vadd.xlane.f32.xlu0 %v928
    %v960 = vpop.xlane.xlu0 %959
    %961 = vadd.xlane.f32.xlu0 %v930
    %v962 = vpop.xlane.xlu0 %961
    %963 = vadd.xlane.f32.xlu0 %v932
    %v964 = vpop.xlane.xlu0 %963
    %965 = vadd.xlane.f32.xlu0 %v934
    %v966 = vpop.xlane.xlu0 %965
    %967 = vadd.xlane.f32.xlu0 %v936
    %v968 = vpop.xlane.xlu0 %967
    %969 = vadd.xlane.f32.xlu0 %v938
    %v970 = vpop.xlane.xlu0 %969
    %971 = vadd.xlane.f32.xlu0 %v940
    %v972 = vpop.xlane.xlu0 %971
    %973 = vadd.xlane.f32.xlu0 %v942
    %v974 = vpop.xlane.xlu0 %973
    %975 = vadd.xlane.f32.xlu0 %v944
    %v976 = vpop.xlane.xlu0 %975
    %977 = vadd.xlane.f32.xlu0 %v946
    %v978 = vpop.xlane.xlu0 %977
    %979 = vadd.xlane.f32.xlu0 %v948
    %v980 = vpop.xlane.xlu0 %979
    %981 = vadd.xlane.f32.xlu0 %v950
    %v982 = vpop.xlane.xlu0 %981
    %983 = vadd.xlane.f32.xlu0 %v952
    %v984 = vpop.xlane.xlu0 %983
    %v985 = vrcp.pop %v954
    %v986 = vrcp.pop %v956
    %v987 = vrcp.pop %v958
    %v988 = vrcp.pop %v960
    %v989 = vrcp.pop %v962
    %v990 = vrcp.pop %v964
    %v991 = vrcp.pop %v966
    %v992 = vrcp.pop %v968
    %v993 = vrcp.pop %v970
    %v994 = vrcp.pop %v972
    %v995 = vrcp.pop %v974
    %v996 = vrcp.pop %v976
    %v997 = vrcp.pop %v978
    %v998 = vrcp.pop %v980
    %v999 = vrcp.pop %v982
    %v1000 = vrcp.pop %v984
    %v1001 = vmul.f32 %v922, %v985
    %v1002 = vmul.f32 %v924, %v986
    %v1003 = vmul.f32 %v926, %v987
    %v1004 = vmul.f32 %v928, %v988
    %v1005 = vmul.f32 %v930, %v989
    %v1006 = vmul.f32 %v932, %v990
    %v1007 = vmul.f32 %v934, %v991
    %v1008 = vmul.f32 %v936, %v992
    %v1009 = vmul.f32 %v938, %v993
    %v1010 = vmul.f32 %v940, %v994
    %v1011 = vmul.f32 %v942, %v995
    %v1012 = vmul.f32 %v944, %v996
    %v1013 = vmul.f32 %v946, %v997
    %v1014 = vmul.f32 %v948, %v998
    %v1015 = vmul.f32 %v950, %v999
    %v1016 = vmul.f32 %v952, %v1000
    %v1017 = vpack.c.bf16 %v1002, %v1001
    %v1018 = vpack.c.bf16 %v1004, %v1003
    %v1019 = vpack.c.bf16 %v1006, %v1005
    %v1020 = vpack.c.bf16 %v1008, %v1007
    %v1021 = vpack.c.bf16 %v1010, %v1009
    %v1022 = vpack.c.bf16 %v1012, %v1011
    %v1023 = vpack.c.bf16 %v1014, %v1013
    %v1024 = vpack.c.bf16 %v1016, %v1015
    %1025 = vmatprep.subr.bf16.mxu0 0
    %1026 = vmatpush1.bf16.msra.mxu0 %v719
    %1027 = vmatprep.subr.bf16.mxu0 0
    %1028 = vmatpush1.bf16.msra.mxu0 %v720
    %1029 = vmatprep.subr.bf16.mxu0 0
    %1030 = vmatpush1.bf16.msra.mxu0 %v721
    %1031 = vmatprep.subr.bf16.mxu0 0
    %1032 = vmatpush1.bf16.msra.mxu0 %v722
    %1033 = vmatprep.subr.bf16.mxu0 0
    %1034 = vmatpush1.bf16.msra.mxu0 %v723
    %1035 = vmatprep.subr.bf16.mxu0 0
    %1036 = vmatpush1.bf16.msra.mxu0 %v724
    %1037 = vmatprep.subr.bf16.mxu0 0
    %1038 = vmatpush1.bf16.msra.mxu0 %v725
    %1039 = vmatprep.subr.bf16.mxu0 0
    %1040 = vmatpush1.bf16.msra.mxu0 %v726
    %1041 = vmatprep.subr.bf16.mxu0 0
    %1042 = vmatpush1.bf16.msra.mxu0 0
    %1043 = vmatprep.subr.bf16.mxu0 0
    %1044 = vmatpush1.bf16.msra.mxu0 0
    %1045 = vmatprep.subr.bf16.mxu0 0
    %1046 = vmatpush1.bf16.msra.mxu0 0
    %1047 = vmatprep.subr.bf16.mxu0 0
    %1048 = vmatpush1.bf16.msra.mxu0 0
    %1049 = vmatprep.subr.bf16.mxu0 0
    %1050 = vmatpush1.bf16.msra.mxu0 0
    %1051 = vmatprep.subr.bf16.mxu0 0
    %1052 = vmatpush1.bf16.msra.mxu0 0
    %1053 = vmatprep.subr.bf16.mxu0 0
    %1054 = vmatpush1.bf16.msra.mxu0 0
    %1055 = vmatprep.subr.bf16.mxu0 0
    %1056 = vmatpush1.bf16.msra.mxu0 0
    %1057 = vmatprep.mubr.bf16.mxu0 0
    %1058 = vmatmul.mubr.bf16.gmra.mrb[0].mxu0 %v1017
    %v1059 = vpop.f32.mrb[0].mxu0
    %v1060 = vadd.f32 0.0, %v1059
    %v1061 = vpop.f32.mrb[0].mxu0
    %v1062 = vpop.f32.mrb[0].mxu0
    %v1063 = vadd.f32 0.0, %v1062
    %v1064 = vpop.f32.mrb[0].mxu0
    %1065 = vmatprep.mubr.bf16.mxu0 0
    %1066 = vmatmul.mubr.bf16.gmra.mrb[0].mxu0 %v1018
    %v1067 = vpop.f32.mrb[0].mxu0
    %v1068 = vadd.f32 0.0, %v1067
    %v1069 = vpop.f32.mrb[0].mxu0
    %v1070 = vpop.f32.mrb[0].mxu0
    %v1071 = vadd.f32 0.0, %v1070
    %v1072 = vpop.f32.mrb[0].mxu0
    %1073 = vmatprep.mubr.bf16.mxu0 0
    %1074 = vmatmul.mubr.bf16.gmra.mrb[0].mxu0 %v1019
    %v1075 = vpop.f32.mrb[0].mxu0
    %v1076 = vadd.f32 0.0, %v1075
    %v1077 = vpop.f32.mrb[0].mxu0
    %v1078 = vpop.f32.mrb[0].mxu0
    %v1079 = vadd.f32 0.0, %v1078
    %v1080 = vpop.f32.mrb[0].mxu0
    %1081 = vmatprep.mubr.bf16.mxu0 0
    %1082 = vmatmul.mubr.bf16.gmra.mrb[0].mxu0 %v1020
    %v1083 = vpop.f32.mrb[0].mxu0
    %v1084 = vadd.f32 0.0, %v1083
    %v1085 = vpop.f32.mrb[0].mxu0
    %v1086 = vpop.f32.mrb[0].mxu0
    %v1087 = vadd.f32 0.0, %v1086
    %v1088 = vpop.f32.mrb[0].mxu0
    %1089 = vmatprep.mubr.bf16.mxu0 0
    %1090 = vmatmul.mubr.bf16.gmra.mrb[0].mxu0 %v1021
    %v1091 = vpop.f32.mrb[0].mxu0
    %v1092 = vadd.f32 0.0, %v1091
    %v1093 = vpop.f32.mrb[0].mxu0
    %v1094 = vpop.f32.mrb[0].mxu0
    %v1095 = vadd.f32 0.0, %v1094
    %v1096 = vpop.f32.mrb[0].mxu0
    %1097 = vmatprep.mubr.bf16.mxu0 0
    %1098 = vmatmul.mubr.bf16.gmra.mrb[0].mxu0 %v1022
    %v1099 = vpop.f32.mrb[0].mxu0
    %v1100 = vadd.f32 0.0, %v1099
    %v1101 = vpop.f32.mrb[0].mxu0
    %v1102 = vpop.f32.mrb[0].mxu0
    %v1103 = vadd.f32 0.0, %v1102
    %v1104 = vpop.f32.mrb[0].mxu0
    %1105 = vmatprep.mubr.bf16.mxu0 0
    %1106 = vmatmul.mubr.bf16.gmra.mrb[0].mxu0 %v1023
    %v1107 = vpop.f32.mrb[0].mxu0
    %v1108 = vadd.f32 0.0, %v1107
    %v1109 = vpop.f32.mrb[0].mxu0
    %v1110 = vpop.f32.mrb[0].mxu0
    %v1111 = vadd.f32 0.0, %v1110
    %v1112 = vpop.f32.mrb[0].mxu0
    %1113 = vmatprep.mubr.bf16.mxu0 0
    %1114 = vmatmul.mubr.bf16.gmra.mrb[0].mxu0 %v1024
    %v1115 = vpop.f32.mrb[0].mxu0
    %v1116 = vadd.f32 0.0, %v1115
    %v1117 = vpop.f32.mrb[0].mxu0
    %v1118 = vpop.f32.mrb[0].mxu0
    %v1119 = vadd.f32 0.0, %v1118
    %v1120 = vpop.f32.mrb[0].mxu0
    %1121 = vdwg.mxu0
    %1130 = vrot.lane.b32.xlu0 %v703, 96
    %v1131 = vpop.permute.xlu0 %1130
    %1132 = vrot.lane.b32.xlu0 %v704, 96
    %v1133 = vpop.permute.xlu0 %1132
    %1134 = vrot.lane.b32.xlu0 %v705, 96
    %v1135 = vpop.permute.xlu0 %1134
    %1136 = vrot.lane.b32.xlu0 %v706, 96
    %v1137 = vpop.permute.xlu0 %1136
    %1138 = vrot.lane.b32.xlu0 %v707, 96
    %v1139 = vpop.permute.xlu0 %1138
    %1140 = vrot.lane.b32.xlu0 %v708, 96
    %v1141 = vpop.permute.xlu0 %1140
    %1142 = vrot.lane.b32.xlu0 %v709, 96
    %v1143 = vpop.permute.xlu0 %1142
    %1144 = vrot.lane.b32.xlu0 %v710, 96
    %v1145 = vpop.permute.xlu0 %1144
    %1154 = vrot.lane.b32.xlu0 %v711, 96
    %v1155 = vpop.permute.xlu0 %1154
    %1156 = vrot.lane.b32.xlu0 %v712, 96
    %v1157 = vpop.permute.xlu0 %1156
    %1158 = vrot.lane.b32.xlu0 %v713, 96
    %v1159 = vpop.permute.xlu0 %1158
    %1160 = vrot.lane.b32.xlu0 %v714, 96
    %v1161 = vpop.permute.xlu0 %1160
    %1162 = vrot.lane.b32.xlu0 %v715, 96
    %v1163 = vpop.permute.xlu0 %1162
    %1164 = vrot.lane.b32.xlu0 %v716, 96
    %v1165 = vpop.permute.xlu0 %1164
    %1166 = vrot.lane.b32.xlu0 %v717, 96
    %v1167 = vpop.permute.xlu0 %1166
    %1168 = vrot.lane.b32.xlu0 %v718, 96
    %v1169 = vpop.permute.xlu0 %1168
    %v1171 = vsel %vm727, %v1131, 0
    %v1174 = vsel %vm727, %v1133, 0
    %v1177 = vsel %vm727, %v1135, 0
    %v1180 = vsel %vm727, %v1137, 0
    %v1183 = vsel %vm727, %v1139, 0
    %v1186 = vsel %vm727, %v1141, 0
    %v1189 = vsel %vm727, %v1143, 0
    %v1192 = vsel %vm727, %v1145, 0
    %v1195 = vsel %vm727, %v1155, 0
    %v1198 = vsel %vm727, %v1157, 0
    %v1201 = vsel %vm727, %v1159, 0
    %v1204 = vsel %vm727, %v1161, 0
    %v1207 = vsel %vm727, %v1163, 0
    %v1210 = vsel %vm727, %v1165, 0
    %v1213 = vsel %vm727, %v1167, 0
    %v1216 = vsel %vm727, %v1169, 0
    %1218 = vmatprep.subr.bf16.mxu0 0
    %1219 = vmatpush1.bf16.xpose.msra.mxu0 %v1195
    %1220 = vmatprep.subr.bf16.mxu0 0
    %1221 = vmatpush1.bf16.xpose.msra.mxu0 %v1198
    %1222 = vmatprep.subr.bf16.mxu0 0
    %1223 = vmatpush1.bf16.xpose.msra.mxu0 %v1201
    %1224 = vmatprep.subr.bf16.mxu0 0
    %1225 = vmatpush1.bf16.xpose.msra.mxu0 %v1204
    %1226 = vmatprep.subr.bf16.mxu0 0
    %1227 = vmatpush1.bf16.xpose.msra.mxu0 %v1207
    %1228 = vmatprep.subr.bf16.mxu0 0
    %1229 = vmatpush1.bf16.xpose.msra.mxu0 %v1210
    %1230 = vmatprep.subr.bf16.mxu0 0
    %1231 = vmatpush1.bf16.xpose.msra.mxu0 %v1213
    %1232 = vmatprep.subr.bf16.mxu0 0
    %1233 = vmatpush1.bf16.xpose.msra.mxu0 %v1216
    %1234 = vmatprep.subr.bf16.mxu0 0
    %1235 = vmatpush1.bf16.xpose.msra.mxu0 0
    %1236 = vmatprep.subr.bf16.mxu0 0
    %1237 = vmatpush1.bf16.xpose.msra.mxu0 0
    %1238 = vmatprep.subr.bf16.mxu0 0
    %1239 = vmatpush1.bf16.xpose.msra.mxu0 0
    %1240 = vmatprep.subr.bf16.mxu0 0
    %1241 = vmatpush1.bf16.xpose.msra.mxu0 0
    %1242 = vmatprep.subr.bf16.mxu0 0
    %1243 = vmatpush1.bf16.xpose.msra.mxu0 0
    %1244 = vmatprep.subr.bf16.mxu0 0
    %1245 = vmatpush1.bf16.xpose.msra.mxu0 0
    %1246 = vmatprep.subr.bf16.mxu0 0
    %1247 = vmatpush1.bf16.xpose.msra.mxu0 0
    %1248 = vmatprep.subr.bf16.mxu0 0
    %1249 = vmatpush1.bf16.xpose.msra.mxu0 0
    %1250 = vmatprep.mubr.bf16.mxu0 0
    %1251 = vmatmul.mubr.bf16.gmra.mrb[0].mxu0 %v1171
    %v1252 = vpop.f32.mrb[0].mxu0
    %v1253 = vadd.f32 0.0, %v1252
    %v1254 = vpop.f32.mrb[0].mxu0
    %v1255 = vpop.f32.mrb[0].mxu0
    %v1256 = vadd.f32 0.0, %v1255
    %v1257 = vpop.f32.mrb[0].mxu0
    %1258 = vmatprep.mubr.bf16.mxu0 0
    %1259 = vmatmul.mubr.bf16.gmra.mrb[0].mxu0 %v1174
    %v1260 = vpop.f32.mrb[0].mxu0
    %v1261 = vadd.f32 0.0, %v1260
    %v1262 = vpop.f32.mrb[0].mxu0
    %v1263 = vpop.f32.mrb[0].mxu0
    %v1264 = vadd.f32 0.0, %v1263
    %v1265 = vpop.f32.mrb[0].mxu0
    %1266 = vmatprep.mubr.bf16.mxu0 0
    %1267 = vmatmul.mubr.bf16.gmra.mrb[0].mxu0 %v1177
    %v1268 = vpop.f32.mrb[0].mxu0
    %v1269 = vadd.f32 0.0, %v1268
    %v1270 = vpop.f32.mrb[0].mxu0
    %v1271 = vpop.f32.mrb[0].mxu0
    %v1272 = vadd.f32 0.0, %v1271
    %v1273 = vpop.f32.mrb[0].mxu0
    %1274 = vmatprep.mubr.bf16.mxu0 0
    %1275 = vmatmul.mubr.bf16.gmra.mrb[0].mxu0 %v1180
    %v1276 = vpop.f32.mrb[0].mxu0
    %v1277 = vadd.f32 0.0, %v1276
    %v1278 = vpop.f32.mrb[0].mxu0
    %v1279 = vpop.f32.mrb[0].mxu0
    %v1280 = vadd.f32 0.0, %v1279
    %v1281 = vpop.f32.mrb[0].mxu0
    %1282 = vmatprep.mubr.bf16.mxu0 0
    %1283 = vmatmul.mubr.bf16.gmra.mrb[0].mxu0 %v1183
    %v1284 = vpop.f32.mrb[0].mxu0
    %v1285 = vadd.f32 0.0, %v1284
    %v1286 = vpop.f32.mrb[0].mxu0
    %v1287 = vpop.f32.mrb[0].mxu0
    %v1288 = vadd.f32 0.0, %v1287
    %v1289 = vpop.f32.mrb[0].mxu0
    %1290 = vmatprep.mubr.bf16.mxu0 0
    %1291 = vmatmul.mubr.bf16.gmra.mrb[0].mxu0 %v1186
    %v1292 = vpop.f32.mrb[0].mxu0
    %v1293 = vadd.f32 0.0, %v1292
    %v1294 = vpop.f32.mrb[0].mxu0
    %v1295 = vpop.f32.mrb[0].mxu0
    %v1296 = vadd.f32 0.0, %v1295
    %v1297 = vpop.f32.mrb[0].mxu0
    %1298 = vmatprep.mubr.bf16.mxu0 0
    %1299 = vmatmul.mubr.bf16.gmra.mrb[0].mxu0 %v1189
    %v1300 = vpop.f32.mrb[0].mxu0
    %v1301 = vadd.f32 0.0, %v1300
    %v1302 = vpop.f32.mrb[0].mxu0
    %v1303 = vpop.f32.mrb[0].mxu0
    %v1304 = vadd.f32 0.0, %v1303
    %v1305 = vpop.f32.mrb[0].mxu0
    %1306 = vmatprep.mubr.bf16.mxu0 0
    %1307 = vmatmul.mubr.bf16.gmra.mrb[0].mxu0 %v1192
    %v1308 = vpop.f32.mrb[0].mxu0
    %v1309 = vadd.f32 0.0, %v1308
    %v1310 = vpop.f32.mrb[0].mxu0
    %v1311 = vpop.f32.mrb[0].mxu0
    %v1312 = vadd.f32 0.0, %v1311
    %v1313 = vpop.f32.mrb[0].mxu0
    %1314 = vdwg.mxu0
    %1315 = vmax.xlane.f32.xlu0 %v1253
    %v1316 = vpop.xlane.xlu0 %1315
    %1317 = vmax.xlane.f32.xlu0 %v1256
    %v1318 = vpop.xlane.xlu0 %1317
    %1319 = vmax.xlane.f32.xlu0 %v1261
    %v1320 = vpop.xlane.xlu0 %1319
    %1321 = vmax.xlane.f32.xlu0 %v1264
    %v1322 = vpop.xlane.xlu0 %1321
    %1323 = vmax.xlane.f32.xlu0 %v1269
    %v1324 = vpop.xlane.xlu0 %1323
    %1325 = vmax.xlane.f32.xlu0 %v1272
    %v1326 = vpop.xlane.xlu0 %1325
    %1327 = vmax.xlane.f32.xlu0 %v1277
    %v1328 = vpop.xlane.xlu0 %1327
    %1329 = vmax.xlane.f32.xlu0 %v1280
    %v1330 = vpop.xlane.xlu0 %1329
    %1331 = vmax.xlane.f32.xlu0 %v1285
    %v1332 = vpop.xlane.xlu0 %1331
    %1333 = vmax.xlane.f32.xlu0 %v1288
    %v1334 = vpop.xlane.xlu0 %1333
    %1335 = vmax.xlane.f32.xlu0 %v1293
    %v1336 = vpop.xlane.xlu0 %1335
    %1337 = vmax.xlane.f32.xlu0 %v1296
    %v1338 = vpop.xlane.xlu0 %1337
    %1339 = vmax.xlane.f32.xlu0 %v1301
    %v1340 = vpop.xlane.xlu0 %1339
    %1341 = vmax.xlane.f32.xlu0 %v1304
    %v1342 = vpop.xlane.xlu0 %1341
    %1343 = vmax.xlane.f32.xlu0 %v1309
    %v1344 = vpop.xlane.xlu0 %1343
    %1345 = vmax.xlane.f32.xlu0 %v1312
    %v1346 = vpop.xlane.xlu0 %1345
    %v1347 = vsub.f32 %v1253, %v1316
    %v1348 = vsub.f32 %v1256, %v1318
    %v1349 = vsub.f32 %v1261, %v1320
    %v1350 = vsub.f32 %v1264, %v1322
    %v1351 = vsub.f32 %v1269, %v1324
    %v1352 = vsub.f32 %v1272, %v1326
    %v1353 = vsub.f32 %v1277, %v1328
    %v1354 = vsub.f32 %v1280, %v1330
    %v1355 = vsub.f32 %v1285, %v1332
    %v1356 = vsub.f32 %v1288, %v1334
    %v1357 = vsub.f32 %v1293, %v1336
    %v1358 = vsub.f32 %v1296, %v1338
    %v1359 = vsub.f32 %v1301, %v1340
    %v1360 = vsub.f32 %v1304, %v1342
    %v1361 = vsub.f32 %v1309, %v1344
    %v1362 = vsub.f32 %v1312, %v1346
    %v1363 = vmul.f32 %v1347, 1.442695
    %v1364 = vpow.pop %v1363
    %v1365 = vmul.f32 %v1348, 1.442695
    %v1366 = vpow.pop %v1365
    %v1367 = vmul.f32 %v1349, 1.442695
    %v1368 = vpow.pop %v1367
    %v1369 = vmul.f32 %v1350, 1.442695
    %v1370 = vpow.pop %v1369
    %v1371 = vmul.f32 %v1351, 1.442695
    %v1372 = vpow.pop %v1371
    %v1373 = vmul.f32 %v1352, 1.442695
    %v1374 = vpow.pop %v1373
    %v1375 = vmul.f32 %v1353, 1.442695
    %v1376 = vpow.pop %v1375
    %v1377 = vmul.f32 %v1354, 1.442695
    %v1378 = vpow.pop %v1377
    %v1379 = vmul.f32 %v1355, 1.442695
    %v1380 = vpow.pop %v1379
    %v1381 = vmul.f32 %v1356, 1.442695
    %v1382 = vpow.pop %v1381
    %v1383 = vmul.f32 %v1357, 1.442695
    %v1384 = vpow.pop %v1383
    %v1385 = vmul.f32 %v1358, 1.442695
    %v1386 = vpow.pop %v1385
    %v1387 = vmul.f32 %v1359, 1.442695
    %v1388 = vpow.pop %v1387
    %v1389 = vmul.f32 %v1360, 1.442695
    %v1390 = vpow.pop %v1389
    %v1391 = vmul.f32 %v1361, 1.442695
    %v1392 = vpow.pop %v1391
    %v1393 = vmul.f32 %v1362, 1.442695
    %v1394 = vpow.pop %v1393
    %1395 = vadd.xlane.f32.xlu0 %v1364
    %v1396 = vpop.xlane.xlu0 %1395
    %1397 = vadd.xlane.f32.xlu0 %v1366
    %v1398 = vpop.xlane.xlu0 %1397
    %1399 = vadd.xlane.f32.xlu0 %v1368
    %v1400 = vpop.xlane.xlu0 %1399
    %1401 = vadd.xlane.f32.xlu0 %v1370
    %v1402 = vpop.xlane.xlu0 %1401
    %1403 = vadd.xlane.f32.xlu0 %v1372
    %v1404 = vpop.xlane.xlu0 %1403
    %1405 = vadd.xlane.f32.xlu0 %v1374
    %v1406 = vpop.xlane.xlu0 %1405
    %1407 = vadd.xlane.f32.xlu0 %v1376
    %v1408 = vpop.xlane.xlu0 %1407
    %1409 = vadd.xlane.f32.xlu0 %v1378
    %v1410 = vpop.xlane.xlu0 %1409
    %1411 = vadd.xlane.f32.xlu0 %v1380
    %v1412 = vpop.xlane.xlu0 %1411
    %1413 = vadd.xlane.f32.xlu0 %v1382
    %v1414 = vpop.xlane.xlu0 %1413
    %1415 = vadd.xlane.f32.xlu0 %v1384
    %v1416 = vpop.xlane.xlu0 %1415
    %1417 = vadd.xlane.f32.xlu0 %v1386
    %v1418 = vpop.xlane.xlu0 %1417
    %1419 = vadd.xlane.f32.xlu0 %v1388
    %v1420 = vpop.xlane.xlu0 %1419
    %1421 = vadd.xlane.f32.xlu0 %v1390
    %v1422 = vpop.xlane.xlu0 %1421
    %1423 = vadd.xlane.f32.xlu0 %v1392
    %v1424 = vpop.xlane.xlu0 %1423
    %1425 = vadd.xlane.f32.xlu0 %v1394
    %v1426 = vpop.xlane.xlu0 %1425
    %v1427 = vrcp.pop %v1396
    %v1428 = vrcp.pop %v1398
    %v1429 = vrcp.pop %v1400
    %v1430 = vrcp.pop %v1402
    %v1431 = vrcp.pop %v1404
    %v1432 = vrcp.pop %v1406
    %v1433 = vrcp.pop %v1408
    %v1434 = vrcp.pop %v1410
    %v1435 = vrcp.pop %v1412
    %v1436 = vrcp.pop %v1414
    %v1437 = vrcp.pop %v1416
    %v1438 = vrcp.pop %v1418
    %v1439 = vrcp.pop %v1420
    %v1440 = vrcp.pop %v1422
    %v1441 = vrcp.pop %v1424
    %v1442 = vrcp.pop %v1426
    %v1443 = vmul.f32 %v1364, %v1427
    %v1444 = vmul.f32 %v1366, %v1428
    %v1445 = vmul.f32 %v1368, %v1429
    %v1446 = vmul.f32 %v1370, %v1430
    %v1447 = vmul.f32 %v1372, %v1431
    %v1448 = vmul.f32 %v1374, %v1432
    %v1449 = vmul.f32 %v1376, %v1433
    %v1450 = vmul.f32 %v1378, %v1434
    %v1451 = vmul.f32 %v1380, %v1435
    %v1452 = vmul.f32 %v1382, %v1436
    %v1453 = vmul.f32 %v1384, %v1437
    %v1454 = vmul.f32 %v1386, %v1438
    %v1455 = vmul.f32 %v1388, %v1439
    %v1456 = vmul.f32 %v1390, %v1440
    %v1457 = vmul.f32 %v1392, %v1441
    %v1458 = vmul.f32 %v1394, %v1442
    %v1459 = vpack.c.bf16 %v1444, %v1443
    %v1460 = vpack.c.bf16 %v1446, %v1445
    %v1461 = vpack.c.bf16 %v1448, %v1447
    %v1462 = vpack.c.bf16 %v1450, %v1449
    %v1463 = vpack.c.bf16 %v1452, %v1451
    %v1464 = vpack.c.bf16 %v1454, %v1453
    %v1465 = vpack.c.bf16 %v1456, %v1455
    %v1466 = vpack.c.bf16 %v1458, %v1457
    %1475 = vrot.lane.b32.xlu0 %v719, 96
    %v1476 = vpop.permute.xlu0 %1475
    %1477 = vrot.lane.b32.xlu0 %v720, 96
    %v1478 = vpop.permute.xlu0 %1477
    %1479 = vrot.lane.b32.xlu0 %v721, 96
    %v1480 = vpop.permute.xlu0 %1479
    %1481 = vrot.lane.b32.xlu0 %v722, 96
    %v1482 = vpop.permute.xlu0 %1481
    %1483 = vrot.lane.b32.xlu0 %v723, 96
    %v1484 = vpop.permute.xlu0 %1483
    %1485 = vrot.lane.b32.xlu0 %v724, 96
    %v1486 = vpop.permute.xlu0 %1485
    %1487 = vrot.lane.b32.xlu0 %v725, 96
    %v1488 = vpop.permute.xlu0 %1487
    %1489 = vrot.lane.b32.xlu0 %v726, 96
    %v1490 = vpop.permute.xlu0 %1489
    %1499 = vmatprep.subr.bf16.mxu0 0
    %1500 = vmatpush1.bf16.msra.mxu0 %v1476
    %1501 = vmatprep.subr.bf16.mxu0 0
    %1502 = vmatpush1.bf16.msra.mxu0 %v1478
    %1503 = vmatprep.subr.bf16.mxu0 0
    %1504 = vmatpush1.bf16.msra.mxu0 %v1480
    %1505 = vmatprep.subr.bf16.mxu0 0
    %1506 = vmatpush1.bf16.msra.mxu0 %v1482
    %1507 = vmatprep.subr.bf16.mxu0 0
    %1508 = vmatpush1.bf16.msra.mxu0 %v1484
    %1509 = vmatprep.subr.bf16.mxu0 0
    %1510 = vmatpush1.bf16.msra.mxu0 %v1486
    %1511 = vmatprep.subr.bf16.mxu0 0
    %1512 = vmatpush1.bf16.msra.mxu0 %v1488
    %1513 = vmatprep.subr.bf16.mxu0 0
    %1514 = vmatpush1.bf16.msra.mxu0 %v1490
    %1515 = vmatprep.subr.bf16.mxu0 0
    %1516 = vmatpush1.bf16.msra.mxu0 0
    %1517 = vmatprep.subr.bf16.mxu0 0
    %1518 = vmatpush1.bf16.msra.mxu0 0
    %1519 = vmatprep.subr.bf16.mxu0 0
    %1520 = vmatpush1.bf16.msra.mxu0 0
    %1521 = vmatprep.subr.bf16.mxu0 0
    %1522 = vmatpush1.bf16.msra.mxu0 0
    %1523 = vmatprep.subr.bf16.mxu0 0
    %1524 = vmatpush1.bf16.msra.mxu0 0
    %1525 = vmatprep.subr.bf16.mxu0 0
    %1526 = vmatpush1.bf16.msra.mxu0 0
    %1527 = vmatprep.subr.bf16.mxu0 0
    %1528 = vmatpush1.bf16.msra.mxu0 0
    %1529 = vmatprep.subr.bf16.mxu0 0
    %1530 = vmatpush1.bf16.msra.mxu0 0
    %1531 = vmatprep.mubr.bf16.mxu0 0
    %1532 = vmatmul.mubr.bf16.gmra.mrb[0].mxu0 %v1459
    %v1533 = vpop.f32.mrb[0].mxu0
    %v1534 = vadd.f32 0.0, %v1533
    %v1535 = vpop.f32.mrb[0].mxu0
    %v1536 = vpop.f32.mrb[0].mxu0
    %v1537 = vadd.f32 0.0, %v1536
    %v1538 = vpop.f32.mrb[0].mxu0
    %1539 = vmatprep.mubr.bf16.mxu0 0
    %1540 = vmatmul.mubr.bf16.gmra.mrb[0].mxu0 %v1460
    %v1541 = vpop.f32.mrb[0].mxu0
    %v1542 = vadd.f32 0.0, %v1541
    %v1543 = vpop.f32.mrb[0].mxu0
    %v1544 = vpop.f32.mrb[0].mxu0
    %v1545 = vadd.f32 0.0, %v1544
    %v1546 = vpop.f32.mrb[0].mxu0
    %1547 = vmatprep.mubr.bf16.mxu0 0
    %1548 = vmatmul.mubr.bf16.gmra.mrb[0].mxu0 %v1461
    %v1549 = vpop.f32.mrb[0].mxu0
    %v1550 = vadd.f32 0.0, %v1549
    %v1551 = vpop.f32.mrb[0].mxu0
    %v1552 = vpop.f32.mrb[0].mxu0
    %v1553 = vadd.f32 0.0, %v1552
    %v1554 = vpop.f32.mrb[0].mxu0
    %1555 = vmatprep.mubr.bf16.mxu0 0
    %1556 = vmatmul.mubr.bf16.gmra.mrb[0].mxu0 %v1462
    %v1557 = vpop.f32.mrb[0].mxu0
    %v1558 = vadd.f32 0.0, %v1557
    %v1559 = vpop.f32.mrb[0].mxu0
    %v1560 = vpop.f32.mrb[0].mxu0
    %v1561 = vadd.f32 0.0, %v1560
    %v1562 = vpop.f32.mrb[0].mxu0
    %1563 = vmatprep.mubr.bf16.mxu0 0
    %1564 = vmatmul.mubr.bf16.gmra.mrb[0].mxu0 %v1463
    %v1565 = vpop.f32.mrb[0].mxu0
    %v1566 = vadd.f32 0.0, %v1565
    %v1567 = vpop.f32.mrb[0].mxu0
    %v1568 = vpop.f32.mrb[0].mxu0
    %v1569 = vadd.f32 0.0, %v1568
    %v1570 = vpop.f32.mrb[0].mxu0
    %1571 = vmatprep.mubr.bf16.mxu0 0
    %1572 = vmatmul.mubr.bf16.gmra.mrb[0].mxu0 %v1464
    %v1573 = vpop.f32.mrb[0].mxu0
    %v1574 = vadd.f32 0.0, %v1573
    %v1575 = vpop.f32.mrb[0].mxu0
    %v1576 = vpop.f32.mrb[0].mxu0
    %v1577 = vadd.f32 0.0, %v1576
    %v1578 = vpop.f32.mrb[0].mxu0
    %1579 = vmatprep.mubr.bf16.mxu0 0
    %1580 = vmatmul.mubr.bf16.gmra.mrb[0].mxu0 %v1465
    %v1581 = vpop.f32.mrb[0].mxu0
    %v1582 = vadd.f32 0.0, %v1581
    %v1583 = vpop.f32.mrb[0].mxu0
    %v1584 = vpop.f32.mrb[0].mxu0
    %v1585 = vadd.f32 0.0, %v1584
    %v1586 = vpop.f32.mrb[0].mxu0
    %1587 = vmatprep.mubr.bf16.mxu0 0
    %1588 = vmatmul.mubr.bf16.gmra.mrb[0].mxu0 %v1466
    %v1589 = vpop.f32.mrb[0].mxu0
    %v1590 = vadd.f32 0.0, %v1589
    %v1591 = vpop.f32.mrb[0].mxu0
    %v1592 = vpop.f32.mrb[0].mxu0
    %v1593 = vadd.f32 0.0, %v1592
    %v1594 = vpop.f32.mrb[0].mxu0
    %1595 = vdwg.mxu0
    %1596 = vrot.lane.b32.xlu0 %v703, 64
    %v1597 = vpop.permute.xlu0 %1596
    %1598 = vrot.lane.b32.xlu0 %v704, 64
    %v1599 = vpop.permute.xlu0 %1598
    %1600 = vrot.lane.b32.xlu0 %v705, 64
    %v1601 = vpop.permute.xlu0 %1600
    %1602 = vrot.lane.b32.xlu0 %v706, 64
    %v1603 = vpop.permute.xlu0 %1602
    %1604 = vrot.lane.b32.xlu0 %v707, 64
    %v1605 = vpop.permute.xlu0 %1604
    %1606 = vrot.lane.b32.xlu0 %v708, 64
    %v1607 = vpop.permute.xlu0 %1606
    %1608 = vrot.lane.b32.xlu0 %v709, 64
    %v1609 = vpop.permute.xlu0 %1608
    %1610 = vrot.lane.b32.xlu0 %v710, 64
    %v1611 = vpop.permute.xlu0 %1610
    %1612 = vrot.lane.b32.xlu0 %v711, 64
    %v1613 = vpop.permute.xlu0 %1612
    %1614 = vrot.lane.b32.xlu0 %v712, 64
    %v1615 = vpop.permute.xlu0 %1614
    %1616 = vrot.lane.b32.xlu0 %v713, 64
    %v1617 = vpop.permute.xlu0 %1616
    %1618 = vrot.lane.b32.xlu0 %v714, 64
    %v1619 = vpop.permute.xlu0 %1618
    %1620 = vrot.lane.b32.xlu0 %v715, 64
    %v1621 = vpop.permute.xlu0 %1620
    %1622 = vrot.lane.b32.xlu0 %v716, 64
    %v1623 = vpop.permute.xlu0 %1622
    %1624 = vrot.lane.b32.xlu0 %v717, 64
    %v1625 = vpop.permute.xlu0 %1624
    %1626 = vrot.lane.b32.xlu0 %v718, 64
    %v1627 = vpop.permute.xlu0 %1626
    %v1629 = vsel %vm727, %v1597, 0
    %v1632 = vsel %vm727, %v1599, 0
    %v1635 = vsel %vm727, %v1601, 0
    %v1638 = vsel %vm727, %v1603, 0
    %v1641 = vsel %vm727, %v1605, 0
    %v1644 = vsel %vm727, %v1607, 0
    %v1647 = vsel %vm727, %v1609, 0
    %v1650 = vsel %vm727, %v1611, 0
    %v1653 = vsel %vm727, %v1613, 0
    %v1656 = vsel %vm727, %v1615, 0
    %v1659 = vsel %vm727, %v1617, 0
    %v1662 = vsel %vm727, %v1619, 0
    %v1665 = vsel %vm727, %v1621, 0
    %v1668 = vsel %vm727, %v1623, 0
    %v1671 = vsel %vm727, %v1625, 0
    %v1674 = vsel %vm727, %v1627, 0
    %1676 = vmatprep.subr.bf16.mxu0 0
    %1677 = vmatpush1.bf16.xpose.msra.mxu0 %v1653
    %1678 = vmatprep.subr.bf16.mxu0 0
    %1679 = vmatpush1.bf16.xpose.msra.mxu0 %v1656
    %1680 = vmatprep.subr.bf16.mxu0 0
    %1681 = vmatpush1.bf16.xpose.msra.mxu0 %v1659
    %1682 = vmatprep.subr.bf16.mxu0 0
    %1683 = vmatpush1.bf16.xpose.msra.mxu0 %v1662
    %1684 = vmatprep.subr.bf16.mxu0 0
    %1685 = vmatpush1.bf16.xpose.msra.mxu0 %v1665
    %1686 = vmatprep.subr.bf16.mxu0 0
    %1687 = vmatpush1.bf16.xpose.msra.mxu0 %v1668
    %1688 = vmatprep.subr.bf16.mxu0 0
    %1689 = vmatpush1.bf16.xpose.msra.mxu0 %v1671
    %1690 = vmatprep.subr.bf16.mxu0 0
    %1691 = vmatpush1.bf16.xpose.msra.mxu0 %v1674
    %1692 = vmatprep.subr.bf16.mxu0 0
    %1693 = vmatpush1.bf16.xpose.msra.mxu0 0
    %1694 = vmatprep.subr.bf16.mxu0 0
    %1695 = vmatpush1.bf16.xpose.msra.mxu0 0
    %1696 = vmatprep.subr.bf16.mxu0 0
    %1697 = vmatpush1.bf16.xpose.msra.mxu0 0
    %1698 = vmatprep.subr.bf16.mxu0 0
    %1699 = vmatpush1.bf16.xpose.msra.mxu0 0
    %1700 = vmatprep.subr.bf16.mxu0 0
    %1701 = vmatpush1.bf16.xpose.msra.mxu0 0
    %1702 = vmatprep.subr.bf16.mxu0 0
    %1703 = vmatpush1.bf16.xpose.msra.mxu0 0
    %1704 = vmatprep.subr.bf16.mxu0 0
    %1705 = vmatpush1.bf16.xpose.msra.mxu0 0
    %1706 = vmatprep.subr.bf16.mxu0 0
    %1707 = vmatpush1.bf16.xpose.msra.mxu0 0
    %1708 = vmatprep.mubr.bf16.mxu0 0
    %1709 = vmatmul.mubr.bf16.gmra.mrb[0].mxu0 %v1629
    %v1710 = vpop.f32.mrb[0].mxu0
    %v1711 = vadd.f32 0.0, %v1710
    %v1712 = vpop.f32.mrb[0].mxu0
    %v1713 = vpop.f32.mrb[0].mxu0
    %v1714 = vadd.f32 0.0, %v1713
    %v1715 = vpop.f32.mrb[0].mxu0
    %1716 = vmatprep.mubr.bf16.mxu0 0
    %1717 = vmatmul.mubr.bf16.gmra.mrb[0].mxu0 %v1632
    %v1718 = vpop.f32.mrb[0].mxu0
    %v1719 = vadd.f32 0.0, %v1718
    %v1720 = vpop.f32.mrb[0].mxu0
    %v1721 = vpop.f32.mrb[0].mxu0
    %v1722 = vadd.f32 0.0, %v1721
    %v1723 = vpop.f32.mrb[0].mxu0
    %1724 = vmatprep.mubr.bf16.mxu0 0
    %1725 = vmatmul.mubr.bf16.gmra.mrb[0].mxu0 %v1635
    %v1726 = vpop.f32.mrb[0].mxu0
    %v1727 = vadd.f32 0.0, %v1726
    %v1728 = vpop.f32.mrb[0].mxu0
    %v1729 = vpop.f32.mrb[0].mxu0
    %v1730 = vadd.f32 0.0, %v1729
    %v1731 = vpop.f32.mrb[0].mxu0
    %1732 = vmatprep.mubr.bf16.mxu0 0
    %1733 = vmatmul.mubr.bf16.gmra.mrb[0].mxu0 %v1638
    %v1734 = vpop.f32.mrb[0].mxu0
    %v1735 = vadd.f32 0.0, %v1734
    %v1736 = vpop.f32.mrb[0].mxu0
    %v1737 = vpop.f32.mrb[0].mxu0
    %v1738 = vadd.f32 0.0, %v1737
    %v1739 = vpop.f32.mrb[0].mxu0
    %1740 = vmatprep.mubr.bf16.mxu0 0
    %1741 = vmatmul.mubr.bf16.gmra.mrb[0].mxu0 %v1641
    %v1742 = vpop.f32.mrb[0].mxu0
    %v1743 = vadd.f32 0.0, %v1742
    %v1744 = vpop.f32.mrb[0].mxu0
    %v1745 = vpop.f32.mrb[0].mxu0
    %v1746 = vadd.f32 0.0, %v1745
    %v1747 = vpop.f32.mrb[0].mxu0
    %1748 = vmatprep.mubr.bf16.mxu0 0
    %1749 = vmatmul.mubr.bf16.gmra.mrb[0].mxu0 %v1644
    %v1750 = vpop.f32.mrb[0].mxu0
    %v1751 = vadd.f32 0.0, %v1750
    %v1752 = vpop.f32.mrb[0].mxu0
    %v1753 = vpop.f32.mrb[0].mxu0
    %v1754 = vadd.f32 0.0, %v1753
    %v1755 = vpop.f32.mrb[0].mxu0
    %1756 = vmatprep.mubr.bf16.mxu0 0
    %1757 = vmatmul.mubr.bf16.gmra.mrb[0].mxu0 %v1647
    %v1758 = vpop.f32.mrb[0].mxu0
    %v1759 = vadd.f32 0.0, %v1758
    %v1760 = vpop.f32.mrb[0].mxu0
    %v1761 = vpop.f32.mrb[0].mxu0
    %v1762 = vadd.f32 0.0, %v1761
    %v1763 = vpop.f32.mrb[0].mxu0
    %1764 = vmatprep.mubr.bf16.mxu0 0
    %1765 = vmatmul.mubr.bf16.gmra.mrb[0].mxu0 %v1650
    %v1766 = vpop.f32.mrb[0].mxu0
    %v1767 = vadd.f32 0.0, %v1766
    %v1768 = vpop.f32.mrb[0].mxu0
    %v1769 = vpop.f32.mrb[0].mxu0
    %v1770 = vadd.f32 0.0, %v1769
    %v1771 = vpop.f32.mrb[0].mxu0
    %1772 = vdwg.mxu0
    %1773 = vmax.xlane.f32.xlu0 %v1711
    %v1774 = vpop.xlane.xlu0 %1773
    %1775 = vmax.xlane.f32.xlu0 %v1714
    %v1776 = vpop.xlane.xlu0 %1775
    %1777 = vmax.xlane.f32.xlu0 %v1719
    %v1778 = vpop.xlane.xlu0 %1777
    %1779 = vmax.xlane.f32.xlu0 %v1722
    %v1780 = vpop.xlane.xlu0 %1779
    %1781 = vmax.xlane.f32.xlu0 %v1727
    %v1782 = vpop.xlane.xlu0 %1781
    %1783 = vmax.xlane.f32.xlu0 %v1730
    %v1784 = vpop.xlane.xlu0 %1783
    %1785 = vmax.xlane.f32.xlu0 %v1735
    %v1786 = vpop.xlane.xlu0 %1785
    %1787 = vmax.xlane.f32.xlu0 %v1738
    %v1788 = vpop.xlane.xlu0 %1787
    %1789 = vmax.xlane.f32.xlu0 %v1743
    %v1790 = vpop.xlane.xlu0 %1789
    %1791 = vmax.xlane.f32.xlu0 %v1746
    %v1792 = vpop.xlane.xlu0 %1791
    %1793 = vmax.xlane.f32.xlu0 %v1751
    %v1794 = vpop.xlane.xlu0 %1793
    %1795 = vmax.xlane.f32.xlu0 %v1754
    %v1796 = vpop.xlane.xlu0 %1795
    %1797 = vmax.xlane.f32.xlu0 %v1759
    %v1798 = vpop.xlane.xlu0 %1797
    %1799 = vmax.xlane.f32.xlu0 %v1762
    %v1800 = vpop.xlane.xlu0 %1799
    %1801 = vmax.xlane.f32.xlu0 %v1767
    %v1802 = vpop.xlane.xlu0 %1801
    %1803 = vmax.xlane.f32.xlu0 %v1770
    %v1804 = vpop.xlane.xlu0 %1803
    %v1805 = vsub.f32 %v1711, %v1774
    %v1806 = vsub.f32 %v1714, %v1776
    %v1807 = vsub.f32 %v1719, %v1778
    %v1808 = vsub.f32 %v1722, %v1780
    %v1809 = vsub.f32 %v1727, %v1782
    %v1810 = vsub.f32 %v1730, %v1784
    %v1811 = vsub.f32 %v1735, %v1786
    %v1812 = vsub.f32 %v1738, %v1788
    %v1813 = vsub.f32 %v1743, %v1790
    %v1814 = vsub.f32 %v1746, %v1792
    %v1815 = vsub.f32 %v1751, %v1794
    %v1816 = vsub.f32 %v1754, %v1796
    %v1817 = vsub.f32 %v1759, %v1798
    %v1818 = vsub.f32 %v1762, %v1800
    %v1819 = vsub.f32 %v1767, %v1802
    %v1820 = vsub.f32 %v1770, %v1804
    %v1821 = vmul.f32 %v1805, 1.442695
    %v1822 = vpow.pop %v1821
    %v1823 = vmul.f32 %v1806, 1.442695
    %v1824 = vpow.pop %v1823
    %v1825 = vmul.f32 %v1807, 1.442695
    %v1826 = vpow.pop %v1825
    %v1827 = vmul.f32 %v1808, 1.442695
    %v1828 = vpow.pop %v1827
    %v1829 = vmul.f32 %v1809, 1.442695
    %v1830 = vpow.pop %v1829
    %v1831 = vmul.f32 %v1810, 1.442695
    %v1832 = vpow.pop %v1831
    %v1833 = vmul.f32 %v1811, 1.442695
    %v1834 = vpow.pop %v1833
    %v1835 = vmul.f32 %v1812, 1.442695
    %v1836 = vpow.pop %v1835
    %v1837 = vmul.f32 %v1813, 1.442695
    %v1838 = vpow.pop %v1837
    %v1839 = vmul.f32 %v1814, 1.442695
    %v1840 = vpow.pop %v1839
    %v1841 = vmul.f32 %v1815, 1.442695
    %v1842 = vpow.pop %v1841
    %v1843 = vmul.f32 %v1816, 1.442695
    %v1844 = vpow.pop %v1843
    %v1845 = vmul.f32 %v1817, 1.442695
    %v1846 = vpow.pop %v1845
    %v1847 = vmul.f32 %v1818, 1.442695
    %v1848 = vpow.pop %v1847
    %v1849 = vmul.f32 %v1819, 1.442695
    %v1850 = vpow.pop %v1849
    %v1851 = vmul.f32 %v1820, 1.442695
    %v1852 = vpow.pop %v1851
    %1853 = vadd.xlane.f32.xlu0 %v1822
    %v1854 = vpop.xlane.xlu0 %1853
    %1855 = vadd.xlane.f32.xlu0 %v1824
    %v1856 = vpop.xlane.xlu0 %1855
    %1857 = vadd.xlane.f32.xlu0 %v1826
    %v1858 = vpop.xlane.xlu0 %1857
    %1859 = vadd.xlane.f32.xlu0 %v1828
    %v1860 = vpop.xlane.xlu0 %1859
    %1861 = vadd.xlane.f32.xlu0 %v1830
    %v1862 = vpop.xlane.xlu0 %1861
    %1863 = vadd.xlane.f32.xlu0 %v1832
    %v1864 = vpop.xlane.xlu0 %1863
    %1865 = vadd.xlane.f32.xlu0 %v1834
    %v1866 = vpop.xlane.xlu0 %1865
    %1867 = vadd.xlane.f32.xlu0 %v1836
    %v1868 = vpop.xlane.xlu0 %1867
    %1869 = vadd.xlane.f32.xlu0 %v1838
    %v1870 = vpop.xlane.xlu0 %1869
    %1871 = vadd.xlane.f32.xlu0 %v1840
    %v1872 = vpop.xlane.xlu0 %1871
    %1873 = vadd.xlane.f32.xlu0 %v1842
    %v1874 = vpop.xlane.xlu0 %1873
    %1875 = vadd.xlane.f32.xlu0 %v1844
    %v1876 = vpop.xlane.xlu0 %1875
    %1877 = vadd.xlane.f32.xlu0 %v1846
    %v1878 = vpop.xlane.xlu0 %1877
    %1879 = vadd.xlane.f32.xlu0 %v1848
    %v1880 = vpop.xlane.xlu0 %1879
    %1881 = vadd.xlane.f32.xlu0 %v1850
    %v1882 = vpop.xlane.xlu0 %1881
    %1883 = vadd.xlane.f32.xlu0 %v1852
    %v1884 = vpop.xlane.xlu0 %1883
    %v1885 = vrcp.pop %v1854
    %v1886 = vrcp.pop %v1856
    %v1887 = vrcp.pop %v1858
    %v1888 = vrcp.pop %v1860
    %v1889 = vrcp.pop %v1862
    %v1890 = vrcp.pop %v1864
    %v1891 = vrcp.pop %v1866
    %v1892 = vrcp.pop %v1868
    %v1893 = vrcp.pop %v1870
    %v1894 = vrcp.pop %v1872
    %v1895 = vrcp.pop %v1874
    %v1896 = vrcp.pop %v1876
    %v1897 = vrcp.pop %v1878
    %v1898 = vrcp.pop %v1880
    %v1899 = vrcp.pop %v1882
    %v1900 = vrcp.pop %v1884
    %v1901 = vmul.f32 %v1822, %v1885
    %v1902 = vmul.f32 %v1824, %v1886
    %v1903 = vmul.f32 %v1826, %v1887
    %v1904 = vmul.f32 %v1828, %v1888
    %v1905 = vmul.f32 %v1830, %v1889
    %v1906 = vmul.f32 %v1832, %v1890
    %v1907 = vmul.f32 %v1834, %v1891
    %v1908 = vmul.f32 %v1836, %v1892
    %v1909 = vmul.f32 %v1838, %v1893
    %v1910 = vmul.f32 %v1840, %v1894
    %v1911 = vmul.f32 %v1842, %v1895
    %v1912 = vmul.f32 %v1844, %v1896
    %v1913 = vmul.f32 %v1846, %v1897
    %v1914 = vmul.f32 %v1848, %v1898
    %v1915 = vmul.f32 %v1850, %v1899
    %v1916 = vmul.f32 %v1852, %v1900
    %v1917 = vpack.c.bf16 %v1902, %v1901
    %v1918 = vpack.c.bf16 %v1904, %v1903
    %v1919 = vpack.c.bf16 %v1906, %v1905
    %v1920 = vpack.c.bf16 %v1908, %v1907
    %v1921 = vpack.c.bf16 %v1910, %v1909
    %v1922 = vpack.c.bf16 %v1912, %v1911
    %v1923 = vpack.c.bf16 %v1914, %v1913
    %v1924 = vpack.c.bf16 %v1916, %v1915
    %1925 = vrot.lane.b32.xlu0 %v719, 64
    %v1926 = vpop.permute.xlu0 %1925
    %1927 = vrot.lane.b32.xlu0 %v720, 64
    %v1928 = vpop.permute.xlu0 %1927
    %1929 = vrot.lane.b32.xlu0 %v721, 64
    %v1930 = vpop.permute.xlu0 %1929
    %1931 = vrot.lane.b32.xlu0 %v722, 64
    %v1932 = vpop.permute.xlu0 %1931
    %1933 = vrot.lane.b32.xlu0 %v723, 64
    %v1934 = vpop.permute.xlu0 %1933
    %1935 = vrot.lane.b32.xlu0 %v724, 64
    %v1936 = vpop.permute.xlu0 %1935
    %1937 = vrot.lane.b32.xlu0 %v725, 64
    %v1938 = vpop.permute.xlu0 %1937
    %1939 = vrot.lane.b32.xlu0 %v726, 64
    %v1940 = vpop.permute.xlu0 %1939
    %1949 = vmatprep.subr.bf16.mxu0 0
    %1950 = vmatpush1.bf16.msra.mxu0 %v1926
    %1951 = vmatprep.subr.bf16.mxu0 0
    %1952 = vmatpush1.bf16.msra.mxu0 %v1928
    %1953 = vmatprep.subr.bf16.mxu0 0
    %1954 = vmatpush1.bf16.msra.mxu0 %v1930
    %1955 = vmatprep.subr.bf16.mxu0 0
    %1956 = vmatpush1.bf16.msra.mxu0 %v1932
    %1957 = vmatprep.subr.bf16.mxu0 0
    %1958 = vmatpush1.bf16.msra.mxu0 %v1934
    %1959 = vmatprep.subr.bf16.mxu0 0
    %1960 = vmatpush1.bf16.msra.mxu0 %v1936
    %1961 = vmatprep.subr.bf16.mxu0 0
    %1962 = vmatpush1.bf16.msra.mxu0 %v1938
    %1963 = vmatprep.subr.bf16.mxu0 0
    %1964 = vmatpush1.bf16.msra.mxu0 %v1940
    %1965 = vmatprep.subr.bf16.mxu0 0
    %1966 = vmatpush1.bf16.msra.mxu0 0
    %1967 = vmatprep.subr.bf16.mxu0 0
    %1968 = vmatpush1.bf16.msra.mxu0 0
    %1969 = vmatprep.subr.bf16.mxu0 0
    %1970 = vmatpush1.bf16.msra.mxu0 0
    %1971 = vmatprep.subr.bf16.mxu0 0
    %1972 = vmatpush1.bf16.msra.mxu0 0
    %1973 = vmatprep.subr.bf16.mxu0 0
    %1974 = vmatpush1.bf16.msra.mxu0 0
    %1975 = vmatprep.subr.bf16.mxu0 0
    %1976 = vmatpush1.bf16.msra.mxu0 0
    %1977 = vmatprep.subr.bf16.mxu0 0
    %1978 = vmatpush1.bf16.msra.mxu0 0
    %1979 = vmatprep.subr.bf16.mxu0 0
    %1980 = vmatpush1.bf16.msra.mxu0 0
    %1981 = vmatprep.mubr.bf16.mxu0 0
    %1982 = vmatmul.mubr.bf16.gmra.mrb[0].mxu0 %v1917
    %v1983 = vpop.f32.mrb[0].mxu0
    %v1984 = vadd.f32 0.0, %v1983
    %v1985 = vpop.f32.mrb[0].mxu0
    %v1986 = vpop.f32.mrb[0].mxu0
    %v1987 = vadd.f32 0.0, %v1986
    %v1988 = vpop.f32.mrb[0].mxu0
    %1989 = vmatprep.mubr.bf16.mxu0 0
    %1990 = vmatmul.mubr.bf16.gmra.mrb[0].mxu0 %v1918
    %v1991 = vpop.f32.mrb[0].mxu0
    %v1992 = vadd.f32 0.0, %v1991
    %v1993 = vpop.f32.mrb[0].mxu0
    %v1994 = vpop.f32.mrb[0].mxu0
    %v1995 = vadd.f32 0.0, %v1994
    %v1996 = vpop.f32.mrb[0].mxu0
    %1997 = vmatprep.mubr.bf16.mxu0 0
    %1998 = vmatmul.mubr.bf16.gmra.mrb[0].mxu0 %v1919
    %v1999 = vpop.f32.mrb[0].mxu0
    %v2000 = vadd.f32 0.0, %v1999
    %v2001 = vpop.f32.mrb[0].mxu0
    %v2002 = vpop.f32.mrb[0].mxu0
    %v2003 = vadd.f32 0.0, %v2002
    %v2004 = vpop.f32.mrb[0].mxu0
    %2005 = vmatprep.mubr.bf16.mxu0 0
    %2006 = vmatmul.mubr.bf16.gmra.mrb[0].mxu0 %v1920
    %v2007 = vpop.f32.mrb[0].mxu0
    %v2008 = vadd.f32 0.0, %v2007
    %v2009 = vpop.f32.mrb[0].mxu0
    %v2010 = vpop.f32.mrb[0].mxu0
    %v2011 = vadd.f32 0.0, %v2010
    %v2012 = vpop.f32.mrb[0].mxu0
    %2013 = vmatprep.mubr.bf16.mxu0 0
    %2014 = vmatmul.mubr.bf16.gmra.mrb[0].mxu0 %v1921
    %v2015 = vpop.f32.mrb[0].mxu0
    %v2016 = vadd.f32 0.0, %v2015
    %v2017 = vpop.f32.mrb[0].mxu0
    %v2018 = vpop.f32.mrb[0].mxu0
    %v2019 = vadd.f32 0.0, %v2018
    %v2020 = vpop.f32.mrb[0].mxu0
    %2021 = vmatprep.mubr.bf16.mxu0 0
    %2022 = vmatmul.mubr.bf16.gmra.mrb[0].mxu0 %v1922
    %v2023 = vpop.f32.mrb[0].mxu0
    %v2024 = vadd.f32 0.0, %v2023
    %v2025 = vpop.f32.mrb[0].mxu0
    %v2026 = vpop.f32.mrb[0].mxu0
    %v2027 = vadd.f32 0.0, %v2026
    %v2028 = vpop.f32.mrb[0].mxu0
    %2029 = vmatprep.mubr.bf16.mxu0 0
    %2030 = vmatmul.mubr.bf16.gmra.mrb[0].mxu0 %v1923
    %v2031 = vpop.f32.mrb[0].mxu0
    %v2032 = vadd.f32 0.0, %v2031
    %v2033 = vpop.f32.mrb[0].mxu0
    %v2034 = vpop.f32.mrb[0].mxu0
    %v2035 = vadd.f32 0.0, %v2034
    %v2036 = vpop.f32.mrb[0].mxu0
    %2037 = vmatprep.mubr.bf16.mxu0 0
    %2038 = vmatmul.mubr.bf16.gmra.mrb[0].mxu0 %v1924
    %v2039 = vpop.f32.mrb[0].mxu0
    %v2040 = vadd.f32 0.0, %v2039
    %v2041 = vpop.f32.mrb[0].mxu0
    %v2042 = vpop.f32.mrb[0].mxu0
    %v2043 = vadd.f32 0.0, %v2042
    %v2044 = vpop.f32.mrb[0].mxu0
    %2045 = vdwg.mxu0
    %2046 = vrot.lane.b32.xlu0 %v703, 32
    %v2047 = vpop.permute.xlu0 %2046
    %2048 = vrot.lane.b32.xlu0 %v704, 32
    %v2049 = vpop.permute.xlu0 %2048
    %2050 = vrot.lane.b32.xlu0 %v705, 32
    %v2051 = vpop.permute.xlu0 %2050
    %2052 = vrot.lane.b32.xlu0 %v706, 32
    %v2053 = vpop.permute.xlu0 %2052
    %2054 = vrot.lane.b32.xlu0 %v707, 32
    %v2055 = vpop.permute.xlu0 %2054
    %2056 = vrot.lane.b32.xlu0 %v708, 32
    %v2057 = vpop.permute.xlu0 %2056
    %2058 = vrot.lane.b32.xlu0 %v709, 32
    %v2059 = vpop.permute.xlu0 %2058
    %2060 = vrot.lane.b32.xlu0 %v710, 32
    %v2061 = vpop.permute.xlu0 %2060
    %2062 = vrot.lane.b32.xlu0 %v711, 32
    %v2063 = vpop.permute.xlu0 %2062
    %2064 = vrot.lane.b32.xlu0 %v712, 32
    %v2065 = vpop.permute.xlu0 %2064
    %2066 = vrot.lane.b32.xlu0 %v713, 32
    %v2067 = vpop.permute.xlu0 %2066
    %2068 = vrot.lane.b32.xlu0 %v714, 32
    %v2069 = vpop.permute.xlu0 %2068
    %2070 = vrot.lane.b32.xlu0 %v715, 32
    %v2071 = vpop.permute.xlu0 %2070
    %2072 = vrot.lane.b32.xlu0 %v716, 32
    %v2073 = vpop.permute.xlu0 %2072
    %2074 = vrot.lane.b32.xlu0 %v717, 32
    %v2075 = vpop.permute.xlu0 %2074
    %2076 = vrot.lane.b32.xlu0 %v718, 32
    %v2077 = vpop.permute.xlu0 %2076
    %v2079 = vsel %vm727, %v2047, 0
    %v2082 = vsel %vm727, %v2049, 0
    %v2085 = vsel %vm727, %v2051, 0
    %v2088 = vsel %vm727, %v2053, 0
    %v2091 = vsel %vm727, %v2055, 0
    %v2094 = vsel %vm727, %v2057, 0
    %v2097 = vsel %vm727, %v2059, 0
    %v2100 = vsel %vm727, %v2061, 0
    %v2103 = vsel %vm727, %v2063, 0
    %v2106 = vsel %vm727, %v2065, 0
    %v2109 = vsel %vm727, %v2067, 0
    %v2112 = vsel %vm727, %v2069, 0
    %v2115 = vsel %vm727, %v2071, 0
    %v2118 = vsel %vm727, %v2073, 0
    %v2121 = vsel %vm727, %v2075, 0
    %v2124 = vsel %vm727, %v2077, 0
    %2126 = vmatprep.subr.bf16.mxu0 0
    %2127 = vmatpush1.bf16.xpose.msra.mxu0 %v2103
    %2128 = vmatprep.subr.bf16.mxu0 0
    %2129 = vmatpush1.bf16.xpose.msra.mxu0 %v2106
    %2130 = vmatprep.subr.bf16.mxu0 0
    %2131 = vmatpush1.bf16.xpose.msra.mxu0 %v2109
    %2132 = vmatprep.subr.bf16.mxu0 0
    %2133 = vmatpush1.bf16.xpose.msra.mxu0 %v2112
    %2134 = vmatprep.subr.bf16.mxu0 0
    %2135 = vmatpush1.bf16.xpose.msra.mxu0 %v2115
    %2136 = vmatprep.subr.bf16.mxu0 0
    %2137 = vmatpush1.bf16.xpose.msra.mxu0 %v2118
    %2138 = vmatprep.subr.bf16.mxu0 0
    %2139 = vmatpush1.bf16.xpose.msra.mxu0 %v2121
    %2140 = vmatprep.subr.bf16.mxu0 0
    %2141 = vmatpush1.bf16.xpose.msra.mxu0 %v2124
    %2142 = vmatprep.subr.bf16.mxu0 0
    %2143 = vmatpush1.bf16.xpose.msra.mxu0 0
    %2144 = vmatprep.subr.bf16.mxu0 0
    %2145 = vmatpush1.bf16.xpose.msra.mxu0 0
    %2146 = vmatprep.subr.bf16.mxu0 0
    %2147 = vmatpush1.bf16.xpose.msra.mxu0 0
    %2148 = vmatprep.subr.bf16.mxu0 0
    %2149 = vmatpush1.bf16.xpose.msra.mxu0 0
    %2150 = vmatprep.subr.bf16.mxu0 0
    %2151 = vmatpush1.bf16.xpose.msra.mxu0 0
    %2152 = vmatprep.subr.bf16.mxu0 0
    %2153 = vmatpush1.bf16.xpose.msra.mxu0 0
    %2154 = vmatprep.subr.bf16.mxu0 0
    %2155 = vmatpush1.bf16.xpose.msra.mxu0 0
    %2156 = vmatprep.subr.bf16.mxu0 0
    %2157 = vmatpush1.bf16.xpose.msra.mxu0 0
    %2158 = vmatprep.mubr.bf16.mxu0 0
    %2159 = vmatmul.mubr.bf16.gmra.mrb[0].mxu0 %v2079
    %v2160 = vpop.f32.mrb[0].mxu0
    %v2161 = vadd.f32 0.0, %v2160
    %v2162 = vpop.f32.mrb[0].mxu0
    %v2163 = vpop.f32.mrb[0].mxu0
    %v2164 = vadd.f32 0.0, %v2163
    %v2165 = vpop.f32.mrb[0].mxu0
    %2166 = vmatprep.mubr.bf16.mxu0 0
    %2167 = vmatmul.mubr.bf16.gmra.mrb[0].mxu0 %v2082
    %v2168 = vpop.f32.mrb[0].mxu0
    %v2169 = vadd.f32 0.0, %v2168
    %v2170 = vpop.f32.mrb[0].mxu0
    %v2171 = vpop.f32.mrb[0].mxu0
    %v2172 = vadd.f32 0.0, %v2171
    %v2173 = vpop.f32.mrb[0].mxu0
    %2174 = vmatprep.mubr.bf16.mxu0 0
    %2175 = vmatmul.mubr.bf16.gmra.mrb[0].mxu0 %v2085
    %v2176 = vpop.f32.mrb[0].mxu0
    %v2177 = vadd.f32 0.0, %v2176
    %v2178 = vpop.f32.mrb[0].mxu0
    %v2179 = vpop.f32.mrb[0].mxu0
    %v2180 = vadd.f32 0.0, %v2179
    %v2181 = vpop.f32.mrb[0].mxu0
    %2182 = vmatprep.mubr.bf16.mxu0 0
    %2183 = vmatmul.mubr.bf16.gmra.mrb[0].mxu0 %v2088
    %v2184 = vpop.f32.mrb[0].mxu0
    %v2185 = vadd.f32 0.0, %v2184
    %v2186 = vpop.f32.mrb[0].mxu0
    %v2187 = vpop.f32.mrb[0].mxu0
    %v2188 = vadd.f32 0.0, %v2187
    %v2189 = vpop.f32.mrb[0].mxu0
    %2190 = vmatprep.mubr.bf16.mxu0 0
    %2191 = vmatmul.mubr.bf16.gmra.mrb[0].mxu0 %v2091
    %v2192 = vpop.f32.mrb[0].mxu0
    %v2193 = vadd.f32 0.0, %v2192
    %v2194 = vpop.f32.mrb[0].mxu0
    %v2195 = vpop.f32.mrb[0].mxu0
    %v2196 = vadd.f32 0.0, %v2195
    %v2197 = vpop.f32.mrb[0].mxu0
    %2198 = vmatprep.mubr.bf16.mxu0 0
    %2199 = vmatmul.mubr.bf16.gmra.mrb[0].mxu0 %v2094
    %v2200 = vpop.f32.mrb[0].mxu0
    %v2201 = vadd.f32 0.0, %v2200
    %v2202 = vpop.f32.mrb[0].mxu0
    %v2203 = vpop.f32.mrb[0].mxu0
    %v2204 = vadd.f32 0.0, %v2203
    %v2205 = vpop.f32.mrb[0].mxu0
    %2206 = vmatprep.mubr.bf16.mxu0 0
    %2207 = vmatmul.mubr.bf16.gmra.mrb[0].mxu0 %v2097
    %v2208 = vpop.f32.mrb[0].mxu0
    %v2209 = vadd.f32 0.0, %v2208
    %v2210 = vpop.f32.mrb[0].mxu0
    %v2211 = vpop.f32.mrb[0].mxu0
    %v2212 = vadd.f32 0.0, %v2211
    %v2213 = vpop.f32.mrb[0].mxu0
    %2214 = vmatprep.mubr.bf16.mxu0 0
    %2215 = vmatmul.mubr.bf16.gmra.mrb[0].mxu0 %v2100
    %v2216 = vpop.f32.mrb[0].mxu0
    %v2217 = vadd.f32 0.0, %v2216
    %v2218 = vpop.f32.mrb[0].mxu0
    %v2219 = vpop.f32.mrb[0].mxu0
    %v2220 = vadd.f32 0.0, %v2219
    %v2221 = vpop.f32.mrb[0].mxu0
    %2222 = vdwg.mxu0
    %2223 = vmax.xlane.f32.xlu0 %v2161
    %v2224 = vpop.xlane.xlu0 %2223
    %2225 = vmax.xlane.f32.xlu0 %v2164
    %v2226 = vpop.xlane.xlu0 %2225
    %2227 = vmax.xlane.f32.xlu0 %v2169
    %v2228 = vpop.xlane.xlu0 %2227
    %2229 = vmax.xlane.f32.xlu0 %v2172
    %v2230 = vpop.xlane.xlu0 %2229
    %2231 = vmax.xlane.f32.xlu0 %v2177
    %v2232 = vpop.xlane.xlu0 %2231
    %2233 = vmax.xlane.f32.xlu0 %v2180
    %v2234 = vpop.xlane.xlu0 %2233
    %2235 = vmax.xlane.f32.xlu0 %v2185
    %v2236 = vpop.xlane.xlu0 %2235
    %2237 = vmax.xlane.f32.xlu0 %v2188
    %v2238 = vpop.xlane.xlu0 %2237
    %2239 = vmax.xlane.f32.xlu0 %v2193
    %v2240 = vpop.xlane.xlu0 %2239
    %2241 = vmax.xlane.f32.xlu0 %v2196
    %v2242 = vpop.xlane.xlu0 %2241
    %2243 = vmax.xlane.f32.xlu0 %v2201
    %v2244 = vpop.xlane.xlu0 %2243
    %2245 = vmax.xlane.f32.xlu0 %v2204
    %v2246 = vpop.xlane.xlu0 %2245
    %2247 = vmax.xlane.f32.xlu0 %v2209
    %v2248 = vpop.xlane.xlu0 %2247
    %2249 = vmax.xlane.f32.xlu0 %v2212
    %v2250 = vpop.xlane.xlu0 %2249
    %2251 = vmax.xlane.f32.xlu0 %v2217
    %v2252 = vpop.xlane.xlu0 %2251
    %2253 = vmax.xlane.f32.xlu0 %v2220
    %v2254 = vpop.xlane.xlu0 %2253
    %v2255 = vsub.f32 %v2161, %v2224
    %v2256 = vsub.f32 %v2164, %v2226
    %v2257 = vsub.f32 %v2169, %v2228
    %v2258 = vsub.f32 %v2172, %v2230
    %v2259 = vsub.f32 %v2177, %v2232
    %v2260 = vsub.f32 %v2180, %v2234
    %v2261 = vsub.f32 %v2185, %v2236
    %v2262 = vsub.f32 %v2188, %v2238
    %v2263 = vsub.f32 %v2193, %v2240
    %v2264 = vsub.f32 %v2196, %v2242
    %v2265 = vsub.f32 %v2201, %v2244
    %v2266 = vsub.f32 %v2204, %v2246
    %v2267 = vsub.f32 %v2209, %v2248
    %v2268 = vsub.f32 %v2212, %v2250
    %v2269 = vsub.f32 %v2217, %v2252
    %v2270 = vsub.f32 %v2220, %v2254
    %v2271 = vmul.f32 %v2255, 1.442695
    %v2272 = vpow.pop %v2271
    %v2273 = vmul.f32 %v2256, 1.442695
    %v2274 = vpow.pop %v2273
    %v2275 = vmul.f32 %v2257, 1.442695
    %v2276 = vpow.pop %v2275
    %v2277 = vmul.f32 %v2258, 1.442695
    %v2278 = vpow.pop %v2277
    %v2279 = vmul.f32 %v2259, 1.442695
    %v2280 = vpow.pop %v2279
    %v2281 = vmul.f32 %v2260, 1.442695
    %v2282 = vpow.pop %v2281
    %v2283 = vmul.f32 %v2261, 1.442695
    %v2284 = vpow.pop %v2283
    %v2285 = vmul.f32 %v2262, 1.442695
    %v2286 = vpow.pop %v2285
    %v2287 = vmul.f32 %v2263, 1.442695
    %v2288 = vpow.pop %v2287
    %v2289 = vmul.f32 %v2264, 1.442695
    %v2290 = vpow.pop %v2289
    %v2291 = vmul.f32 %v2265, 1.442695
    %v2292 = vpow.pop %v2291
    %v2293 = vmul.f32 %v2266, 1.442695
    %v2294 = vpow.pop %v2293
    %v2295 = vmul.f32 %v2267, 1.442695
    %v2296 = vpow.pop %v2295
    %v2297 = vmul.f32 %v2268, 1.442695
    %v2298 = vpow.pop %v2297
    %v2299 = vmul.f32 %v2269, 1.442695
    %v2300 = vpow.pop %v2299
    %v2301 = vmul.f32 %v2270, 1.442695
    %v2302 = vpow.pop %v2301
    %2303 = vadd.xlane.f32.xlu0 %v2272
    %v2304 = vpop.xlane.xlu0 %2303
    %2305 = vadd.xlane.f32.xlu0 %v2274
    %v2306 = vpop.xlane.xlu0 %2305
    %2307 = vadd.xlane.f32.xlu0 %v2276
    %v2308 = vpop.xlane.xlu0 %2307
    %2309 = vadd.xlane.f32.xlu0 %v2278
    %v2310 = vpop.xlane.xlu0 %2309
    %2311 = vadd.xlane.f32.xlu0 %v2280
    %v2312 = vpop.xlane.xlu0 %2311
    %2313 = vadd.xlane.f32.xlu0 %v2282
    %v2314 = vpop.xlane.xlu0 %2313
    %2315 = vadd.xlane.f32.xlu0 %v2284
    %v2316 = vpop.xlane.xlu0 %2315
    %2317 = vadd.xlane.f32.xlu0 %v2286
    %v2318 = vpop.xlane.xlu0 %2317
    %2319 = vadd.xlane.f32.xlu0 %v2288
    %v2320 = vpop.xlane.xlu0 %2319
    %2321 = vadd.xlane.f32.xlu0 %v2290
    %v2322 = vpop.xlane.xlu0 %2321
    %2323 = vadd.xlane.f32.xlu0 %v2292
    %v2324 = vpop.xlane.xlu0 %2323
    %2325 = vadd.xlane.f32.xlu0 %v2294
    %v2326 = vpop.xlane.xlu0 %2325
    %2327 = vadd.xlane.f32.xlu0 %v2296
    %v2328 = vpop.xlane.xlu0 %2327
    %2329 = vadd.xlane.f32.xlu0 %v2298
    %v2330 = vpop.xlane.xlu0 %2329
    %2331 = vadd.xlane.f32.xlu0 %v2300
    %v2332 = vpop.xlane.xlu0 %2331
    %2333 = vadd.xlane.f32.xlu0 %v2302
    %v2334 = vpop.xlane.xlu0 %2333
    %v2335 = vrcp.pop %v2304
    %v2336 = vrcp.pop %v2306
    %v2337 = vrcp.pop %v2308
    %v2338 = vrcp.pop %v2310
    %v2339 = vrcp.pop %v2312
    %v2340 = vrcp.pop %v2314
    %v2341 = vrcp.pop %v2316
    %v2342 = vrcp.pop %v2318
    %v2343 = vrcp.pop %v2320
    %v2344 = vrcp.pop %v2322
    %v2345 = vrcp.pop %v2324
    %v2346 = vrcp.pop %v2326
    %v2347 = vrcp.pop %v2328
    %v2348 = vrcp.pop %v2330
    %v2349 = vrcp.pop %v2332
    %v2350 = vrcp.pop %v2334
    %v2351 = vmul.f32 %v2272, %v2335
    %v2352 = vmul.f32 %v2274, %v2336
    %v2353 = vmul.f32 %v2276, %v2337
    %v2354 = vmul.f32 %v2278, %v2338
    %v2355 = vmul.f32 %v2280, %v2339
    %v2356 = vmul.f32 %v2282, %v2340
    %v2357 = vmul.f32 %v2284, %v2341
    %v2358 = vmul.f32 %v2286, %v2342
    %v2359 = vmul.f32 %v2288, %v2343
    %v2360 = vmul.f32 %v2290, %v2344
    %v2361 = vmul.f32 %v2292, %v2345
    %v2362 = vmul.f32 %v2294, %v2346
    %v2363 = vmul.f32 %v2296, %v2347
    %v2364 = vmul.f32 %v2298, %v2348
    %v2365 = vmul.f32 %v2300, %v2349
    %v2366 = vmul.f32 %v2302, %v2350
    %v2367 = vpack.c.bf16 %v2352, %v2351
    %v2368 = vpack.c.bf16 %v2354, %v2353
    %v2369 = vpack.c.bf16 %v2356, %v2355
    %v2370 = vpack.c.bf16 %v2358, %v2357
    %v2371 = vpack.c.bf16 %v2360, %v2359
    %v2372 = vpack.c.bf16 %v2362, %v2361
    %v2373 = vpack.c.bf16 %v2364, %v2363
    %v2374 = vpack.c.bf16 %v2366, %v2365
    %2375 = vrot.lane.b32.xlu0 %v719, 32
    %v2376 = vpop.permute.xlu0 %2375
    %2377 = vrot.lane.b32.xlu0 %v720, 32
    %v2378 = vpop.permute.xlu0 %2377
    %2379 = vrot.lane.b32.xlu0 %v721, 32
    %v2380 = vpop.permute.xlu0 %2379
    %2381 = vrot.lane.b32.xlu0 %v722, 32
    %v2382 = vpop.permute.xlu0 %2381
    %2383 = vrot.lane.b32.xlu0 %v723, 32
    %v2384 = vpop.permute.xlu0 %2383
    %2385 = vrot.lane.b32.xlu0 %v724, 32
    %v2386 = vpop.permute.xlu0 %2385
    %2387 = vrot.lane.b32.xlu0 %v725, 32
    %v2388 = vpop.permute.xlu0 %2387
    %2389 = vrot.lane.b32.xlu0 %v726, 32
    %v2390 = vpop.permute.xlu0 %2389
    %2399 = vmatprep.subr.bf16.mxu0 0
    %2400 = vmatpush1.bf16.msra.mxu0 %v2376
    %2401 = vmatprep.subr.bf16.mxu0 0
    %2402 = vmatpush1.bf16.msra.mxu0 %v2378
    %2403 = vmatprep.subr.bf16.mxu0 0
    %2404 = vmatpush1.bf16.msra.mxu0 %v2380
    %2405 = vmatprep.subr.bf16.mxu0 0
    %2406 = vmatpush1.bf16.msra.mxu0 %v2382
    %2407 = vmatprep.subr.bf16.mxu0 0
    %2408 = vmatpush1.bf16.msra.mxu0 %v2384
    %2409 = vmatprep.subr.bf16.mxu0 0
    %2410 = vmatpush1.bf16.msra.mxu0 %v2386
    %2411 = vmatprep.subr.bf16.mxu0 0
    %2412 = vmatpush1.bf16.msra.mxu0 %v2388
    %2413 = vmatprep.subr.bf16.mxu0 0
    %2414 = vmatpush1.bf16.msra.mxu0 %v2390
    %2415 = vmatprep.subr.bf16.mxu0 0
    %2416 = vmatpush1.bf16.msra.mxu0 0
    %2417 = vmatprep.subr.bf16.mxu0 0
    %2418 = vmatpush1.bf16.msra.mxu0 0
    %2419 = vmatprep.subr.bf16.mxu0 0
    %2420 = vmatpush1.bf16.msra.mxu0 0
    %2421 = vmatprep.subr.bf16.mxu0 0
    %2422 = vmatpush1.bf16.msra.mxu0 0
    %2423 = vmatprep.subr.bf16.mxu0 0
    %2424 = vmatpush1.bf16.msra.mxu0 0
    %2425 = vmatprep.subr.bf16.mxu0 0
    %2426 = vmatpush1.bf16.msra.mxu0 0
    %2427 = vmatprep.subr.bf16.mxu0 0
    %2428 = vmatpush1.bf16.msra.mxu0 0
    %2429 = vmatprep.subr.bf16.mxu0 0
    %2430 = vmatpush1.bf16.msra.mxu0 0
    %2431 = vmatprep.mubr.bf16.mxu0 0
    %2432 = vmatmul.mubr.bf16.gmra.mrb[0].mxu0 %v2367
    %v2433 = vpop.f32.mrb[0].mxu0
    %v2434 = vadd.f32 0.0, %v2433
    %v2435 = vpop.f32.mrb[0].mxu0
    %v2436 = vpop.f32.mrb[0].mxu0
    %v2437 = vadd.f32 0.0, %v2436
    %v2438 = vpop.f32.mrb[0].mxu0
    %2439 = vmatprep.mubr.bf16.mxu0 0
    %2440 = vmatmul.mubr.bf16.gmra.mrb[0].mxu0 %v2368
    %v2441 = vpop.f32.mrb[0].mxu0
    %v2442 = vadd.f32 0.0, %v2441
    %v2443 = vpop.f32.mrb[0].mxu0
    %v2444 = vpop.f32.mrb[0].mxu0
    %v2445 = vadd.f32 0.0, %v2444
    %v2446 = vpop.f32.mrb[0].mxu0
    %2447 = vmatprep.mubr.bf16.mxu0 0
    %2448 = vmatmul.mubr.bf16.gmra.mrb[0].mxu0 %v2369
    %v2449 = vpop.f32.mrb[0].mxu0
    %v2450 = vadd.f32 0.0, %v2449
    %v2451 = vpop.f32.mrb[0].mxu0
    %v2452 = vpop.f32.mrb[0].mxu0
    %v2453 = vadd.f32 0.0, %v2452
    %v2454 = vpop.f32.mrb[0].mxu0
    %2455 = vmatprep.mubr.bf16.mxu0 0
    %2456 = vmatmul.mubr.bf16.gmra.mrb[0].mxu0 %v2370
    %v2457 = vpop.f32.mrb[0].mxu0
    %v2458 = vadd.f32 0.0, %v2457
    %v2459 = vpop.f32.mrb[0].mxu0
    %v2460 = vpop.f32.mrb[0].mxu0
    %v2461 = vadd.f32 0.0, %v2460
    %v2462 = vpop.f32.mrb[0].mxu0
    %2463 = vmatprep.mubr.bf16.mxu0 0
    %2464 = vmatmul.mubr.bf16.gmra.mrb[0].mxu0 %v2371
    %v2465 = vpop.f32.mrb[0].mxu0
    %v2466 = vadd.f32 0.0, %v2465
    %v2467 = vpop.f32.mrb[0].mxu0
    %v2468 = vpop.f32.mrb[0].mxu0
    %v2469 = vadd.f32 0.0, %v2468
    %v2470 = vpop.f32.mrb[0].mxu0
    %2471 = vmatprep.mubr.bf16.mxu0 0
    %2472 = vmatmul.mubr.bf16.gmra.mrb[0].mxu0 %v2372
    %v2473 = vpop.f32.mrb[0].mxu0
    %v2474 = vadd.f32 0.0, %v2473
    %v2475 = vpop.f32.mrb[0].mxu0
    %v2476 = vpop.f32.mrb[0].mxu0
    %v2477 = vadd.f32 0.0, %v2476
    %v2478 = vpop.f32.mrb[0].mxu0
    %2479 = vmatprep.mubr.bf16.mxu0 0
    %2480 = vmatmul.mubr.bf16.gmra.mrb[0].mxu0 %v2373
    %v2481 = vpop.f32.mrb[0].mxu0
    %v2482 = vadd.f32 0.0, %v2481
    %v2483 = vpop.f32.mrb[0].mxu0
    %v2484 = vpop.f32.mrb[0].mxu0
    %v2485 = vadd.f32 0.0, %v2484
    %v2486 = vpop.f32.mrb[0].mxu0
    %2487 = vmatprep.mubr.bf16.mxu0 0
    %2488 = vmatmul.mubr.bf16.gmra.mrb[0].mxu0 %v2374
    %v2489 = vpop.f32.mrb[0].mxu0
    %v2490 = vadd.f32 0.0, %v2489
    %v2491 = vpop.f32.mrb[0].mxu0
    %v2492 = vpop.f32.mrb[0].mxu0
    %v2493 = vadd.f32 0.0, %v2492
    %v2494 = vpop.f32.mrb[0].mxu0
    %2495 = vdwg.mxu0
    %2512 = vrot.lane.b32.xlu0 %v1534, 32
    %v2513 = vpop.permute.xlu0 %2512
    %2514 = vrot.lane.b32.xlu0 %v1537, 32
    %v2515 = vpop.permute.xlu0 %2514
    %2516 = vrot.lane.b32.xlu0 %v1542, 32
    %v2517 = vpop.permute.xlu0 %2516
    %2518 = vrot.lane.b32.xlu0 %v1545, 32
    %v2519 = vpop.permute.xlu0 %2518
    %2520 = vrot.lane.b32.xlu0 %v1550, 32
    %v2521 = vpop.permute.xlu0 %2520
    %2522 = vrot.lane.b32.xlu0 %v1553, 32
    %v2523 = vpop.permute.xlu0 %2522
    %2524 = vrot.lane.b32.xlu0 %v1558, 32
    %v2525 = vpop.permute.xlu0 %2524
    %2526 = vrot.lane.b32.xlu0 %v1561, 32
    %v2527 = vpop.permute.xlu0 %2526
    %2528 = vrot.lane.b32.xlu0 %v1566, 32
    %v2529 = vpop.permute.xlu0 %2528
    %2530 = vrot.lane.b32.xlu0 %v1569, 32
    %v2531 = vpop.permute.xlu0 %2530
    %2532 = vrot.lane.b32.xlu0 %v1574, 32
    %v2533 = vpop.permute.xlu0 %2532
    %2534 = vrot.lane.b32.xlu0 %v1577, 32
    %v2535 = vpop.permute.xlu0 %2534
    %2536 = vrot.lane.b32.xlu0 %v1582, 32
    %v2537 = vpop.permute.xlu0 %2536
    %2538 = vrot.lane.b32.xlu0 %v1585, 32
    %v2539 = vpop.permute.xlu0 %2538
    %2540 = vrot.lane.b32.xlu0 %v1590, 32
    %v2541 = vpop.permute.xlu0 %2540
    %2542 = vrot.lane.b32.xlu0 %v1593, 32
    %v2543 = vpop.permute.xlu0 %2542
    %2576 = vrot.lane.b32.xlu0 %v1984, 64
    %v2577 = vpop.permute.xlu0 %2576
    %2578 = vrot.lane.b32.xlu0 %v1987, 64
    %v2579 = vpop.permute.xlu0 %2578
    %2580 = vrot.lane.b32.xlu0 %v1992, 64
    %v2581 = vpop.permute.xlu0 %2580
    %2582 = vrot.lane.b32.xlu0 %v1995, 64
    %v2583 = vpop.permute.xlu0 %2582
    %2584 = vrot.lane.b32.xlu0 %v2000, 64
    %v2585 = vpop.permute.xlu0 %2584
    %2586 = vrot.lane.b32.xlu0 %v2003, 64
    %v2587 = vpop.permute.xlu0 %2586
    %2588 = vrot.lane.b32.xlu0 %v2008, 64
    %v2589 = vpop.permute.xlu0 %2588
    %2590 = vrot.lane.b32.xlu0 %v2011, 64
    %v2591 = vpop.permute.xlu0 %2590
    %2592 = vrot.lane.b32.xlu0 %v2016, 64
    %v2593 = vpop.permute.xlu0 %2592
    %2594 = vrot.lane.b32.xlu0 %v2019, 64
    %v2595 = vpop.permute.xlu0 %2594
    %2596 = vrot.lane.b32.xlu0 %v2024, 64
    %v2597 = vpop.permute.xlu0 %2596
    %2598 = vrot.lane.b32.xlu0 %v2027, 64
    %v2599 = vpop.permute.xlu0 %2598
    %2600 = vrot.lane.b32.xlu0 %v2032, 64
    %v2601 = vpop.permute.xlu0 %2600
    %2602 = vrot.lane.b32.xlu0 %v2035, 64
    %v2603 = vpop.permute.xlu0 %2602
    %2604 = vrot.lane.b32.xlu0 %v2040, 64
    %v2605 = vpop.permute.xlu0 %2604
    %2606 = vrot.lane.b32.xlu0 %v2043, 64
    %v2607 = vpop.permute.xlu0 %2606
    %2640 = vrot.lane.b32.xlu0 %v2434, 96
    %v2641 = vpop.permute.xlu0 %2640
    %2642 = vrot.lane.b32.xlu0 %v2437, 96
    %v2643 = vpop.permute.xlu0 %2642
    %2644 = vrot.lane.b32.xlu0 %v2442, 96
    %v2645 = vpop.permute.xlu0 %2644
    %2646 = vrot.lane.b32.xlu0 %v2445, 96
    %v2647 = vpop.permute.xlu0 %2646
    %2648 = vrot.lane.b32.xlu0 %v2450, 96
    %v2649 = vpop.permute.xlu0 %2648
    %2650 = vrot.lane.b32.xlu0 %v2453, 96
    %v2651 = vpop.permute.xlu0 %2650
    %2652 = vrot.lane.b32.xlu0 %v2458, 96
    %v2653 = vpop.permute.xlu0 %2652
    %2654 = vrot.lane.b32.xlu0 %v2461, 96
    %v2655 = vpop.permute.xlu0 %2654
    %2656 = vrot.lane.b32.xlu0 %v2466, 96
    %v2657 = vpop.permute.xlu0 %2656
    %2658 = vrot.lane.b32.xlu0 %v2469, 96
    %v2659 = vpop.permute.xlu0 %2658
    %2660 = vrot.lane.b32.xlu0 %v2474, 96
    %v2661 = vpop.permute.xlu0 %2660
    %2662 = vrot.lane.b32.xlu0 %v2477, 96
    %v2663 = vpop.permute.xlu0 %2662
    %2664 = vrot.lane.b32.xlu0 %v2482, 96
    %v2665 = vpop.permute.xlu0 %2664
    %2666 = vrot.lane.b32.xlu0 %v2485, 96
    %v2667 = vpop.permute.xlu0 %2666
    %2668 = vrot.lane.b32.xlu0 %v2490, 96
    %v2669 = vpop.permute.xlu0 %2668
    %2670 = vrot.lane.b32.xlu0 %v2493, 96
    %v2671 = vpop.permute.xlu0 %2670
    %v2688 = vsel %vm727, %v1060, %v2513
    %v2689 = vsel %vm727, %v1063, %v2515
    %v2690 = vsel %vm727, %v1068, %v2517
    %v2691 = vsel %vm727, %v1071, %v2519
    %v2692 = vsel %vm727, %v1076, %v2521
    %v2693 = vsel %vm727, %v1079, %v2523
    %v2694 = vsel %vm727, %v1084, %v2525
    %v2695 = vsel %vm727, %v1087, %v2527
    %v2696 = vsel %vm727, %v1092, %v2529
    %v2697 = vsel %vm727, %v1095, %v2531
    %v2698 = vsel %vm727, %v1100, %v2533
    %v2699 = vsel %vm727, %v1103, %v2535
    %v2700 = vsel %vm727, %v1108, %v2537
    %v2701 = vsel %vm727, %v1111, %v2539
    %v2702 = vsel %vm727, %v1116, %v2541
    %v2703 = vsel %vm727, %v1119, %v2543
    %vm2704 = vcmask 523264
    %v2705 = vsel %vm2704, %v2688, %v2577
    %v2706 = vsel %vm2704, %v2689, %v2579
    %v2707 = vsel %vm2704, %v2690, %v2581
    %v2708 = vsel %vm2704, %v2691, %v2583
    %v2709 = vsel %vm2704, %v2692, %v2585
    %v2710 = vsel %vm2704, %v2693, %v2587
    %v2711 = vsel %vm2704, %v2694, %v2589
    %v2712 = vsel %vm2704, %v2695, %v2591
    %v2713 = vsel %vm2704, %v2696, %v2593
    %v2714 = vsel %vm2704, %v2697, %v2595
    %v2715 = vsel %vm2704, %v2698, %v2597
    %v2716 = vsel %vm2704, %v2699, %v2599
    %v2717 = vsel %vm2704, %v2700, %v2601
    %v2718 = vsel %vm2704, %v2701, %v2603
    %v2719 = vsel %vm2704, %v2702, %v2605
    %v2720 = vsel %vm2704, %v2703, %v2607
    %vm2721 = vcmask 785408
    %v2722 = vsel %vm2721, %v2705, %v2641
    %v2723 = vsel %vm2721, %v2706, %v2643
    %v2724 = vsel %vm2721, %v2707, %v2645
    %v2725 = vsel %vm2721, %v2708, %v2647
    %v2726 = vsel %vm2721, %v2709, %v2649
    %v2727 = vsel %vm2721, %v2710, %v2651
    %v2728 = vsel %vm2721, %v2711, %v2653
    %v2729 = vsel %vm2721, %v2712, %v2655
    %v2730 = vsel %vm2721, %v2713, %v2657
    %v2731 = vsel %vm2721, %v2714, %v2659
    %v2732 = vsel %vm2721, %v2715, %v2661
    %v2733 = vsel %vm2721, %v2716, %v2663
    %v2734 = vsel %vm2721, %v2717, %v2665
    %v2735 = vsel %vm2721, %v2718, %v2667
    %v2736 = vsel %vm2721, %v2719, %v2669
    %v2737 = vsel %vm2721, %v2720, %v2671
    %v2738 = vpack.c.bf16 %v2723, %v2722
    %v2739 = vpack.c.bf16 %v2725, %v2724
    %v2740 = vpack.c.bf16 %v2727, %v2726
    %v2741 = vpack.c.bf16 %v2729, %v2728
    %v2742 = vpack.c.bf16 %v2731, %v2730
    %v2743 = vpack.c.bf16 %v2733, %v2732
    %v2744 = vpack.c.bf16 %v2735, %v2734
    %v2745 = vpack.c.bf16 %v2737, %v2736
    %v2746 = vld [vmem:[%s5] sm:$0xf]
    %v2747 = vld [vmem:[%s5 + $0x4] sm:$0xf]
    %v2748 = vld [vmem:[%s5 + $0x8] sm:$0xf]
    %v2749 = vld [vmem:[%s5 + $0xc] sm:$0xf]
    %v2750 = vld [vmem:[%s5 + $0x10] sm:$0xf]
    %v2751 = vld [vmem:[%s5 + $0x14] sm:$0xf]
    %v2752 = vld [vmem:[%s5 + $0x18] sm:$0xf]
    %v2753 = vld [vmem:[%s5 + $0x1c] sm:$0xf]
    %v2754 = vld [vmem:[%s5 + $0x20] sm:$0xf]
    %v2755 = vld [vmem:[%s5 + $0x24] sm:$0xf]
    %v2756 = vld [vmem:[%s5 + $0x28] sm:$0xf]
    %v2757 = vld [vmem:[%s5 + $0x2c] sm:$0xf]
    %v2758 = vld [vmem:[%s5 + $0x30] sm:$0xf]
    %v2759 = vld [vmem:[%s5 + $0x34] sm:$0xf]
    %v2760 = vld [vmem:[%s5 + $0x38] sm:$0xf]
    %v2761 = vld [vmem:[%s5 + $0x3c] sm:$0xf]
    %v2762 = vld [vmem:[%s6] sm:$0x1]
    %v2764 = vlaneseq
    %v2765 = vshrl.u32 %v2764, 7
    %v2766 = vsub.s32 0, %v2765
    %v2767 = vrot.slane %v2762, %v2766
    %v2785 = vunpack.c.l.b16 %v2746
    %v2786 = vunpack.c.l.b16 %v2747
    %v2787 = vunpack.c.l.b16 %v2748
    %v2788 = vunpack.c.l.b16 %v2749
    %v2789 = vunpack.c.l.b16 %v2750
    %v2790 = vunpack.c.l.b16 %v2751
    %v2791 = vunpack.c.l.b16 %v2752
    %v2792 = vunpack.c.l.b16 %v2753
    %v2793 = vunpack.c.l.b16 %v2754
    %v2794 = vunpack.c.l.b16 %v2755
    %v2795 = vunpack.c.l.b16 %v2756
    %v2796 = vunpack.c.l.b16 %v2757
    %v2797 = vunpack.c.l.b16 %v2758
    %v2798 = vunpack.c.l.b16 %v2759
    %v2799 = vunpack.c.l.b16 %v2760
    %v2800 = vunpack.c.l.b16 %v2761
    %v2801 = vpack.c.b16 %v2786, %v2785
    %v2802 = vpack.c.b16 %v2788, %v2787
    %v2803 = vpack.c.b16 %v2790, %v2789
    %v2804 = vpack.c.b16 %v2792, %v2791
    %v2805 = vpack.c.b16 %v2794, %v2793
    %v2806 = vpack.c.b16 %v2796, %v2795
    %v2807 = vpack.c.b16 %v2798, %v2797
    %v2808 = vpack.c.b16 %v2800, %v2799
    %2817 = vmatprep.subr.bf16.mxu0 0
    %2818 = vmatpush1.bf16.msra.mxu0 %v2801
    %2819 = vmatprep.subr.bf16.mxu0 0
    %2820 = vmatpush1.bf16.msra.mxu0 %v2802
    %2821 = vmatprep.subr.bf16.mxu0 0
    %2822 = vmatpush1.bf16.msra.mxu0 %v2803
    %2823 = vmatprep.subr.bf16.mxu0 0
    %2824 = vmatpush1.bf16.msra.mxu0 %v2804
    %2825 = vmatprep.subr.bf16.mxu0 0
    %2826 = vmatpush1.bf16.msra.mxu0 %v2805
    %2827 = vmatprep.subr.bf16.mxu0 0
    %2828 = vmatpush1.bf16.msra.mxu0 %v2806
    %2829 = vmatprep.subr.bf16.mxu0 0
    %2830 = vmatpush1.bf16.msra.mxu0 %v2807
    %2831 = vmatprep.subr.bf16.mxu0 0
    %2832 = vmatpush1.bf16.msra.mxu0 %v2808
    %2833 = vmatprep.subr.bf16.mxu0 0
    %2834 = vmatpush1.bf16.msra.mxu0 0
    %2835 = vmatprep.subr.bf16.mxu0 0
    %2836 = vmatpush1.bf16.msra.mxu0 0
    %2837 = vmatprep.subr.bf16.mxu0 0
    %2838 = vmatpush1.bf16.msra.mxu0 0
    %2839 = vmatprep.subr.bf16.mxu0 0
    %2840 = vmatpush1.bf16.msra.mxu0 0
    %2841 = vmatprep.subr.bf16.mxu0 0
    %2842 = vmatpush1.bf16.msra.mxu0 0
    %2843 = vmatprep.subr.bf16.mxu0 0
    %2844 = vmatpush1.bf16.msra.mxu0 0
    %2845 = vmatprep.subr.bf16.mxu0 0
    %2846 = vmatpush1.bf16.msra.mxu0 0
    %2847 = vmatprep.subr.bf16.mxu0 0
    %2848 = vmatpush1.bf16.msra.mxu0 0
    %2849 = vmatprep.mubr.bf16.mxu0 0
    %2850 = vmatmul.mubr.bf16.gmra.mrb[0].mxu0 %v2738
    %v2851 = vpop.f32.mrb[0].mxu0
    %v2852 = vadd.f32 %v2767, %v2851
    %v2853 = vpop.f32.mrb[0].mxu0
    %v2854 = vpop.f32.mrb[0].mxu0
    %v2855 = vadd.f32 %v2767, %v2854
    %v2856 = vpop.f32.mrb[0].mxu0
    %2857 = vmatprep.mubr.bf16.mxu0 0
    %2858 = vmatmul.mubr.bf16.gmra.mrb[0].mxu0 %v2739
    %v2859 = vpop.f32.mrb[0].mxu0
    %v2860 = vadd.f32 %v2767, %v2859
    %v2861 = vpop.f32.mrb[0].mxu0
    %v2862 = vpop.f32.mrb[0].mxu0
    %v2863 = vadd.f32 %v2767, %v2862
    %v2864 = vpop.f32.mrb[0].mxu0
    %2865 = vmatprep.mubr.bf16.mxu0 0
    %2866 = vmatmul.mubr.bf16.gmra.mrb[0].mxu0 %v2740
    %v2867 = vpop.f32.mrb[0].mxu0
    %v2868 = vadd.f32 %v2767, %v2867
    %v2869 = vpop.f32.mrb[0].mxu0
    %v2870 = vpop.f32.mrb[0].mxu0
    %v2871 = vadd.f32 %v2767, %v2870
    %v2872 = vpop.f32.mrb[0].mxu0
    %2873 = vmatprep.mubr.bf16.mxu0 0
    %2874 = vmatmul.mubr.bf16.gmra.mrb[0].mxu0 %v2741
    %v2875 = vpop.f32.mrb[0].mxu0
    %v2876 = vadd.f32 %v2767, %v2875
    %v2877 = vpop.f32.mrb[0].mxu0
    %v2878 = vpop.f32.mrb[0].mxu0
    %v2879 = vadd.f32 %v2767, %v2878
    %v2880 = vpop.f32.mrb[0].mxu0
    %2881 = vmatprep.mubr.bf16.mxu0 0
    %2882 = vmatmul.mubr.bf16.gmra.mrb[0].mxu0 %v2742
    %v2883 = vpop.f32.mrb[0].mxu0
    %v2884 = vadd.f32 %v2767, %v2883
    %v2885 = vpop.f32.mrb[0].mxu0
    %v2886 = vpop.f32.mrb[0].mxu0
    %v2887 = vadd.f32 %v2767, %v2886
    %v2888 = vpop.f32.mrb[0].mxu0
    %2889 = vmatprep.mubr.bf16.mxu0 0
    %2890 = vmatmul.mubr.bf16.gmra.mrb[0].mxu0 %v2743
    %v2891 = vpop.f32.mrb[0].mxu0
    %v2892 = vadd.f32 %v2767, %v2891
    %v2893 = vpop.f32.mrb[0].mxu0
    %v2894 = vpop.f32.mrb[0].mxu0
    %v2895 = vadd.f32 %v2767, %v2894
    %v2896 = vpop.f32.mrb[0].mxu0
    %2897 = vmatprep.mubr.bf16.mxu0 0
    %2898 = vmatmul.mubr.bf16.gmra.mrb[0].mxu0 %v2744
    %v2899 = vpop.f32.mrb[0].mxu0
    %v2900 = vadd.f32 %v2767, %v2899
    %v2901 = vpop.f32.mrb[0].mxu0
    %v2902 = vpop.f32.mrb[0].mxu0
    %v2903 = vadd.f32 %v2767, %v2902
    %v2904 = vpop.f32.mrb[0].mxu0
    %2905 = vmatprep.mubr.bf16.mxu0 0
    %2906 = vmatmul.mubr.bf16.gmra.mrb[0].mxu0 %v2745
    %v2907 = vpop.f32.mrb[0].mxu0
    %v2908 = vadd.f32 %v2767, %v2907
    %v2909 = vpop.f32.mrb[0].mxu0
    %v2910 = vpop.f32.mrb[0].mxu0
    %v2911 = vadd.f32 %v2767, %v2910
    %v2912 = vpop.f32.mrb[0].mxu0
    %2913 = vdwg.mxu0
    %v2914 = vld [vmem:[%s1] sm:$0xff]
    %v2915 = vld [vmem:[%s1 + $0x8] sm:$0xff]
    %v2916 = vld [vmem:[%s1 + $0x10] sm:$0xff]
    %v2917 = vld [vmem:[%s1 + $0x18] sm:$0xff]
    %v2918 = vld [vmem:[%s1 + $0x20] sm:$0xff]
    %v2919 = vld [vmem:[%s1 + $0x28] sm:$0xff]
    %v2920 = vld [vmem:[%s1 + $0x30] sm:$0xff]
    %v2921 = vld [vmem:[%s1 + $0x38] sm:$0xff]
    %v2922 = vld [vmem:[%s1 + $0x40] sm:$0xff]
    %v2923 = vld [vmem:[%s1 + $0x48] sm:$0xff]
    %v2924 = vld [vmem:[%s1 + $0x50] sm:$0xff]
    %v2925 = vld [vmem:[%s1 + $0x58] sm:$0xff]
    %v2926 = vld [vmem:[%s1 + $0x60] sm:$0xff]
    %v2927 = vld [vmem:[%s1 + $0x68] sm:$0xff]
    %v2928 = vld [vmem:[%s1 + $0x70] sm:$0xff]
    %v2929 = vld [vmem:[%s1 + $0x78] sm:$0xff]
    %v2930 = vadd.f32 %v2914, 1e-08
    %v2931 = vadd.f32 %v2915, 1e-08
    %v2932 = vadd.f32 %v2916, 1e-08
    %v2933 = vadd.f32 %v2917, 1e-08
    %v2934 = vadd.f32 %v2918, 1e-08
    %v2935 = vadd.f32 %v2919, 1e-08
    %v2936 = vadd.f32 %v2920, 1e-08
    %v2937 = vadd.f32 %v2921, 1e-08
    %v2938 = vadd.f32 %v2922, 1e-08
    %v2939 = vadd.f32 %v2923, 1e-08
    %v2940 = vadd.f32 %v2924, 1e-08
    %v2941 = vadd.f32 %v2925, 1e-08
    %v2942 = vadd.f32 %v2926, 1e-08
    %v2943 = vadd.f32 %v2927, 1e-08
    %v2944 = vadd.f32 %v2928, 1e-08
    %v2945 = vadd.f32 %v2929, 1e-08
    %v2946 = vlog2.pop %v2930
    %v2947 = vmul.f32 %v2946, 0.6931472
    %v2948 = vlog2.pop %v2931
    %v2949 = vmul.f32 %v2948, 0.6931472
    %v2950 = vlog2.pop %v2932
    %v2951 = vmul.f32 %v2950, 0.6931472
    %v2952 = vlog2.pop %v2933
    %v2953 = vmul.f32 %v2952, 0.6931472
    %v2954 = vlog2.pop %v2934
    %v2955 = vmul.f32 %v2954, 0.6931472
    %v2956 = vlog2.pop %v2935
    %v2957 = vmul.f32 %v2956, 0.6931472
    %v2958 = vlog2.pop %v2936
    %v2959 = vmul.f32 %v2958, 0.6931472
    %v2960 = vlog2.pop %v2937
    %v2961 = vmul.f32 %v2960, 0.6931472
    %v2962 = vlog2.pop %v2938
    %v2963 = vmul.f32 %v2962, 0.6931472
    %v2964 = vlog2.pop %v2939
    %v2965 = vmul.f32 %v2964, 0.6931472
    %v2966 = vlog2.pop %v2940
    %v2967 = vmul.f32 %v2966, 0.6931472
    %v2968 = vlog2.pop %v2941
    %v2969 = vmul.f32 %v2968, 0.6931472
    %v2970 = vlog2.pop %v2942
    %v2971 = vmul.f32 %v2970, 0.6931472
    %v2972 = vlog2.pop %v2943
    %v2973 = vmul.f32 %v2972, 0.6931472
    %v2974 = vlog2.pop %v2944
    %v2975 = vmul.f32 %v2974, 0.6931472
    %v2976 = vlog2.pop %v2945
    %v2977 = vmul.f32 %v2976, 0.6931472
    %v2978 = vadd.f32 %v2947, %v2852
    %v2979 = vadd.f32 %v2949, %v2855
    %v2980 = vadd.f32 %v2951, %v2860
    %v2981 = vadd.f32 %v2953, %v2863
    %v2982 = vadd.f32 %v2955, %v2868
    %v2983 = vadd.f32 %v2957, %v2871
    %v2984 = vadd.f32 %v2959, %v2876
    %v2985 = vadd.f32 %v2961, %v2879
    %v2986 = vadd.f32 %v2963, %v2884
    %v2987 = vadd.f32 %v2965, %v2887
    %v2988 = vadd.f32 %v2967, %v2892
    %v2989 = vadd.f32 %v2969, %v2895
    %v2990 = vadd.f32 %v2971, %v2900
    %v2991 = vadd.f32 %v2973, %v2903
    %v2992 = vadd.f32 %v2975, %v2908
    %v2993 = vadd.f32 %v2977, %v2911
    %vm2994 = vcmask 72704
    %v2995 = vsel %vm2994, %v2978, -inf
    %2996 = vmax.xlane.f32.xlu0 %v2995
    %v2997 = vpop.xlane.xlu0 %2996
    %v2998 = vsel %vm2994, %v2979, -inf
    %2999 = vmax.xlane.f32.xlu0 %v2998
    %v3000 = vpop.xlane.xlu0 %2999
    %v3001 = vsel %vm2994, %v2980, -inf
    %3002 = vmax.xlane.f32.xlu0 %v3001
    %v3003 = vpop.xlane.xlu0 %3002
    %v3004 = vsel %vm2994, %v2981, -inf
    %3005 = vmax.xlane.f32.xlu0 %v3004
    %v3006 = vpop.xlane.xlu0 %3005
    %v3007 = vsel %vm2994, %v2982, -inf
    %3008 = vmax.xlane.f32.xlu0 %v3007
    %v3009 = vpop.xlane.xlu0 %3008
    %v3010 = vsel %vm2994, %v2983, -inf
    %3011 = vmax.xlane.f32.xlu0 %v3010
    %v3012 = vpop.xlane.xlu0 %3011
    %v3013 = vsel %vm2994, %v2984, -inf
    %3014 = vmax.xlane.f32.xlu0 %v3013
    %v3015 = vpop.xlane.xlu0 %3014
    %v3016 = vsel %vm2994, %v2985, -inf
    %3017 = vmax.xlane.f32.xlu0 %v3016
    %v3018 = vpop.xlane.xlu0 %3017
    %v3019 = vsel %vm2994, %v2986, -inf
    %3020 = vmax.xlane.f32.xlu0 %v3019
    %v3021 = vpop.xlane.xlu0 %3020
    %v3022 = vsel %vm2994, %v2987, -inf
    %3023 = vmax.xlane.f32.xlu0 %v3022
    %v3024 = vpop.xlane.xlu0 %3023
    %v3025 = vsel %vm2994, %v2988, -inf
    %3026 = vmax.xlane.f32.xlu0 %v3025
    %v3027 = vpop.xlane.xlu0 %3026
    %v3028 = vsel %vm2994, %v2989, -inf
    %3029 = vmax.xlane.f32.xlu0 %v3028
    %v3030 = vpop.xlane.xlu0 %3029
    %v3031 = vsel %vm2994, %v2990, -inf
    %3032 = vmax.xlane.f32.xlu0 %v3031
    %v3033 = vpop.xlane.xlu0 %3032
    %v3034 = vsel %vm2994, %v2991, -inf
    %3035 = vmax.xlane.f32.xlu0 %v3034
    %v3036 = vpop.xlane.xlu0 %3035
    %v3037 = vsel %vm2994, %v2992, -inf
    %3038 = vmax.xlane.f32.xlu0 %v3037
    %v3039 = vpop.xlane.xlu0 %3038
    %v3040 = vsel %vm2994, %v2993, -inf
    %3041 = vmax.xlane.f32.xlu0 %v3040
    %v3042 = vpop.xlane.xlu0 %3041
    %v3043 = vsub.f32 %v2978, %v2997
    %v3044 = vsub.f32 %v2979, %v3000
    %v3045 = vsub.f32 %v2980, %v3003
    %v3046 = vsub.f32 %v2981, %v3006
    %v3047 = vsub.f32 %v2982, %v3009
    %v3048 = vsub.f32 %v2983, %v3012
    %v3049 = vsub.f32 %v2984, %v3015
    %v3050 = vsub.f32 %v2985, %v3018
    %v3051 = vsub.f32 %v2986, %v3021
    %v3052 = vsub.f32 %v2987, %v3024
    %v3053 = vsub.f32 %v2988, %v3027
    %v3054 = vsub.f32 %v2989, %v3030
    %v3055 = vsub.f32 %v2990, %v3033
    %v3056 = vsub.f32 %v2991, %v3036
    %v3057 = vsub.f32 %v2992, %v3039
    %v3058 = vsub.f32 %v2993, %v3042
    %v3059 = vmul.f32 %v3043, 1.442695
    %v3060 = vpow.pop %v3059
    %v3061 = vmul.f32 %v3044, 1.442695
    %v3062 = vpow.pop %v3061
    %v3063 = vmul.f32 %v3045, 1.442695
    %v3064 = vpow.pop %v3063
    %v3065 = vmul.f32 %v3046, 1.442695
    %v3066 = vpow.pop %v3065
    %v3067 = vmul.f32 %v3047, 1.442695
    %v3068 = vpow.pop %v3067
    %v3069 = vmul.f32 %v3048, 1.442695
    %v3070 = vpow.pop %v3069
    %v3071 = vmul.f32 %v3049, 1.442695
    %v3072 = vpow.pop %v3071
    %v3073 = vmul.f32 %v3050, 1.442695
    %v3074 = vpow.pop %v3073
    %v3075 = vmul.f32 %v3051, 1.442695
    %v3076 = vpow.pop %v3075
    %v3077 = vmul.f32 %v3052, 1.442695
    %v3078 = vpow.pop %v3077
    %v3079 = vmul.f32 %v3053, 1.442695
    %v3080 = vpow.pop %v3079
    %v3081 = vmul.f32 %v3054, 1.442695
    %v3082 = vpow.pop %v3081
    %v3083 = vmul.f32 %v3055, 1.442695
    %v3084 = vpow.pop %v3083
    %v3085 = vmul.f32 %v3056, 1.442695
    %v3086 = vpow.pop %v3085
    %v3087 = vmul.f32 %v3057, 1.442695
    %v3088 = vpow.pop %v3087
    %v3089 = vmul.f32 %v3058, 1.442695
    %v3090 = vpow.pop %v3089
    %v3091 = vsel %vm2994, %v3060, 0.0
    %3092 = vadd.xlane.f32.xlu0 %v3091
    %v3093 = vpop.xlane.xlu0 %3092
    %v3094 = vsel %vm2994, %v3062, 0.0
    %3095 = vadd.xlane.f32.xlu0 %v3094
    %v3096 = vpop.xlane.xlu0 %3095
    %v3097 = vsel %vm2994, %v3064, 0.0
    %3098 = vadd.xlane.f32.xlu0 %v3097
    %v3099 = vpop.xlane.xlu0 %3098
    %v3100 = vsel %vm2994, %v3066, 0.0
    %3101 = vadd.xlane.f32.xlu0 %v3100
    %v3102 = vpop.xlane.xlu0 %3101
    %v3103 = vsel %vm2994, %v3068, 0.0
    %3104 = vadd.xlane.f32.xlu0 %v3103
    %v3105 = vpop.xlane.xlu0 %3104
    %v3106 = vsel %vm2994, %v3070, 0.0
    %3107 = vadd.xlane.f32.xlu0 %v3106
    %v3108 = vpop.xlane.xlu0 %3107
    %v3109 = vsel %vm2994, %v3072, 0.0
    %3110 = vadd.xlane.f32.xlu0 %v3109
    %v3111 = vpop.xlane.xlu0 %3110
    %v3112 = vsel %vm2994, %v3074, 0.0
    %3113 = vadd.xlane.f32.xlu0 %v3112
    %v3114 = vpop.xlane.xlu0 %3113
    %v3115 = vsel %vm2994, %v3076, 0.0
    %3116 = vadd.xlane.f32.xlu0 %v3115
    %v3117 = vpop.xlane.xlu0 %3116
    %v3118 = vsel %vm2994, %v3078, 0.0
    %3119 = vadd.xlane.f32.xlu0 %v3118
    %v3120 = vpop.xlane.xlu0 %3119
    %v3121 = vsel %vm2994, %v3080, 0.0
    %3122 = vadd.xlane.f32.xlu0 %v3121
    %v3123 = vpop.xlane.xlu0 %3122
    %v3124 = vsel %vm2994, %v3082, 0.0
    %3125 = vadd.xlane.f32.xlu0 %v3124
    %v3126 = vpop.xlane.xlu0 %3125
    %v3127 = vsel %vm2994, %v3084, 0.0
    %3128 = vadd.xlane.f32.xlu0 %v3127
    %v3129 = vpop.xlane.xlu0 %3128
    %v3130 = vsel %vm2994, %v3086, 0.0
    %3131 = vadd.xlane.f32.xlu0 %v3130
    %v3132 = vpop.xlane.xlu0 %3131
    %v3133 = vsel %vm2994, %v3088, 0.0
    %3134 = vadd.xlane.f32.xlu0 %v3133
    %v3135 = vpop.xlane.xlu0 %3134
    %v3136 = vsel %vm2994, %v3090, 0.0
    %3137 = vadd.xlane.f32.xlu0 %v3136
    %v3138 = vpop.xlane.xlu0 %3137
    %v3139 = vrcp.pop %v3093
    %v3140 = vmul.f32 %v3060, %v3139
    %v3141 = vrcp.pop %v3096
    %v3142 = vmul.f32 %v3062, %v3141
    %v3143 = vrcp.pop %v3099
    %v3144 = vmul.f32 %v3064, %v3143
    %v3145 = vrcp.pop %v3102
    %v3146 = vmul.f32 %v3066, %v3145
    %v3147 = vrcp.pop %v3105
    %v3148 = vmul.f32 %v3068, %v3147
    %v3149 = vrcp.pop %v3108
    %v3150 = vmul.f32 %v3070, %v3149
    %v3151 = vrcp.pop %v3111
    %v3152 = vmul.f32 %v3072, %v3151
    %v3153 = vrcp.pop %v3114
    %v3154 = vmul.f32 %v3074, %v3153
    %v3155 = vrcp.pop %v3117
    %v3156 = vmul.f32 %v3076, %v3155
    %v3157 = vrcp.pop %v3120
    %v3158 = vmul.f32 %v3078, %v3157
    %v3159 = vrcp.pop %v3123
    %v3160 = vmul.f32 %v3080, %v3159
    %v3161 = vrcp.pop %v3126
    %v3162 = vmul.f32 %v3082, %v3161
    %v3163 = vrcp.pop %v3129
    %v3164 = vmul.f32 %v3084, %v3163
    %v3165 = vrcp.pop %v3132
    %v3166 = vmul.f32 %v3086, %v3165
    %v3167 = vrcp.pop %v3135
    %v3168 = vmul.f32 %v3088, %v3167
    %v3169 = vrcp.pop %v3138
    %v3170 = vmul.f32 %v3090, %v3169
    %v3171 = vld [vmem:[%s2] sm:$0xff]
    %v3172 = vld [vmem:[%s2 + $0x8] sm:$0xff]
    %v3173 = vld [vmem:[%s2 + $0x10] sm:$0xff]
    %v3174 = vld [vmem:[%s2 + $0x18] sm:$0xff]
    %v3175 = vld [vmem:[%s2 + $0x20] sm:$0xff]
    %v3176 = vld [vmem:[%s2 + $0x28] sm:$0xff]
    %v3177 = vld [vmem:[%s2 + $0x30] sm:$0xff]
    %v3178 = vld [vmem:[%s2 + $0x38] sm:$0xff]
    %v3179 = vld [vmem:[%s2 + $0x40] sm:$0xff]
    %v3180 = vld [vmem:[%s2 + $0x48] sm:$0xff]
    %v3181 = vld [vmem:[%s2 + $0x50] sm:$0xff]
    %v3182 = vld [vmem:[%s2 + $0x58] sm:$0xff]
    %v3183 = vld [vmem:[%s2 + $0x60] sm:$0xff]
    %v3184 = vld [vmem:[%s2 + $0x68] sm:$0xff]
    %v3185 = vld [vmem:[%s2 + $0x70] sm:$0xff]
    %v3186 = vld [vmem:[%s2 + $0x78] sm:$0xff]
    %3188 = vset.pattern.permute.xlu0 0
    %3189 = vperm.xlu0 %3188, %v3171
    %v3190 = vpop.permute.xlu0 %3189
    %3193 = vset.pattern.permute.xlu0 0
    %3194 = vperm.xlu0 %3193, %v3172
    %v3195 = vpop.permute.xlu0 %3194
    %3198 = vset.pattern.permute.xlu0 0
    %3199 = vperm.xlu0 %3198, %v3173
    %v3200 = vpop.permute.xlu0 %3199
    %3203 = vset.pattern.permute.xlu0 0
    %3204 = vperm.xlu0 %3203, %v3174
    %v3205 = vpop.permute.xlu0 %3204
    %3208 = vset.pattern.permute.xlu0 0
    %3209 = vperm.xlu0 %3208, %v3175
    %v3210 = vpop.permute.xlu0 %3209
    %3213 = vset.pattern.permute.xlu0 0
    %3214 = vperm.xlu0 %3213, %v3176
    %v3215 = vpop.permute.xlu0 %3214
    %3218 = vset.pattern.permute.xlu0 0
    %3219 = vperm.xlu0 %3218, %v3177
    %v3220 = vpop.permute.xlu0 %3219
    %3223 = vset.pattern.permute.xlu0 0
    %3224 = vperm.xlu0 %3223, %v3178
    %v3225 = vpop.permute.xlu0 %3224
    %3228 = vset.pattern.permute.xlu0 0
    %3229 = vperm.xlu0 %3228, %v3179
    %v3230 = vpop.permute.xlu0 %3229
    %3233 = vset.pattern.permute.xlu0 0
    %3234 = vperm.xlu0 %3233, %v3180
    %v3235 = vpop.permute.xlu0 %3234
    %3238 = vset.pattern.permute.xlu0 0
    %3239 = vperm.xlu0 %3238, %v3181
    %v3240 = vpop.permute.xlu0 %3239
    %3243 = vset.pattern.permute.xlu0 0
    %3244 = vperm.xlu0 %3243, %v3182
    %v3245 = vpop.permute.xlu0 %3244
    %3248 = vset.pattern.permute.xlu0 0
    %3249 = vperm.xlu0 %3248, %v3183
    %v3250 = vpop.permute.xlu0 %3249
    %3253 = vset.pattern.permute.xlu0 0
    %3254 = vperm.xlu0 %3253, %v3184
    %v3255 = vpop.permute.xlu0 %3254
    %3258 = vset.pattern.permute.xlu0 0
    %3259 = vperm.xlu0 %3258, %v3185
    %v3260 = vpop.permute.xlu0 %3259
    %3263 = vset.pattern.permute.xlu0 0
    %3264 = vperm.xlu0 %3263, %v3186
    %v3265 = vpop.permute.xlu0 %3264
    %v3267 = vmul.f32 %v3140, %v3190
    %v3268 = vmul.f32 %v3142, %v3195
    %v3269 = vmul.f32 %v3144, %v3200
    %v3270 = vmul.f32 %v3146, %v3205
    %v3271 = vmul.f32 %v3148, %v3210
    %v3272 = vmul.f32 %v3150, %v3215
    %v3273 = vmul.f32 %v3152, %v3220
    %v3274 = vmul.f32 %v3154, %v3225
    %v3275 = vmul.f32 %v3156, %v3230
    %v3276 = vmul.f32 %v3158, %v3235
    %v3277 = vmul.f32 %v3160, %v3240
    %v3278 = vmul.f32 %v3162, %v3245
    %v3279 = vmul.f32 %v3164, %v3250
    %v3280 = vmul.f32 %v3166, %v3255
    %v3281 = vmul.f32 %v3168, %v3260
    %v3282 = vmul.f32 %v3170, %v3265
    %v3283 = vsel %vm2994, %v3267, 0.0
    %v3284 = vsel %vm2994, %v3268, 0.0
    %v3285 = vadd.f32 %v3283, %v3284
    %v3286 = vsel %vm2994, %v3269, 0.0
    %v3287 = vadd.f32 %v3285, %v3286
    %v3288 = vsel %vm2994, %v3270, 0.0
    %v3289 = vadd.f32 %v3287, %v3288
    %v3290 = vsel %vm2994, %v3271, 0.0
    %v3291 = vadd.f32 %v3289, %v3290
    %v3292 = vsel %vm2994, %v3272, 0.0
    %v3293 = vadd.f32 %v3291, %v3292
    %v3294 = vsel %vm2994, %v3273, 0.0
    %v3295 = vadd.f32 %v3293, %v3294
    %v3296 = vsel %vm2994, %v3274, 0.0
    %v3297 = vadd.f32 %v3295, %v3296
    %v3298 = vsel %vm2994, %v3275, 0.0
    %v3299 = vadd.f32 %v3297, %v3298
    %v3300 = vsel %vm2994, %v3276, 0.0
    %v3301 = vadd.f32 %v3299, %v3300
    %v3302 = vsel %vm2994, %v3277, 0.0
    %v3303 = vadd.f32 %v3301, %v3302
    %v3304 = vsel %vm2994, %v3278, 0.0
    %v3305 = vadd.f32 %v3303, %v3304
    %v3306 = vsel %vm2994, %v3279, 0.0
    %v3307 = vadd.f32 %v3305, %v3306
    %v3308 = vsel %vm2994, %v3280, 0.0
    %v3309 = vadd.f32 %v3307, %v3308
    %v3310 = vsel %vm2994, %v3281, 0.0
    %v3311 = vadd.f32 %v3309, %v3310
    %v3312 = vsel %vm2994, %v3282, 0.0
    %v3313 = vadd.f32 %v3311, %v3312
    %v3314 = vrot.slane %v3313, 4
    %v3315 = vadd.f32 %v3313, %v3314
    %v3316 = vrot.slane %v3315, 2
    %v3317 = vadd.f32 %v3315, %v3316
    %v3318 = vrot.slane %v3317, 1
    %v3319 = vadd.f32 %v3317, %v3318
    %vm3320 = vcmask 7168
    %v3321 = vsel %vm3320, %v3171, 0.0
    %v3322 = vsel %vm3320, %v3172, 0.0
    %v3323 = vadd.f32 %v3321, %v3322
    %v3324 = vsel %vm3320, %v3173, 0.0
    %v3325 = vadd.f32 %v3323, %v3324
    %v3326 = vsel %vm3320, %v3174, 0.0
    %v3327 = vadd.f32 %v3325, %v3326
    %v3328 = vsel %vm3320, %v3175, 0.0
    %v3329 = vadd.f32 %v3327, %v3328
    %v3330 = vsel %vm3320, %v3176, 0.0
    %v3331 = vadd.f32 %v3329, %v3330
    %v3332 = vsel %vm3320, %v3177, 0.0
    %v3333 = vadd.f32 %v3331, %v3332
    %v3334 = vsel %vm3320, %v3178, 0.0
    %v3335 = vadd.f32 %v3333, %v3334
    %v3336 = vsel %vm3320, %v3179, 0.0
    %v3337 = vadd.f32 %v3335, %v3336
    %v3338 = vsel %vm3320, %v3180, 0.0
    %v3339 = vadd.f32 %v3337, %v3338
    %v3340 = vsel %vm3320, %v3181, 0.0
    %v3341 = vadd.f32 %v3339, %v3340
    %v3342 = vsel %vm3320, %v3182, 0.0
    %v3343 = vadd.f32 %v3341, %v3342
    %v3344 = vsel %vm3320, %v3183, 0.0
    %v3345 = vadd.f32 %v3343, %v3344
    %v3346 = vsel %vm3320, %v3184, 0.0
    %v3347 = vadd.f32 %v3345, %v3346
    %v3348 = vsel %vm3320, %v3185, 0.0
    %v3349 = vadd.f32 %v3347, %v3348
    %v3350 = vsel %vm3320, %v3186, 0.0
    %v3351 = vadd.f32 %v3349, %v3350
    %v3352 = vrot.slane %v3351, 4
    %v3353 = vadd.f32 %v3351, %v3352
    %v3354 = vrot.slane %v3353, 2
    %v3355 = vadd.f32 %v3353, %v3354
    %v3356 = vrot.slane %v3355, 1
    %v3357 = vadd.f32 %v3355, %v3356
    %3359 = vset.pattern.permute.xlu0 0
    %3360 = vperm.xlu0 %3359, %v3357
    %v3361 = vpop.permute.xlu0 %3360
    %v3363 = vrcp.pop %v3361
    %v3364 = vmul.f32 %v3319, %v3363
    %vm3365 = vcmask 65536
    %3366 = vst.msk [vmem:[#allocation3] sm:$0x1] %vm3365, %v3364
    %v3367 = vld [vmem:[#allocation2 + $0xc0] sm:$0xff]
    %v3368 = vld [vmem:[#allocation2 + $0xd8] sm:$0xff]
    %v3369 = vld [vmem:[#allocation2 + $0xf0] sm:$0xff]
    %v3370 = vld [vmem:[#allocation2 + $0x108] sm:$0xff]
    %v3371 = vld [vmem:[#allocation2 + $0x120] sm:$0xff]
    %v3372 = vld [vmem:[#allocation2 + $0x138] sm:$0xff]
    %v3373 = vld [vmem:[#allocation2 + $0x150] sm:$0xff]
    %v3374 = vld [vmem:[#allocation2 + $0x168] sm:$0xff]
    %v3375 = vld [vmem:[#allocation2 + $0xc8] sm:$0xff]
    %v3376 = vld [vmem:[#allocation2 + $0xe0] sm:$0xff]
    %v3377 = vld [vmem:[#allocation2 + $0xf8] sm:$0xff]
    %v3378 = vld [vmem:[#allocation2 + $0x110] sm:$0xff]
    %v3379 = vld [vmem:[#allocation2 + $0x128] sm:$0xff]
    %v3380 = vld [vmem:[#allocation2 + $0x140] sm:$0xff]
    %v3381 = vld [vmem:[#allocation2 + $0x158] sm:$0xff]
    %v3382 = vld [vmem:[#allocation2 + $0x170] sm:$0xff]
    %v3383 = vld [vmem:[#allocation2 + $0xd0] sm:$0xff]
    %v3384 = vld [vmem:[#allocation2 + $0xe8] sm:$0xff]
    %v3385 = vld [vmem:[#allocation2 + $0x100] sm:$0xff]
    %v3386 = vld [vmem:[#allocation2 + $0x118] sm:$0xff]
    %v3387 = vld [vmem:[#allocation2 + $0x130] sm:$0xff]
    %v3388 = vld [vmem:[#allocation2 + $0x148] sm:$0xff]
    %v3389 = vld [vmem:[#allocation2 + $0x160] sm:$0xff]
    %v3390 = vld [vmem:[#allocation2 + $0x178] sm:$0xff]
    %v3392 = vsel %vm727, %v3367, 0
    %v3395 = vsel %vm727, %v3368, 0
    %v3398 = vsel %vm727, %v3369, 0
    %v3401 = vsel %vm727, %v3370, 0
    %v3404 = vsel %vm727, %v3371, 0
    %v3407 = vsel %vm727, %v3372, 0
    %v3410 = vsel %vm727, %v3373, 0
    %v3413 = vsel %vm727, %v3374, 0
    %v3416 = vsel %vm727, %v3375, 0
    %v3419 = vsel %vm727, %v3376, 0
    %v3422 = vsel %vm727, %v3377, 0
    %v3425 = vsel %vm727, %v3378, 0
    %v3428 = vsel %vm727, %v3379, 0
    %v3431 = vsel %vm727, %v3380, 0
    %v3434 = vsel %vm727, %v3381, 0
    %v3437 = vsel %vm727, %v3382, 0
    %3439 = vmatprep.subr.bf16.mxu0 0
    %3440 = vmatpush1.bf16.xpose.msra.mxu0 %v3416
    %3441 = vmatprep.subr.bf16.mxu0 0
    %3442 = vmatpush1.bf16.xpose.msra.mxu0 %v3419
    %3443 = vmatprep.subr.bf16.mxu0 0
    %3444 = vmatpush1.bf16.xpose.msra.mxu0 %v3422
    %3445 = vmatprep.subr.bf16.mxu0 0
    %3446 = vmatpush1.bf16.xpose.msra.mxu0 %v3425
    %3447 = vmatprep.subr.bf16.mxu0 0
    %3448 = vmatpush1.bf16.xpose.msra.mxu0 %v3428
    %3449 = vmatprep.subr.bf16.mxu0 0
    %3450 = vmatpush1.bf16.xpose.msra.mxu0 %v3431
    %3451 = vmatprep.subr.bf16.mxu0 0
    %3452 = vmatpush1.bf16.xpose.msra.mxu0 %v3434
    %3453 = vmatprep.subr.bf16.mxu0 0
    %3454 = vmatpush1.bf16.xpose.msra.mxu0 %v3437
    %3455 = vmatprep.subr.bf16.mxu0 0
    %3456 = vmatpush1.bf16.xpose.msra.mxu0 0
    %3457 = vmatprep.subr.bf16.mxu0 0
    %3458 = vmatpush1.bf16.xpose.msra.mxu0 0
    %3459 = vmatprep.subr.bf16.mxu0 0
    %3460 = vmatpush1.bf16.xpose.msra.mxu0 0
    %3461 = vmatprep.subr.bf16.mxu0 0
    %3462 = vmatpush1.bf16.xpose.msra.mxu0 0
    %3463 = vmatprep.subr.bf16.mxu0 0
    %3464 = vmatpush1.bf16.xpose.msra.mxu0 0
    %3465 = vmatprep.subr.bf16.mxu0 0
    %3466 = vmatpush1.bf16.xpose.msra.mxu0 0
    %3467 = vmatprep.subr.bf16.mxu0 0
    %3468 = vmatpush1.bf16.xpose.msra.mxu0 0
    %3469 = vmatprep.subr.bf16.mxu0 0
    %3470 = vmatpush1.bf16.xpose.msra.mxu0 0
    %3471 = vmatprep.mubr.bf16.mxu0 0
    %3472 = vmatmul.mubr.bf16.gmra.mrb[0].mxu0 %v3392
    %v3473 = vpop.f32.mrb[0].mxu0
    %v3474 = vadd.f32 0.0, %v3473
    %v3475 = vpop.f32.mrb[0].mxu0
    %v3476 = vpop.f32.mrb[0].mxu0
    %v3477 = vadd.f32 0.0, %v3476
    %v3478 = vpop.f32.mrb[0].mxu0
    %3479 = vmatprep.mubr.bf16.mxu0 0
    %3480 = vmatmul.mubr.bf16.gmra.mrb[0].mxu0 %v3395
    %v3481 = vpop.f32.mrb[0].mxu0
    %v3482 = vadd.f32 0.0, %v3481
    %v3483 = vpop.f32.mrb[0].mxu0
    %v3484 = vpop.f32.mrb[0].mxu0
    %v3485 = vadd.f32 0.0, %v3484
    %v3486 = vpop.f32.mrb[0].mxu0
    %3487 = vmatprep.mubr.bf16.mxu0 0
    %3488 = vmatmul.mubr.bf16.gmra.mrb[0].mxu0 %v3398
    %v3489 = vpop.f32.mrb[0].mxu0
    %v3490 = vadd.f32 0.0, %v3489
    %v3491 = vpop.f32.mrb[0].mxu0
    %v3492 = vpop.f32.mrb[0].mxu0
    %v3493 = vadd.f32 0.0, %v3492
    %v3494 = vpop.f32.mrb[0].mxu0
    %3495 = vmatprep.mubr.bf16.mxu0 0
    %3496 = vmatmul.mubr.bf16.gmra.mrb[0].mxu0 %v3401
    %v3497 = vpop.f32.mrb[0].mxu0
    %v3498 = vadd.f32 0.0, %v3497
    %v3499 = vpop.f32.mrb[0].mxu0
    %v3500 = vpop.f32.mrb[0].mxu0
    %v3501 = vadd.f32 0.0, %v3500
    %v3502 = vpop.f32.mrb[0].mxu0
    %3503 = vmatprep.mubr.bf16.mxu0 0
    %3504 = vmatmul.mubr.bf16.gmra.mrb[0].mxu0 %v3404
    %v3505 = vpop.f32.mrb[0].mxu0
    %v3506 = vadd.f32 0.0, %v3505
    %v3507 = vpop.f32.mrb[0].mxu0
    %v3508 = vpop.f32.mrb[0].mxu0
    %v3509 = vadd.f32 0.0, %v3508
    %v3510 = vpop.f32.mrb[0].mxu0
    %3511 = vmatprep.mubr.bf16.mxu0 0
    %3512 = vmatmul.mubr.bf16.gmra.mrb[0].mxu0 %v3407
    %v3513 = vpop.f32.mrb[0].mxu0
    %v3514 = vadd.f32 0.0, %v3513
    %v3515 = vpop.f32.mrb[0].mxu0
    %v3516 = vpop.f32.mrb[0].mxu0
    %v3517 = vadd.f32 0.0, %v3516
    %v3518 = vpop.f32.mrb[0].mxu0
    %3519 = vmatprep.mubr.bf16.mxu0 0
    %3520 = vmatmul.mubr.bf16.gmra.mrb[0].mxu0 %v3410
    %v3521 = vpop.f32.mrb[0].mxu0
    %v3522 = vadd.f32 0.0, %v3521
    %v3523 = vpop.f32.mrb[0].mxu0
    %v3524 = vpop.f32.mrb[0].mxu0
    %v3525 = vadd.f32 0.0, %v3524
    %v3526 = vpop.f32.mrb[0].mxu0
    %3527 = vmatprep.mubr.bf16.mxu0 0
    %3528 = vmatmul.mubr.bf16.gmra.mrb[0].mxu0 %v3413
    %v3529 = vpop.f32.mrb[0].mxu0
    %v3530 = vadd.f32 0.0, %v3529
    %v3531 = vpop.f32.mrb[0].mxu0
    %v3532 = vpop.f32.mrb[0].mxu0
    %v3533 = vadd.f32 0.0, %v3532
    %v3534 = vpop.f32.mrb[0].mxu0
    %3535 = vdwg.mxu0
    %3536 = vmax.xlane.f32.xlu0 %v3474
    %v3537 = vpop.xlane.xlu0 %3536
    %3538 = vmax.xlane.f32.xlu0 %v3477
    %v3539 = vpop.xlane.xlu0 %3538
    %3540 = vmax.xlane.f32.xlu0 %v3482
    %v3541 = vpop.xlane.xlu0 %3540
    %3542 = vmax.xlane.f32.xlu0 %v3485
    %v3543 = vpop.xlane.xlu0 %3542
    %3544 = vmax.xlane.f32.xlu0 %v3490
    %v3545 = vpop.xlane.xlu0 %3544
    %3546 = vmax.xlane.f32.xlu0 %v3493
    %v3547 = vpop.xlane.xlu0 %3546
    %3548 = vmax.xlane.f32.xlu0 %v3498
    %v3549 = vpop.xlane.xlu0 %3548
    %3550 = vmax.xlane.f32.xlu0 %v3501
    %v3551 = vpop.xlane.xlu0 %3550
    %3552 = vmax.xlane.f32.xlu0 %v3506
    %v3553 = vpop.xlane.xlu0 %3552
    %3554 = vmax.xlane.f32.xlu0 %v3509
    %v3555 = vpop.xlane.xlu0 %3554
    %3556 = vmax.xlane.f32.xlu0 %v3514
    %v3557 = vpop.xlane.xlu0 %3556
    %3558 = vmax.xlane.f32.xlu0 %v3517
    %v3559 = vpop.xlane.xlu0 %3558
    %3560 = vmax.xlane.f32.xlu0 %v3522
    %v3561 = vpop.xlane.xlu0 %3560
    %3562 = vmax.xlane.f32.xlu0 %v3525
    %v3563 = vpop.xlane.xlu0 %3562
    %3564 = vmax.xlane.f32.xlu0 %v3530
    %v3565 = vpop.xlane.xlu0 %3564
    %3566 = vmax.xlane.f32.xlu0 %v3533
    %v3567 = vpop.xlane.xlu0 %3566
    %v3568 = vsub.f32 %v3474, %v3537
    %v3569 = vsub.f32 %v3477, %v3539
    %v3570 = vsub.f32 %v3482, %v3541
    %v3571 = vsub.f32 %v3485, %v3543
    %v3572 = vsub.f32 %v3490, %v3545
    %v3573 = vsub.f32 %v3493, %v3547
    %v3574 = vsub.f32 %v3498, %v3549
    %v3575 = vsub.f32 %v3501, %v3551
    %v3576 = vsub.f32 %v3506, %v3553
    %v3577 = vsub.f32 %v3509, %v3555
    %v3578 = vsub.f32 %v3514, %v3557
    %v3579 = vsub.f32 %v3517, %v3559
    %v3580 = vsub.f32 %v3522, %v3561
    %v3581 = vsub.f32 %v3525, %v3563
    %v3582 = vsub.f32 %v3530, %v3565
    %v3583 = vsub.f32 %v3533, %v3567
    %v3584 = vmul.f32 %v3568, 1.442695
    %v3585 = vpow.pop %v3584
    %v3586 = vmul.f32 %v3569, 1.442695
    %v3587 = vpow.pop %v3586
    %v3588 = vmul.f32 %v3570, 1.442695
    %v3589 = vpow.pop %v3588
    %v3590 = vmul.f32 %v3571, 1.442695
    %v3591 = vpow.pop %v3590
    %v3592 = vmul.f32 %v3572, 1.442695
    %v3593 = vpow.pop %v3592
    %v3594 = vmul.f32 %v3573, 1.442695
    %v3595 = vpow.pop %v3594
    %v3596 = vmul.f32 %v3574, 1.442695
    %v3597 = vpow.pop %v3596
    %v3598 = vmul.f32 %v3575, 1.442695
    %v3599 = vpow.pop %v3598
    %v3600 = vmul.f32 %v3576, 1.442695
    %v3601 = vpow.pop %v3600
    %v3602 = vmul.f32 %v3577, 1.442695
    %v3603 = vpow.pop %v3602
    %v3604 = vmul.f32 %v3578, 1.442695
    %v3605 = vpow.pop %v3604
    %v3606 = vmul.f32 %v3579, 1.442695
    %v3607 = vpow.pop %v3606
    %v3608 = vmul.f32 %v3580, 1.442695
    %v3609 = vpow.pop %v3608
    %v3610 = vmul.f32 %v3581, 1.442695
    %v3611 = vpow.pop %v3610
    %v3612 = vmul.f32 %v3582, 1.442695
    %v3613 = vpow.pop %v3612
    %v3614 = vmul.f32 %v3583, 1.442695
    %v3615 = vpow.pop %v3614
    %3616 = vadd.xlane.f32.xlu0 %v3585
    %v3617 = vpop.xlane.xlu0 %3616
    %3618 = vadd.xlane.f32.xlu0 %v3587
    %v3619 = vpop.xlane.xlu0 %3618
    %3620 = vadd.xlane.f32.xlu0 %v3589
    %v3621 = vpop.xlane.xlu0 %3620
    %3622 = vadd.xlane.f32.xlu0 %v3591
    %v3623 = vpop.xlane.xlu0 %3622
    %3624 = vadd.xlane.f32.xlu0 %v3593
    %v3625 = vpop.xlane.xlu0 %3624
    %3626 = vadd.xlane.f32.xlu0 %v3595
    %v3627 = vpop.xlane.xlu0 %3626
    %3628 = vadd.xlane.f32.xlu0 %v3597
    %v3629 = vpop.xlane.xlu0 %3628
    %3630 = vadd.xlane.f32.xlu0 %v3599
    %v3631 = vpop.xlane.xlu0 %3630
    %3632 = vadd.xlane.f32.xlu0 %v3601
    %v3633 = vpop.xlane.xlu0 %3632
    %3634 = vadd.xlane.f32.xlu0 %v3603
    %v3635 = vpop.xlane.xlu0 %3634
    %3636 = vadd.xlane.f32.xlu0 %v3605
    %v3637 = vpop.xlane.xlu0 %3636
    %3638 = vadd.xlane.f32.xlu0 %v3607
    %v3639 = vpop.xlane.xlu0 %3638
    %3640 = vadd.xlane.f32.xlu0 %v3609
    %v3641 = vpop.xlane.xlu0 %3640
    %3642 = vadd.xlane.f32.xlu0 %v3611
    %v3643 = vpop.xlane.xlu0 %3642
    %3644 = vadd.xlane.f32.xlu0 %v3613
    %v3645 = vpop.xlane.xlu0 %3644
    %3646 = vadd.xlane.f32.xlu0 %v3615
    %v3647 = vpop.xlane.xlu0 %3646
    %v3648 = vrcp.pop %v3617
    %v3649 = vrcp.pop %v3619
    %v3650 = vrcp.pop %v3621
    %v3651 = vrcp.pop %v3623
    %v3652 = vrcp.pop %v3625
    %v3653 = vrcp.pop %v3627
    %v3654 = vrcp.pop %v3629
    %v3655 = vrcp.pop %v3631
    %v3656 = vrcp.pop %v3633
    %v3657 = vrcp.pop %v3635
    %v3658 = vrcp.pop %v3637
    %v3659 = vrcp.pop %v3639
    %v3660 = vrcp.pop %v3641
    %v3661 = vrcp.pop %v3643
    %v3662 = vrcp.pop %v3645
    %v3663 = vrcp.pop %v3647
    %v3664 = vmul.f32 %v3585, %v3648
    %v3665 = vmul.f32 %v3587, %v3649
    %v3666 = vmul.f32 %v3589, %v3650
    %v3667 = vmul.f32 %v3591, %v3651
    %v3668 = vmul.f32 %v3593, %v3652
    %v3669 = vmul.f32 %v3595, %v3653
    %v3670 = vmul.f32 %v3597, %v3654
    %v3671 = vmul.f32 %v3599, %v3655
    %v3672 = vmul.f32 %v3601, %v3656
    %v3673 = vmul.f32 %v3603, %v3657
    %v3674 = vmul.f32 %v3605, %v3658
    %v3675 = vmul.f32 %v3607, %v3659
    %v3676 = vmul.f32 %v3609, %v3660
    %v3677 = vmul.f32 %v3611, %v3661
    %v3678 = vmul.f32 %v3613, %v3662
    %v3679 = vmul.f32 %v3615, %v3663
    %v3680 = vpack.c.bf16 %v3665, %v3664
    %v3681 = vpack.c.bf16 %v3667, %v3666
    %v3682 = vpack.c.bf16 %v3669, %v3668
    %v3683 = vpack.c.bf16 %v3671, %v3670
    %v3684 = vpack.c.bf16 %v3673, %v3672
    %v3685 = vpack.c.bf16 %v3675, %v3674
    %v3686 = vpack.c.bf16 %v3677, %v3676
    %v3687 = vpack.c.bf16 %v3679, %v3678
    %3688 = vmatprep.subr.bf16.mxu0 0
    %3689 = vmatpush1.bf16.msra.mxu0 %v3383
    %3690 = vmatprep.subr.bf16.mxu0 0
    %3691 = vmatpush1.bf16.msra.mxu0 %v3384
    %3692 = vmatprep.subr.bf16.mxu0 0
    %3693 = vmatpush1.bf16.msra.mxu0 %v3385
    %3694 = vmatprep.subr.bf16.mxu0 0
    %3695 = vmatpush1.bf16.msra.mxu0 %v3386
    %3696 = vmatprep.subr.bf16.mxu0 0
    %3697 = vmatpush1.bf16.msra.mxu0 %v3387
    %3698 = vmatprep.subr.bf16.mxu0 0
    %3699 = vmatpush1.bf16.msra.mxu0 %v3388
    %3700 = vmatprep.subr.bf16.mxu0 0
    %3701 = vmatpush1.bf16.msra.mxu0 %v3389
    %3702 = vmatprep.subr.bf16.mxu0 0
    %3703 = vmatpush1.bf16.msra.mxu0 %v3390
    %3704 = vmatprep.subr.bf16.mxu0 0
    %3705 = vmatpush1.bf16.msra.mxu0 0
    %3706 = vmatprep.subr.bf16.mxu0 0
    %3707 = vmatpush1.bf16.msra.mxu0 0
    %3708 = vmatprep.subr.bf16.mxu0 0
    %3709 = vmatpush1.bf16.msra.mxu0 0
    %3710 = vmatprep.subr.bf16.mxu0 0
    %3711 = vmatpush1.bf16.msra.mxu0 0
    %3712 = vmatprep.subr.bf16.mxu0 0
    %3713 = vmatpush1.bf16.msra.mxu0 0
    %3714 = vmatprep.subr.bf16.mxu0 0
    %3715 = vmatpush1.bf16.msra.mxu0 0
    %3716 = vmatprep.subr.bf16.mxu0 0
    %3717 = vmatpush1.bf16.msra.mxu0 0
    %3718 = vmatprep.subr.bf16.mxu0 0
    %3719 = vmatpush1.bf16.msra.mxu0 0
    %3720 = vmatprep.mubr.bf16.mxu0 0
    %3721 = vmatmul.mubr.bf16.gmra.mrb[0].mxu0 %v3680
    %v3722 = vpop.f32.mrb[0].mxu0
    %v3723 = vadd.f32 0.0, %v3722
    %v3724 = vpop.f32.mrb[0].mxu0
    %v3725 = vpop.f32.mrb[0].mxu0
    %v3726 = vadd.f32 0.0, %v3725
    %v3727 = vpop.f32.mrb[0].mxu0
    %3728 = vmatprep.mubr.bf16.mxu0 0
    %3729 = vmatmul.mubr.bf16.gmra.mrb[0].mxu0 %v3681
    %v3730 = vpop.f32.mrb[0].mxu0
    %v3731 = vadd.f32 0.0, %v3730
    %v3732 = vpop.f32.mrb[0].mxu0
    %v3733 = vpop.f32.mrb[0].mxu0
    %v3734 = vadd.f32 0.0, %v3733
    %v3735 = vpop.f32.mrb[0].mxu0
    %3736 = vmatprep.mubr.bf16.mxu0 0
    %3737 = vmatmul.mubr.bf16.gmra.mrb[0].mxu0 %v3682
    %v3738 = vpop.f32.mrb[0].mxu0
    %v3739 = vadd.f32 0.0, %v3738
    %v3740 = vpop.f32.mrb[0].mxu0
    %v3741 = vpop.f32.mrb[0].mxu0
    %v3742 = vadd.f32 0.0, %v3741
    %v3743 = vpop.f32.mrb[0].mxu0
    %3744 = vmatprep.mubr.bf16.mxu0 0
    %3745 = vmatmul.mubr.bf16.gmra.mrb[0].mxu0 %v3683
    %v3746 = vpop.f32.mrb[0].mxu0
    %v3747 = vadd.f32 0.0, %v3746
    %v3748 = vpop.f32.mrb[0].mxu0
    %v3749 = vpop.f32.mrb[0].mxu0
    %v3750 = vadd.f32 0.0, %v3749
    %v3751 = vpop.f32.mrb[0].mxu0
    %3752 = vmatprep.mubr.bf16.mxu0 0
    %3753 = vmatmul.mubr.bf16.gmra.mrb[0].mxu0 %v3684
    %v3754 = vpop.f32.mrb[0].mxu0
    %v3755 = vadd.f32 0.0, %v3754
    %v3756 = vpop.f32.mrb[0].mxu0
    %v3757 = vpop.f32.mrb[0].mxu0
    %v3758 = vadd.f32 0.0, %v3757
    %v3759 = vpop.f32.mrb[0].mxu0
    %3760 = vmatprep.mubr.bf16.mxu0 0
    %3761 = vmatmul.mubr.bf16.gmra.mrb[0].mxu0 %v3685
    %v3762 = vpop.f32.mrb[0].mxu0
    %v3763 = vadd.f32 0.0, %v3762
    %v3764 = vpop.f32.mrb[0].mxu0
    %v3765 = vpop.f32.mrb[0].mxu0
    %v3766 = vadd.f32 0.0, %v3765
    %v3767 = vpop.f32.mrb[0].mxu0
    %3768 = vmatprep.mubr.bf16.mxu0 0
    %3769 = vmatmul.mubr.bf16.gmra.mrb[0].mxu0 %v3686
    %v3770 = vpop.f32.mrb[0].mxu0
    %v3771 = vadd.f32 0.0, %v3770
    %v3772 = vpop.f32.mrb[0].mxu0
    %v3773 = vpop.f32.mrb[0].mxu0
    %v3774 = vadd.f32 0.0, %v3773
    %v3775 = vpop.f32.mrb[0].mxu0
    %3776 = vmatprep.mubr.bf16.mxu0 0
    %3777 = vmatmul.mubr.bf16.gmra.mrb[0].mxu0 %v3687
    %v3778 = vpop.f32.mrb[0].mxu0
    %v3779 = vadd.f32 0.0, %v3778
    %v3780 = vpop.f32.mrb[0].mxu0
    %v3781 = vpop.f32.mrb[0].mxu0
    %v3782 = vadd.f32 0.0, %v3781
    %v3783 = vpop.f32.mrb[0].mxu0
    %3784 = vdwg.mxu0
    %3793 = vrot.lane.b32.xlu0 %v3367, 96
    %v3794 = vpop.permute.xlu0 %3793
    %3795 = vrot.lane.b32.xlu0 %v3368, 96
    %v3796 = vpop.permute.xlu0 %3795
    %3797 = vrot.lane.b32.xlu0 %v3369, 96
    %v3798 = vpop.permute.xlu0 %3797
    %3799 = vrot.lane.b32.xlu0 %v3370, 96
    %v3800 = vpop.permute.xlu0 %3799
    %3801 = vrot.lane.b32.xlu0 %v3371, 96
    %v3802 = vpop.permute.xlu0 %3801
    %3803 = vrot.lane.b32.xlu0 %v3372, 96
    %v3804 = vpop.permute.xlu0 %3803
    %3805 = vrot.lane.b32.xlu0 %v3373, 96
    %v3806 = vpop.permute.xlu0 %3805
    %3807 = vrot.lane.b32.xlu0 %v3374, 96
    %v3808 = vpop.permute.xlu0 %3807
    %3817 = vrot.lane.b32.xlu0 %v3375, 96
    %v3818 = vpop.permute.xlu0 %3817
    %3819 = vrot.lane.b32.xlu0 %v3376, 96
    %v3820 = vpop.permute.xlu0 %3819
    %3821 = vrot.lane.b32.xlu0 %v3377, 96
    %v3822 = vpop.permute.xlu0 %3821
    %3823 = vrot.lane.b32.xlu0 %v3378, 96
    %v3824 = vpop.permute.xlu0 %3823
    %3825 = vrot.lane.b32.xlu0 %v3379, 96
    %v3826 = vpop.permute.xlu0 %3825
    %3827 = vrot.lane.b32.xlu0 %v3380, 96
    %v3828 = vpop.permute.xlu0 %3827
    %3829 = vrot.lane.b32.xlu0 %v3381, 96
    %v3830 = vpop.permute.xlu0 %3829
    %3831 = vrot.lane.b32.xlu0 %v3382, 96
    %v3832 = vpop.permute.xlu0 %3831
    %v3834 = vsel %vm727, %v3794, 0
    %v3837 = vsel %vm727, %v3796, 0
    %v3840 = vsel %vm727, %v3798, 0
    %v3843 = vsel %vm727, %v3800, 0
    %v3846 = vsel %vm727, %v3802, 0
    %v3849 = vsel %vm727, %v3804, 0
    %v3852 = vsel %vm727, %v3806, 0
    %v3855 = vsel %vm727, %v3808, 0
    %v3858 = vsel %vm727, %v3818, 0
    %v3861 = vsel %vm727, %v3820, 0
    %v3864 = vsel %vm727, %v3822, 0
    %v3867 = vsel %vm727, %v3824, 0
    %v3870 = vsel %vm727, %v3826, 0
    %v3873 = vsel %vm727, %v3828, 0
    %v3876 = vsel %vm727, %v3830, 0
    %v3879 = vsel %vm727, %v3832, 0
    %3881 = vmatprep.subr.bf16.mxu0 0
    %3882 = vmatpush1.bf16.xpose.msra.mxu0 %v3858
    %3883 = vmatprep.subr.bf16.mxu0 0
    %3884 = vmatpush1.bf16.xpose.msra.mxu0 %v3861
    %3885 = vmatprep.subr.bf16.mxu0 0
    %3886 = vmatpush1.bf16.xpose.msra.mxu0 %v3864
    %3887 = vmatprep.subr.bf16.mxu0 0
    %3888 = vmatpush1.bf16.xpose.msra.mxu0 %v3867
    %3889 = vmatprep.subr.bf16.mxu0 0
    %3890 = vmatpush1.bf16.xpose.msra.mxu0 %v3870
    %3891 = vmatprep.subr.bf16.mxu0 0
    %3892 = vmatpush1.bf16.xpose.msra.mxu0 %v3873
    %3893 = vmatprep.subr.bf16.mxu0 0
    %3894 = vmatpush1.bf16.xpose.msra.mxu0 %v3876
    %3895 = vmatprep.subr.bf16.mxu0 0
    %3896 = vmatpush1.bf16.xpose.msra.mxu0 %v3879
    %3897 = vmatprep.subr.bf16.mxu0 0
    %3898 = vmatpush1.bf16.xpose.msra.mxu0 0
    %3899 = vmatprep.subr.bf16.mxu0 0
    %3900 = vmatpush1.bf16.xpose.msra.mxu0 0
    %3901 = vmatprep.subr.bf16.mxu0 0
    %3902 = vmatpush1.bf16.xpose.msra.mxu0 0
    %3903 = vmatprep.subr.bf16.mxu0 0
    %3904 = vmatpush1.bf16.xpose.msra.mxu0 0
    %3905 = vmatprep.subr.bf16.mxu0 0
    %3906 = vmatpush1.bf16.xpose.msra.mxu0 0
    %3907 = vmatprep.subr.bf16.mxu0 0
    %3908 = vmatpush1.bf16.xpose.msra.mxu0 0
    %3909 = vmatprep.subr.bf16.mxu0 0
    %3910 = vmatpush1.bf16.xpose.msra.mxu0 0
    %3911 = vmatprep.subr.bf16.mxu0 0
    %3912 = vmatpush1.bf16.xpose.msra.mxu0 0
    %3913 = vmatprep.mubr.bf16.mxu0 0
    %3914 = vmatmul.mubr.bf16.gmra.mrb[0].mxu0 %v3834
    %v3915 = vpop.f32.mrb[0].mxu0
    %v3916 = vadd.f32 0.0, %v3915
    %v3917 = vpop.f32.mrb[0].mxu0
    %v3918 = vpop.f32.mrb[0].mxu0
    %v3919 = vadd.f32 0.0, %v3918
    %v3920 = vpop.f32.mrb[0].mxu0
    %3921 = vmatprep.mubr.bf16.mxu0 0
    %3922 = vmatmul.mubr.bf16.gmra.mrb[0].mxu0 %v3837
    %v3923 = vpop.f32.mrb[0].mxu0
    %v3924 = vadd.f32 0.0, %v3923
    %v3925 = vpop.f32.mrb[0].mxu0
    %v3926 = vpop.f32.mrb[0].mxu0
    %v3927 = vadd.f32 0.0, %v3926
    %v3928 = vpop.f32.mrb[0].mxu0
    %3929 = vmatprep.mubr.bf16.mxu0 0
    %3930 = vmatmul.mubr.bf16.gmra.mrb[0].mxu0 %v3840
    %v3931 = vpop.f32.mrb[0].mxu0
    %v3932 = vadd.f32 0.0, %v3931
    %v3933 = vpop.f32.mrb[0].mxu0
    %v3934 = vpop.f32.mrb[0].mxu0
    %v3935 = vadd.f32 0.0, %v3934
    %v3936 = vpop.f32.mrb[0].mxu0
    %3937 = vmatprep.mubr.bf16.mxu0 0
    %3938 = vmatmul.mubr.bf16.gmra.mrb[0].mxu0 %v3843
    %v3939 = vpop.f32.mrb[0].mxu0
    %v3940 = vadd.f32 0.0, %v3939
    %v3941 = vpop.f32.mrb[0].mxu0
    %v3942 = vpop.f32.mrb[0].mxu0
    %v3943 = vadd.f32 0.0, %v3942
    %v3944 = vpop.f32.mrb[0].mxu0
    %3945 = vmatprep.mubr.bf16.mxu0 0
    %3946 = vmatmul.mubr.bf16.gmra.mrb[0].mxu0 %v3846
    %v3947 = vpop.f32.mrb[0].mxu0
    %v3948 = vadd.f32 0.0, %v3947
    %v3949 = vpop.f32.mrb[0].mxu0
    %v3950 = vpop.f32.mrb[0].mxu0
    %v3951 = vadd.f32 0.0, %v3950
    %v3952 = vpop.f32.mrb[0].mxu0
    %3953 = vmatprep.mubr.bf16.mxu0 0
    %3954 = vmatmul.mubr.bf16.gmra.mrb[0].mxu0 %v3849
    %v3955 = vpop.f32.mrb[0].mxu0
    %v3956 = vadd.f32 0.0, %v3955
    %v3957 = vpop.f32.mrb[0].mxu0
    %v3958 = vpop.f32.mrb[0].mxu0
    %v3959 = vadd.f32 0.0, %v3958
    %v3960 = vpop.f32.mrb[0].mxu0
    %3961 = vmatprep.mubr.bf16.mxu0 0
    %3962 = vmatmul.mubr.bf16.gmra.mrb[0].mxu0 %v3852
    %v3963 = vpop.f32.mrb[0].mxu0
    %v3964 = vadd.f32 0.0, %v3963
    %v3965 = vpop.f32.mrb[0].mxu0
    %v3966 = vpop.f32.mrb[0].mxu0
    %v3967 = vadd.f32 0.0, %v3966
    %v3968 = vpop.f32.mrb[0].mxu0
    %3969 = vmatprep.mubr.bf16.mxu0 0
    %3970 = vmatmul.mubr.bf16.gmra.mrb[0].mxu0 %v3855
    %v3971 = vpop.f32.mrb[0].mxu0
    %v3972 = vadd.f32 0.0, %v3971
    %v3973 = vpop.f32.mrb[0].mxu0
    %v3974 = vpop.f32.mrb[0].mxu0
    %v3975 = vadd.f32 0.0, %v3974
    %v3976 = vpop.f32.mrb[0].mxu0
    %3977 = vdwg.mxu0
    %3978 = vmax.xlane.f32.xlu0 %v3916
    %v3979 = vpop.xlane.xlu0 %3978
    %3980 = vmax.xlane.f32.xlu0 %v3919
    %v3981 = vpop.xlane.xlu0 %3980
    %3982 = vmax.xlane.f32.xlu0 %v3924
    %v3983 = vpop.xlane.xlu0 %3982
    %3984 = vmax.xlane.f32.xlu0 %v3927
    %v3985 = vpop.xlane.xlu0 %3984
    %3986 = vmax.xlane.f32.xlu0 %v3932
    %v3987 = vpop.xlane.xlu0 %3986
    %3988 = vmax.xlane.f32.xlu0 %v3935
    %v3989 = vpop.xlane.xlu0 %3988
    %3990 = vmax.xlane.f32.xlu0 %v3940
    %v3991 = vpop.xlane.xlu0 %3990
    %3992 = vmax.xlane.f32.xlu0 %v3943
    %v3993 = vpop.xlane.xlu0 %3992
    %3994 = vmax.xlane.f32.xlu0 %v3948
    %v3995 = vpop.xlane.xlu0 %3994
    %3996 = vmax.xlane.f32.xlu0 %v3951
    %v3997 = vpop.xlane.xlu0 %3996
    %3998 = vmax.xlane.f32.xlu0 %v3956
    %v3999 = vpop.xlane.xlu0 %3998
    %4000 = vmax.xlane.f32.xlu0 %v3959
    %v4001 = vpop.xlane.xlu0 %4000
    %4002 = vmax.xlane.f32.xlu0 %v3964
    %v4003 = vpop.xlane.xlu0 %4002
    %4004 = vmax.xlane.f32.xlu0 %v3967
    %v4005 = vpop.xlane.xlu0 %4004
    %4006 = vmax.xlane.f32.xlu0 %v3972
    %v4007 = vpop.xlane.xlu0 %4006
    %4008 = vmax.xlane.f32.xlu0 %v3975
    %v4009 = vpop.xlane.xlu0 %4008
    %v4010 = vsub.f32 %v3916, %v3979
    %v4011 = vsub.f32 %v3919, %v3981
    %v4012 = vsub.f32 %v3924, %v3983
    %v4013 = vsub.f32 %v3927, %v3985
    %v4014 = vsub.f32 %v3932, %v3987
    %v4015 = vsub.f32 %v3935, %v3989
    %v4016 = vsub.f32 %v3940, %v3991
    %v4017 = vsub.f32 %v3943, %v3993
    %v4018 = vsub.f32 %v3948, %v3995
    %v4019 = vsub.f32 %v3951, %v3997
    %v4020 = vsub.f32 %v3956, %v3999
    %v4021 = vsub.f32 %v3959, %v4001
    %v4022 = vsub.f32 %v3964, %v4003
    %v4023 = vsub.f32 %v3967, %v4005
    %v4024 = vsub.f32 %v3972, %v4007
    %v4025 = vsub.f32 %v3975, %v4009
    %v4026 = vmul.f32 %v4010, 1.442695
    %v4027 = vpow.pop %v4026
    %v4028 = vmul.f32 %v4011, 1.442695
    %v4029 = vpow.pop %v4028
    %v4030 = vmul.f32 %v4012, 1.442695
    %v4031 = vpow.pop %v4030
    %v4032 = vmul.f32 %v4013, 1.442695
    %v4033 = vpow.pop %v4032
    %v4034 = vmul.f32 %v4014, 1.442695
    %v4035 = vpow.pop %v4034
    %v4036 = vmul.f32 %v4015, 1.442695
    %v4037 = vpow.pop %v4036
    %v4038 = vmul.f32 %v4016, 1.442695
    %v4039 = vpow.pop %v4038
    %v4040 = vmul.f32 %v4017, 1.442695
    %v4041 = vpow.pop %v4040
    %v4042 = vmul.f32 %v4018, 1.442695
    %v4043 = vpow.pop %v4042
    %v4044 = vmul.f32 %v4019, 1.442695
    %v4045 = vpow.pop %v4044
    %v4046 = vmul.f32 %v4020, 1.442695
    %v4047 = vpow.pop %v4046
    %v4048 = vmul.f32 %v4021, 1.442695
    %v4049 = vpow.pop %v4048
    %v4050 = vmul.f32 %v4022, 1.442695
    %v4051 = vpow.pop %v4050
    %v4052 = vmul.f32 %v4023, 1.442695
    %v4053 = vpow.pop %v4052
    %v4054 = vmul.f32 %v4024, 1.442695
    %v4055 = vpow.pop %v4054
    %v4056 = vmul.f32 %v4025, 1.442695
    %v4057 = vpow.pop %v4056
    %4058 = vadd.xlane.f32.xlu0 %v4027
    %v4059 = vpop.xlane.xlu0 %4058
    %4060 = vadd.xlane.f32.xlu0 %v4029
    %v4061 = vpop.xlane.xlu0 %4060
    %4062 = vadd.xlane.f32.xlu0 %v4031
    %v4063 = vpop.xlane.xlu0 %4062
    %4064 = vadd.xlane.f32.xlu0 %v4033
    %v4065 = vpop.xlane.xlu0 %4064
    %4066 = vadd.xlane.f32.xlu0 %v4035
    %v4067 = vpop.xlane.xlu0 %4066
    %4068 = vadd.xlane.f32.xlu0 %v4037
    %v4069 = vpop.xlane.xlu0 %4068
    %4070 = vadd.xlane.f32.xlu0 %v4039
    %v4071 = vpop.xlane.xlu0 %4070
    %4072 = vadd.xlane.f32.xlu0 %v4041
    %v4073 = vpop.xlane.xlu0 %4072
    %4074 = vadd.xlane.f32.xlu0 %v4043
    %v4075 = vpop.xlane.xlu0 %4074
    %4076 = vadd.xlane.f32.xlu0 %v4045
    %v4077 = vpop.xlane.xlu0 %4076
    %4078 = vadd.xlane.f32.xlu0 %v4047
    %v4079 = vpop.xlane.xlu0 %4078
    %4080 = vadd.xlane.f32.xlu0 %v4049
    %v4081 = vpop.xlane.xlu0 %4080
    %4082 = vadd.xlane.f32.xlu0 %v4051
    %v4083 = vpop.xlane.xlu0 %4082
    %4084 = vadd.xlane.f32.xlu0 %v4053
    %v4085 = vpop.xlane.xlu0 %4084
    %4086 = vadd.xlane.f32.xlu0 %v4055
    %v4087 = vpop.xlane.xlu0 %4086
    %4088 = vadd.xlane.f32.xlu0 %v4057
    %v4089 = vpop.xlane.xlu0 %4088
    %v4090 = vrcp.pop %v4059
    %v4091 = vrcp.pop %v4061
    %v4092 = vrcp.pop %v4063
    %v4093 = vrcp.pop %v4065
    %v4094 = vrcp.pop %v4067
    %v4095 = vrcp.pop %v4069
    %v4096 = vrcp.pop %v4071
    %v4097 = vrcp.pop %v4073
    %v4098 = vrcp.pop %v4075
    %v4099 = vrcp.pop %v4077
    %v4100 = vrcp.pop %v4079
    %v4101 = vrcp.pop %v4081
    %v4102 = vrcp.pop %v4083
    %v4103 = vrcp.pop %v4085
    %v4104 = vrcp.pop %v4087
    %v4105 = vrcp.pop %v4089
    %v4106 = vmul.f32 %v4027, %v4090
    %v4107 = vmul.f32 %v4029, %v4091
    %v4108 = vmul.f32 %v4031, %v4092
    %v4109 = vmul.f32 %v4033, %v4093
    %v4110 = vmul.f32 %v4035, %v4094
    %v4111 = vmul.f32 %v4037, %v4095
    %v4112 = vmul.f32 %v4039, %v4096
    %v4113 = vmul.f32 %v4041, %v4097
    %v4114 = vmul.f32 %v4043, %v4098
    %v4115 = vmul.f32 %v4045, %v4099
    %v4116 = vmul.f32 %v4047, %v4100
    %v4117 = vmul.f32 %v4049, %v4101
    %v4118 = vmul.f32 %v4051, %v4102
    %v4119 = vmul.f32 %v4053, %v4103
    %v4120 = vmul.f32 %v4055, %v4104
    %v4121 = vmul.f32 %v4057, %v4105
    %v4122 = vpack.c.bf16 %v4107, %v4106
    %v4123 = vpack.c.bf16 %v4109, %v4108
    %v4124 = vpack.c.bf16 %v4111, %v4110
    %v4125 = vpack.c.bf16 %v4113, %v4112
    %v4126 = vpack.c.bf16 %v4115, %v4114
    %v4127 = vpack.c.bf16 %v4117, %v4116
    %v4128 = vpack.c.bf16 %v4119, %v4118
    %v4129 = vpack.c.bf16 %v4121, %v4120
    %4138 = vrot.lane.b32.xlu0 %v3383, 96
    %v4139 = vpop.permute.xlu0 %4138
    %4140 = vrot.lane.b32.xlu0 %v3384, 96
    %v4141 = vpop.permute.xlu0 %4140
    %4142 = vrot.lane.b32.xlu0 %v3385, 96
    %v4143 = vpop.permute.xlu0 %4142
    %4144 = vrot.lane.b32.xlu0 %v3386, 96
    %v4145 = vpop.permute.xlu0 %4144
    %4146 = vrot.lane.b32.xlu0 %v3387, 96
    %v4147 = vpop.permute.xlu0 %4146
    %4148 = vrot.lane.b32.xlu0 %v3388, 96
    %v4149 = vpop.permute.xlu0 %4148
    %4150 = vrot.lane.b32.xlu0 %v3389, 96
    %v4151 = vpop.permute.xlu0 %4150
    %4152 = vrot.lane.b32.xlu0 %v3390, 96
    %v4153 = vpop.permute.xlu0 %4152
    %4162 = vmatprep.subr.bf16.mxu0 0
    %4163 = vmatpush1.bf16.msra.mxu0 %v4139
    %4164 = vmatprep.subr.bf16.mxu0 0
    %4165 = vmatpush1.bf16.msra.mxu0 %v4141
    %4166 = vmatprep.subr.bf16.mxu0 0
    %4167 = vmatpush1.bf16.msra.mxu0 %v4143
    %4168 = vmatprep.subr.bf16.mxu0 0
    %4169 = vmatpush1.bf16.msra.mxu0 %v4145
    %4170 = vmatprep.subr.bf16.mxu0 0
    %4171 = vmatpush1.bf16.msra.mxu0 %v4147
    %4172 = vmatprep.subr.bf16.mxu0 0
    %4173 = vmatpush1.bf16.msra.mxu0 %v4149
    %4174 = vmatprep.subr.bf16.mxu0 0
    %4175 = vmatpush1.bf16.msra.mxu0 %v4151
    %4176 = vmatprep.subr.bf16.mxu0 0
    %4177 = vmatpush1.bf16.msra.mxu0 %v4153
    %4178 = vmatprep.subr.bf16.mxu0 0
    %4179 = vmatpush1.bf16.msra.mxu0 0
    %4180 = vmatprep.subr.bf16.mxu0 0
    %4181 = vmatpush1.bf16.msra.mxu0 0
    %4182 = vmatprep.subr.bf16.mxu0 0
    %4183 = vmatpush1.bf16.msra.mxu0 0
    %4184 = vmatprep.subr.bf16.mxu0 0
    %4185 = vmatpush1.bf16.msra.mxu0 0
    %4186 = vmatprep.subr.bf16.mxu0 0
    %4187 = vmatpush1.bf16.msra.mxu0 0
    %4188 = vmatprep.subr.bf16.mxu0 0
    %4189 = vmatpush1.bf16.msra.mxu0 0
    %4190 = vmatprep.subr.bf16.mxu0 0
    %4191 = vmatpush1.bf16.msra.mxu0 0
    %4192 = vmatprep.subr.bf16.mxu0 0
    %4193 = vmatpush1.bf16.msra.mxu0 0
    %4194 = vmatprep.mubr.bf16.mxu0 0
    %4195 = vmatmul.mubr.bf16.gmra.mrb[0].mxu0 %v4122
    %v4196 = vpop.f32.mrb[0].mxu0
    %v4197 = vadd.f32 0.0, %v4196
    %v4198 = vpop.f32.mrb[0].mxu0
    %v4199 = vpop.f32.mrb[0].mxu0
    %v4200 = vadd.f32 0.0, %v4199
    %v4201 = vpop.f32.mrb[0].mxu0
    %4202 = vmatprep.mubr.bf16.mxu0 0
    %4203 = vmatmul.mubr.bf16.gmra.mrb[0].mxu0 %v4123
    %v4204 = vpop.f32.mrb[0].mxu0
    %v4205 = vadd.f32 0.0, %v4204
    %v4206 = vpop.f32.mrb[0].mxu0
    %v4207 = vpop.f32.mrb[0].mxu0
    %v4208 = vadd.f32 0.0, %v4207
    %v4209 = vpop.f32.mrb[0].mxu0
    %4210 = vmatprep.mubr.bf16.mxu0 0
    %4211 = vmatmul.mubr.bf16.gmra.mrb[0].mxu0 %v4124
    %v4212 = vpop.f32.mrb[0].mxu0
    %v4213 = vadd.f32 0.0, %v4212
    %v4214 = vpop.f32.mrb[0].mxu0
    %v4215 = vpop.f32.mrb[0].mxu0
    %v4216 = vadd.f32 0.0, %v4215
    %v4217 = vpop.f32.mrb[0].mxu0
    %4218 = vmatprep.mubr.bf16.mxu0 0
    %4219 = vmatmul.mubr.bf16.gmra.mrb[0].mxu0 %v4125
    %v4220 = vpop.f32.mrb[0].mxu0
    %v4221 = vadd.f32 0.0, %v4220
    %v4222 = vpop.f32.mrb[0].mxu0
    %v4223 = vpop.f32.mrb[0].mxu0
    %v4224 = vadd.f32 0.0, %v4223
    %v4225 = vpop.f32.mrb[0].mxu0
    %4226 = vmatprep.mubr.bf16.mxu0 0
    %4227 = vmatmul.mubr.bf16.gmra.mrb[0].mxu0 %v4126
    %v4228 = vpop.f32.mrb[0].mxu0
    %v4229 = vadd.f32 0.0, %v4228
    %v4230 = vpop.f32.mrb[0].mxu0
    %v4231 = vpop.f32.mrb[0].mxu0
    %v4232 = vadd.f32 0.0, %v4231
    %v4233 = vpop.f32.mrb[0].mxu0
    %4234 = vmatprep.mubr.bf16.mxu0 0
    %4235 = vmatmul.mubr.bf16.gmra.mrb[0].mxu0 %v4127
    %v4236 = vpop.f32.mrb[0].mxu0
    %v4237 = vadd.f32 0.0, %v4236
    %v4238 = vpop.f32.mrb[0].mxu0
    %v4239 = vpop.f32.mrb[0].mxu0
    %v4240 = vadd.f32 0.0, %v4239
    %v4241 = vpop.f32.mrb[0].mxu0
    %4242 = vmatprep.mubr.bf16.mxu0 0
    %4243 = vmatmul.mubr.bf16.gmra.mrb[0].mxu0 %v4128
    %v4244 = vpop.f32.mrb[0].mxu0
    %v4245 = vadd.f32 0.0, %v4244
    %v4246 = vpop.f32.mrb[0].mxu0
    %v4247 = vpop.f32.mrb[0].mxu0
    %v4248 = vadd.f32 0.0, %v4247
    %v4249 = vpop.f32.mrb[0].mxu0
    %4250 = vmatprep.mubr.bf16.mxu0 0
    %4251 = vmatmul.mubr.bf16.gmra.mrb[0].mxu0 %v4129
    %v4252 = vpop.f32.mrb[0].mxu0
    %v4253 = vadd.f32 0.0, %v4252
    %v4254 = vpop.f32.mrb[0].mxu0
    %v4255 = vpop.f32.mrb[0].mxu0
    %v4256 = vadd.f32 0.0, %v4255
    %v4257 = vpop.f32.mrb[0].mxu0
    %4258 = vdwg.mxu0
    %4259 = vrot.lane.b32.xlu0 %v3367, 64
    %v4260 = vpop.permute.xlu0 %4259
    %4261 = vrot.lane.b32.xlu0 %v3368, 64
    %v4262 = vpop.permute.xlu0 %4261
    %4263 = vrot.lane.b32.xlu0 %v3369, 64
    %v4264 = vpop.permute.xlu0 %4263
    %4265 = vrot.lane.b32.xlu0 %v3370, 64
    %v4266 = vpop.permute.xlu0 %4265
    %4267 = vrot.lane.b32.xlu0 %v3371, 64
    %v4268 = vpop.permute.xlu0 %4267
    %4269 = vrot.lane.b32.xlu0 %v3372, 64
    %v4270 = vpop.permute.xlu0 %4269
    %4271 = vrot.lane.b32.xlu0 %v3373, 64
    %v4272 = vpop.permute.xlu0 %4271
    %4273 = vrot.lane.b32.xlu0 %v3374, 64
    %v4274 = vpop.permute.xlu0 %4273
    %4275 = vrot.lane.b32.xlu0 %v3375, 64
    %v4276 = vpop.permute.xlu0 %4275
    %4277 = vrot.lane.b32.xlu0 %v3376, 64
    %v4278 = vpop.permute.xlu0 %4277
    %4279 = vrot.lane.b32.xlu0 %v3377, 64
    %v4280 = vpop.permute.xlu0 %4279
    %4281 = vrot.lane.b32.xlu0 %v3378, 64
    %v4282 = vpop.permute.xlu0 %4281
    %4283 = vrot.lane.b32.xlu0 %v3379, 64
    %v4284 = vpop.permute.xlu0 %4283
    %4285 = vrot.lane.b32.xlu0 %v3380, 64
    %v4286 = vpop.permute.xlu0 %4285
    %4287 = vrot.lane.b32.xlu0 %v3381, 64
    %v4288 = vpop.permute.xlu0 %4287
    %4289 = vrot.lane.b32.xlu0 %v3382, 64
    %v4290 = vpop.permute.xlu0 %4289
    %v4292 = vsel %vm727, %v4260, 0
    %v4295 = vsel %vm727, %v4262, 0
    %v4298 = vsel %vm727, %v4264, 0
    %v4301 = vsel %vm727, %v4266, 0
    %v4304 = vsel %vm727, %v4268, 0
    %v4307 = vsel %vm727, %v4270, 0
    %v4310 = vsel %vm727, %v4272, 0
    %v4313 = vsel %vm727, %v4274, 0
    %v4316 = vsel %vm727, %v4276, 0
    %v4319 = vsel %vm727, %v4278, 0
    %v4322 = vsel %vm727, %v4280, 0
    %v4325 = vsel %vm727, %v4282, 0
    %v4328 = vsel %vm727, %v4284, 0
    %v4331 = vsel %vm727, %v4286, 0
    %v4334 = vsel %vm727, %v4288, 0
    %v4337 = vsel %vm727, %v4290, 0
    %4339 = vmatprep.subr.bf16.mxu0 0
    %4340 = vmatpush1.bf16.xpose.msra.mxu0 %v4316
    %4341 = vmatprep.subr.bf16.mxu0 0
    %4342 = vmatpush1.bf16.xpose.msra.mxu0 %v4319
    %4343 = vmatprep.subr.bf16.mxu0 0
    %4344 = vmatpush1.bf16.xpose.msra.mxu0 %v4322
    %4345 = vmatprep.subr.bf16.mxu0 0
    %4346 = vmatpush1.bf16.xpose.msra.mxu0 %v4325
    %4347 = vmatprep.subr.bf16.mxu0 0
    %4348 = vmatpush1.bf16.xpose.msra.mxu0 %v4328
    %4349 = vmatprep.subr.bf16.mxu0 0
    %4350 = vmatpush1.bf16.xpose.msra.mxu0 %v4331
    %4351 = vmatprep.subr.bf16.mxu0 0
    %4352 = vmatpush1.bf16.xpose.msra.mxu0 %v4334
    %4353 = vmatprep.subr.bf16.mxu0 0
    %4354 = vmatpush1.bf16.xpose.msra.mxu0 %v4337
    %4355 = vmatprep.subr.bf16.mxu0 0
    %4356 = vmatpush1.bf16.xpose.msra.mxu0 0
    %4357 = vmatprep.subr.bf16.mxu0 0
    %4358 = vmatpush1.bf16.xpose.msra.mxu0 0
    %4359 = vmatprep.subr.bf16.mxu0 0
    %4360 = vmatpush1.bf16.xpose.msra.mxu0 0
    %4361 = vmatprep.subr.bf16.mxu0 0
    %4362 = vmatpush1.bf16.xpose.msra.mxu0 0
    %4363 = vmatprep.subr.bf16.mxu0 0
    %4364 = vmatpush1.bf16.xpose.msra.mxu0 0
    %4365 = vmatprep.subr.bf16.mxu0 0
    %4366 = vmatpush1.bf16.xpose.msra.mxu0 0
    %4367 = vmatprep.subr.bf16.mxu0 0
    %4368 = vmatpush1.bf16.xpose.msra.mxu0 0
    %4369 = vmatprep.subr.bf16.mxu0 0
    %4370 = vmatpush1.bf16.xpose.msra.mxu0 0
    %4371 = vmatprep.mubr.bf16.mxu0 0
    %4372 = vmatmul.mubr.bf16.gmra.mrb[0].mxu0 %v4292
    %v4373 = vpop.f32.mrb[0].mxu0
    %v4374 = vadd.f32 0.0, %v4373
    %v4375 = vpop.f32.mrb[0].mxu0
    %v4376 = vpop.f32.mrb[0].mxu0
    %v4377 = vadd.f32 0.0, %v4376
    %v4378 = vpop.f32.mrb[0].mxu0
    %4379 = vmatprep.mubr.bf16.mxu0 0
    %4380 = vmatmul.mubr.bf16.gmra.mrb[0].mxu0 %v4295
    %v4381 = vpop.f32.mrb[0].mxu0
    %v4382 = vadd.f32 0.0, %v4381
    %v4383 = vpop.f32.mrb[0].mxu0
    %v4384 = vpop.f32.mrb[0].mxu0
    %v4385 = vadd.f32 0.0, %v4384
    %v4386 = vpop.f32.mrb[0].mxu0
    %4387 = vmatprep.mubr.bf16.mxu0 0
    %4388 = vmatmul.mubr.bf16.gmra.mrb[0].mxu0 %v4298
    %v4389 = vpop.f32.mrb[0].mxu0
    %v4390 = vadd.f32 0.0, %v4389
    %v4391 = vpop.f32.mrb[0].mxu0
    %v4392 = vpop.f32.mrb[0].mxu0
    %v4393 = vadd.f32 0.0, %v4392
    %v4394 = vpop.f32.mrb[0].mxu0
    %4395 = vmatprep.mubr.bf16.mxu0 0
    %4396 = vmatmul.mubr.bf16.gmra.mrb[0].mxu0 %v4301
    %v4397 = vpop.f32.mrb[0].mxu0
    %v4398 = vadd.f32 0.0, %v4397
    %v4399 = vpop.f32.mrb[0].mxu0
    %v4400 = vpop.f32.mrb[0].mxu0
    %v4401 = vadd.f32 0.0, %v4400
    %v4402 = vpop.f32.mrb[0].mxu0
    %4403 = vmatprep.mubr.bf16.mxu0 0
    %4404 = vmatmul.mubr.bf16.gmra.mrb[0].mxu0 %v4304
    %v4405 = vpop.f32.mrb[0].mxu0
    %v4406 = vadd.f32 0.0, %v4405
    %v4407 = vpop.f32.mrb[0].mxu0
    %v4408 = vpop.f32.mrb[0].mxu0
    %v4409 = vadd.f32 0.0, %v4408
    %v4410 = vpop.f32.mrb[0].mxu0
    %4411 = vmatprep.mubr.bf16.mxu0 0
    %4412 = vmatmul.mubr.bf16.gmra.mrb[0].mxu0 %v4307
    %v4413 = vpop.f32.mrb[0].mxu0
    %v4414 = vadd.f32 0.0, %v4413
    %v4415 = vpop.f32.mrb[0].mxu0
    %v4416 = vpop.f32.mrb[0].mxu0
    %v4417 = vadd.f32 0.0, %v4416
    %v4418 = vpop.f32.mrb[0].mxu0
    %4419 = vmatprep.mubr.bf16.mxu0 0
    %4420 = vmatmul.mubr.bf16.gmra.mrb[0].mxu0 %v4310
    %v4421 = vpop.f32.mrb[0].mxu0
    %v4422 = vadd.f32 0.0, %v4421
    %v4423 = vpop.f32.mrb[0].mxu0
    %v4424 = vpop.f32.mrb[0].mxu0
    %v4425 = vadd.f32 0.0, %v4424
    %v4426 = vpop.f32.mrb[0].mxu0
    %4427 = vmatprep.mubr.bf16.mxu0 0
    %4428 = vmatmul.mubr.bf16.gmra.mrb[0].mxu0 %v4313
    %v4429 = vpop.f32.mrb[0].mxu0
    %v4430 = vadd.f32 0.0, %v4429
    %v4431 = vpop.f32.mrb[0].mxu0
    %v4432 = vpop.f32.mrb[0].mxu0
    %v4433 = vadd.f32 0.0, %v4432
    %v4434 = vpop.f32.mrb[0].mxu0
    %4435 = vdwg.mxu0
    %4436 = vmax.xlane.f32.xlu0 %v4374
    %v4437 = vpop.xlane.xlu0 %4436
    %4438 = vmax.xlane.f32.xlu0 %v4377
    %v4439 = vpop.xlane.xlu0 %4438
    %4440 = vmax.xlane.f32.xlu0 %v4382
    %v4441 = vpop.xlane.xlu0 %4440
    %4442 = vmax.xlane.f32.xlu0 %v4385
    %v4443 = vpop.xlane.xlu0 %4442
    %4444 = vmax.xlane.f32.xlu0 %v4390
    %v4445 = vpop.xlane.xlu0 %4444
    %4446 = vmax.xlane.f32.xlu0 %v4393
    %v4447 = vpop.xlane.xlu0 %4446
    %4448 = vmax.xlane.f32.xlu0 %v4398
    %v4449 = vpop.xlane.xlu0 %4448
    %4450 = vmax.xlane.f32.xlu0 %v4401
    %v4451 = vpop.xlane.xlu0 %4450
    %4452 = vmax.xlane.f32.xlu0 %v4406
    %v4453 = vpop.xlane.xlu0 %4452
    %4454 = vmax.xlane.f32.xlu0 %v4409
    %v4455 = vpop.xlane.xlu0 %4454
    %4456 = vmax.xlane.f32.xlu0 %v4414
    %v4457 = vpop.xlane.xlu0 %4456
    %4458 = vmax.xlane.f32.xlu0 %v4417
    %v4459 = vpop.xlane.xlu0 %4458
    %4460 = vmax.xlane.f32.xlu0 %v4422
    %v4461 = vpop.xlane.xlu0 %4460
    %4462 = vmax.xlane.f32.xlu0 %v4425
    %v4463 = vpop.xlane.xlu0 %4462
    %4464 = vmax.xlane.f32.xlu0 %v4430
    %v4465 = vpop.xlane.xlu0 %4464
    %4466 = vmax.xlane.f32.xlu0 %v4433
    %v4467 = vpop.xlane.xlu0 %4466
    %v4468 = vsub.f32 %v4374, %v4437
    %v4469 = vsub.f32 %v4377, %v4439
    %v4470 = vsub.f32 %v4382, %v4441
    %v4471 = vsub.f32 %v4385, %v4443
    %v4472 = vsub.f32 %v4390, %v4445
    %v4473 = vsub.f32 %v4393, %v4447
    %v4474 = vsub.f32 %v4398, %v4449
    %v4475 = vsub.f32 %v4401, %v4451
    %v4476 = vsub.f32 %v4406, %v4453
    %v4477 = vsub.f32 %v4409, %v4455
    %v4478 = vsub.f32 %v4414, %v4457
    %v4479 = vsub.f32 %v4417, %v4459
    %v4480 = vsub.f32 %v4422, %v4461
    %v4481 = vsub.f32 %v4425, %v4463
    %v4482 = vsub.f32 %v4430, %v4465
    %v4483 = vsub.f32 %v4433, %v4467
    %v4484 = vmul.f32 %v4468, 1.442695
    %v4485 = vpow.pop %v4484
    %v4486 = vmul.f32 %v4469, 1.442695
    %v4487 = vpow.pop %v4486
    %v4488 = vmul.f32 %v4470, 1.442695
    %v4489 = vpow.pop %v4488
    %v4490 = vmul.f32 %v4471, 1.442695
    %v4491 = vpow.pop %v4490
    %v4492 = vmul.f32 %v4472, 1.442695
    %v4493 = vpow.pop %v4492
    %v4494 = vmul.f32 %v4473, 1.442695
    %v4495 = vpow.pop %v4494
    %v4496 = vmul.f32 %v4474, 1.442695
    %v4497 = vpow.pop %v4496
    %v4498 = vmul.f32 %v4475, 1.442695
    %v4499 = vpow.pop %v4498
    %v4500 = vmul.f32 %v4476, 1.442695
    %v4501 = vpow.pop %v4500
    %v4502 = vmul.f32 %v4477, 1.442695
    %v4503 = vpow.pop %v4502
    %v4504 = vmul.f32 %v4478, 1.442695
    %v4505 = vpow.pop %v4504
    %v4506 = vmul.f32 %v4479, 1.442695
    %v4507 = vpow.pop %v4506
    %v4508 = vmul.f32 %v4480, 1.442695
    %v4509 = vpow.pop %v4508
    %v4510 = vmul.f32 %v4481, 1.442695
    %v4511 = vpow.pop %v4510
    %v4512 = vmul.f32 %v4482, 1.442695
    %v4513 = vpow.pop %v4512
    %v4514 = vmul.f32 %v4483, 1.442695
    %v4515 = vpow.pop %v4514
    %4516 = vadd.xlane.f32.xlu0 %v4485
    %v4517 = vpop.xlane.xlu0 %4516
    %4518 = vadd.xlane.f32.xlu0 %v4487
    %v4519 = vpop.xlane.xlu0 %4518
    %4520 = vadd.xlane.f32.xlu0 %v4489
    %v4521 = vpop.xlane.xlu0 %4520
    %4522 = vadd.xlane.f32.xlu0 %v4491
    %v4523 = vpop.xlane.xlu0 %4522
    %4524 = vadd.xlane.f32.xlu0 %v4493
    %v4525 = vpop.xlane.xlu0 %4524
    %4526 = vadd.xlane.f32.xlu0 %v4495
    %v4527 = vpop.xlane.xlu0 %4526
    %4528 = vadd.xlane.f32.xlu0 %v4497
    %v4529 = vpop.xlane.xlu0 %4528
    %4530 = vadd.xlane.f32.xlu0 %v4499
    %v4531 = vpop.xlane.xlu0 %4530
    %4532 = vadd.xlane.f32.xlu0 %v4501
    %v4533 = vpop.xlane.xlu0 %4532
    %4534 = vadd.xlane.f32.xlu0 %v4503
    %v4535 = vpop.xlane.xlu0 %4534
    %4536 = vadd.xlane.f32.xlu0 %v4505
    %v4537 = vpop.xlane.xlu0 %4536
    %4538 = vadd.xlane.f32.xlu0 %v4507
    %v4539 = vpop.xlane.xlu0 %4538
    %4540 = vadd.xlane.f32.xlu0 %v4509
    %v4541 = vpop.xlane.xlu0 %4540
    %4542 = vadd.xlane.f32.xlu0 %v4511
    %v4543 = vpop.xlane.xlu0 %4542
    %4544 = vadd.xlane.f32.xlu0 %v4513
    %v4545 = vpop.xlane.xlu0 %4544
    %4546 = vadd.xlane.f32.xlu0 %v4515
    %v4547 = vpop.xlane.xlu0 %4546
    %v4548 = vrcp.pop %v4517
    %v4549 = vrcp.pop %v4519
    %v4550 = vrcp.pop %v4521
    %v4551 = vrcp.pop %v4523
    %v4552 = vrcp.pop %v4525
    %v4553 = vrcp.pop %v4527
    %v4554 = vrcp.pop %v4529
    %v4555 = vrcp.pop %v4531
    %v4556 = vrcp.pop %v4533
    %v4557 = vrcp.pop %v4535
    %v4558 = vrcp.pop %v4537
    %v4559 = vrcp.pop %v4539
    %v4560 = vrcp.pop %v4541
    %v4561 = vrcp.pop %v4543
    %v4562 = vrcp.pop %v4545
    %v4563 = vrcp.pop %v4547
    %v4564 = vmul.f32 %v4485, %v4548
    %v4565 = vmul.f32 %v4487, %v4549
    %v4566 = vmul.f32 %v4489, %v4550
    %v4567 = vmul.f32 %v4491, %v4551
    %v4568 = vmul.f32 %v4493, %v4552
    %v4569 = vmul.f32 %v4495, %v4553
    %v4570 = vmul.f32 %v4497, %v4554
    %v4571 = vmul.f32 %v4499, %v4555
    %v4572 = vmul.f32 %v4501, %v4556
    %v4573 = vmul.f32 %v4503, %v4557
    %v4574 = vmul.f32 %v4505, %v4558
    %v4575 = vmul.f32 %v4507, %v4559
    %v4576 = vmul.f32 %v4509, %v4560
    %v4577 = vmul.f32 %v4511, %v4561
    %v4578 = vmul.f32 %v4513, %v4562
    %v4579 = vmul.f32 %v4515, %v4563
    %v4580 = vpack.c.bf16 %v4565, %v4564
    %v4581 = vpack.c.bf16 %v4567, %v4566
    %v4582 = vpack.c.bf16 %v4569, %v4568
    %v4583 = vpack.c.bf16 %v4571, %v4570
    %v4584 = vpack.c.bf16 %v4573, %v4572
    %v4585 = vpack.c.bf16 %v4575, %v4574
    %v4586 = vpack.c.bf16 %v4577, %v4576
    %v4587 = vpack.c.bf16 %v4579, %v4578
    %4588 = vrot.lane.b32.xlu0 %v3383, 64
    %v4589 = vpop.permute.xlu0 %4588
    %4590 = vrot.lane.b32.xlu0 %v3384, 64
    %v4591 = vpop.permute.xlu0 %4590
    %4592 = vrot.lane.b32.xlu0 %v3385, 64
    %v4593 = vpop.permute.xlu0 %4592
    %4594 = vrot.lane.b32.xlu0 %v3386, 64
    %v4595 = vpop.permute.xlu0 %4594
    %4596 = vrot.lane.b32.xlu0 %v3387, 64
    %v4597 = vpop.permute.xlu0 %4596
    %4598 = vrot.lane.b32.xlu0 %v3388, 64
    %v4599 = vpop.permute.xlu0 %4598
    %4600 = vrot.lane.b32.xlu0 %v3389, 64
    %v4601 = vpop.permute.xlu0 %4600
    %4602 = vrot.lane.b32.xlu0 %v3390, 64
    %v4603 = vpop.permute.xlu0 %4602
    %4612 = vmatprep.subr.bf16.mxu0 0
    %4613 = vmatpush1.bf16.msra.mxu0 %v4589
    %4614 = vmatprep.subr.bf16.mxu0 0
    %4615 = vmatpush1.bf16.msra.mxu0 %v4591
    %4616 = vmatprep.subr.bf16.mxu0 0
    %4617 = vmatpush1.bf16.msra.mxu0 %v4593
    %4618 = vmatprep.subr.bf16.mxu0 0
    %4619 = vmatpush1.bf16.msra.mxu0 %v4595
    %4620 = vmatprep.subr.bf16.mxu0 0
    %4621 = vmatpush1.bf16.msra.mxu0 %v4597
    %4622 = vmatprep.subr.bf16.mxu0 0
    %4623 = vmatpush1.bf16.msra.mxu0 %v4599
    %4624 = vmatprep.subr.bf16.mxu0 0
    %4625 = vmatpush1.bf16.msra.mxu0 %v4601
    %4626 = vmatprep.subr.bf16.mxu0 0
    %4627 = vmatpush1.bf16.msra.mxu0 %v4603
    %4628 = vmatprep.subr.bf16.mxu0 0
    %4629 = vmatpush1.bf16.msra.mxu0 0
    %4630 = vmatprep.subr.bf16.mxu0 0
    %4631 = vmatpush1.bf16.msra.mxu0 0
    %4632 = vmatprep.subr.bf16.mxu0 0
    %4633 = vmatpush1.bf16.msra.mxu0 0
    %4634 = vmatprep.subr.bf16.mxu0 0
    %4635 = vmatpush1.bf16.msra.mxu0 0
    %4636 = vmatprep.subr.bf16.mxu0 0
    %4637 = vmatpush1.bf16.msra.mxu0 0
    %4638 = vmatprep.subr.bf16.mxu0 0
    %4639 = vmatpush1.bf16.msra.mxu0 0
    %4640 = vmatprep.subr.bf16.mxu0 0
    %4641 = vmatpush1.bf16.msra.mxu0 0
    %4642 = vmatprep.subr.bf16.mxu0 0
    %4643 = vmatpush1.bf16.msra.mxu0 0
    %4644 = vmatprep.mubr.bf16.mxu0 0
    %4645 = vmatmul.mubr.bf16.gmra.mrb[0].mxu0 %v4580
    %v4646 = vpop.f32.mrb[0].mxu0
    %v4647 = vadd.f32 0.0, %v4646
    %v4648 = vpop.f32.mrb[0].mxu0
    %v4649 = vpop.f32.mrb[0].mxu0
    %v4650 = vadd.f32 0.0, %v4649
    %v4651 = vpop.f32.mrb[0].mxu0
    %4652 = vmatprep.mubr.bf16.mxu0 0
    %4653 = vmatmul.mubr.bf16.gmra.mrb[0].mxu0 %v4581
    %v4654 = vpop.f32.mrb[0].mxu0
    %v4655 = vadd.f32 0.0, %v4654
    %v4656 = vpop.f32.mrb[0].mxu0
    %v4657 = vpop.f32.mrb[0].mxu0
    %v4658 = vadd.f32 0.0, %v4657
    %v4659 = vpop.f32.mrb[0].mxu0
    %4660 = vmatprep.mubr.bf16.mxu0 0
    %4661 = vmatmul.mubr.bf16.gmra.mrb[0].mxu0 %v4582
    %v4662 = vpop.f32.mrb[0].mxu0
    %v4663 = vadd.f32 0.0, %v4662
    %v4664 = vpop.f32.mrb[0].mxu0
    %v4665 = vpop.f32.mrb[0].mxu0
    %v4666 = vadd.f32 0.0, %v4665
    %v4667 = vpop.f32.mrb[0].mxu0
    %4668 = vmatprep.mubr.bf16.mxu0 0
    %4669 = vmatmul.mubr.bf16.gmra.mrb[0].mxu0 %v4583
    %v4670 = vpop.f32.mrb[0].mxu0
    %v4671 = vadd.f32 0.0, %v4670
    %v4672 = vpop.f32.mrb[0].mxu0
    %v4673 = vpop.f32.mrb[0].mxu0
    %v4674 = vadd.f32 0.0, %v4673
    %v4675 = vpop.f32.mrb[0].mxu0
    %4676 = vmatprep.mubr.bf16.mxu0 0
    %4677 = vmatmul.mubr.bf16.gmra.mrb[0].mxu0 %v4584
    %v4678 = vpop.f32.mrb[0].mxu0
    %v4679 = vadd.f32 0.0, %v4678
    %v4680 = vpop.f32.mrb[0].mxu0
    %v4681 = vpop.f32.mrb[0].mxu0
    %v4682 = vadd.f32 0.0, %v4681
    %v4683 = vpop.f32.mrb[0].mxu0
    %4684 = vmatprep.mubr.bf16.mxu0 0
    %4685 = vmatmul.mubr.bf16.gmra.mrb[0].mxu0 %v4585
    %v4686 = vpop.f32.mrb[0].mxu0
    %v4687 = vadd.f32 0.0, %v4686
    %v4688 = vpop.f32.mrb[0].mxu0
    %v4689 = vpop.f32.mrb[0].mxu0
    %v4690 = vadd.f32 0.0, %v4689
    %v4691 = vpop.f32.mrb[0].mxu0
    %4692 = vmatprep.mubr.bf16.mxu0 0
    %4693 = vmatmul.mubr.bf16.gmra.mrb[0].mxu0 %v4586
    %v4694 = vpop.f32.mrb[0].mxu0
    %v4695 = vadd.f32 0.0, %v4694
    %v4696 = vpop.f32.mrb[0].mxu0
    %v4697 = vpop.f32.mrb[0].mxu0
    %v4698 = vadd.f32 0.0, %v4697
    %v4699 = vpop.f32.mrb[0].mxu0
    %4700 = vmatprep.mubr.bf16.mxu0 0
    %4701 = vmatmul.mubr.bf16.gmra.mrb[0].mxu0 %v4587
    %v4702 = vpop.f32.mrb[0].mxu0
    %v4703 = vadd.f32 0.0, %v4702
    %v4704 = vpop.f32.mrb[0].mxu0
    %v4705 = vpop.f32.mrb[0].mxu0
    %v4706 = vadd.f32 0.0, %v4705
    %v4707 = vpop.f32.mrb[0].mxu0
    %4708 = vdwg.mxu0
    %4709 = vrot.lane.b32.xlu0 %v3367, 32
    %v4710 = vpop.permute.xlu0 %4709
    %4711 = vrot.lane.b32.xlu0 %v3368, 32
    %v4712 = vpop.permute.xlu0 %4711
    %4713 = vrot.lane.b32.xlu0 %v3369, 32
    %v4714 = vpop.permute.xlu0 %4713
    %4715 = vrot.lane.b32.xlu0 %v3370, 32
    %v4716 = vpop.permute.xlu0 %4715
    %4717 = vrot.lane.b32.xlu0 %v3371, 32
    %v4718 = vpop.permute.xlu0 %4717
    %4719 = vrot.lane.b32.xlu0 %v3372, 32
    %v4720 = vpop.permute.xlu0 %4719
    %4721 = vrot.lane.b32.xlu0 %v3373, 32
    %v4722 = vpop.permute.xlu0 %4721
    %4723 = vrot.lane.b32.xlu0 %v3374, 32
    %v4724 = vpop.permute.xlu0 %4723
    %4725 = vrot.lane.b32.xlu0 %v3375, 32
    %v4726 = vpop.permute.xlu0 %4725
    %4727 = vrot.lane.b32.xlu0 %v3376, 32
    %v4728 = vpop.permute.xlu0 %4727
    %4729 = vrot.lane.b32.xlu0 %v3377, 32
    %v4730 = vpop.permute.xlu0 %4729
    %4731 = vrot.lane.b32.xlu0 %v3378, 32
    %v4732 = vpop.permute.xlu0 %4731
    %4733 = vrot.lane.b32.xlu0 %v3379, 32
    %v4734 = vpop.permute.xlu0 %4733
    %4735 = vrot.lane.b32.xlu0 %v3380, 32
    %v4736 = vpop.permute.xlu0 %4735
    %4737 = vrot.lane.b32.xlu0 %v3381, 32
    %v4738 = vpop.permute.xlu0 %4737
    %4739 = vrot.lane.b32.xlu0 %v3382, 32
    %v4740 = vpop.permute.xlu0 %4739
    %v4742 = vsel %vm727, %v4710, 0
    %v4745 = vsel %vm727, %v4712, 0
    %v4748 = vsel %vm727, %v4714, 0
    %v4751 = vsel %vm727, %v4716, 0
    %v4754 = vsel %vm727, %v4718, 0
    %v4757 = vsel %vm727, %v4720, 0
    %v4760 = vsel %vm727, %v4722, 0
    %v4763 = vsel %vm727, %v4724, 0
    %v4766 = vsel %vm727, %v4726, 0
    %v4769 = vsel %vm727, %v4728, 0
    %v4772 = vsel %vm727, %v4730, 0
    %v4775 = vsel %vm727, %v4732, 0
    %v4778 = vsel %vm727, %v4734, 0
    %v4781 = vsel %vm727, %v4736, 0
    %v4784 = vsel %vm727, %v4738, 0
    %v4787 = vsel %vm727, %v4740, 0
    %4789 = vmatprep.subr.bf16.mxu0 0
    %4790 = vmatpush1.bf16.xpose.msra.mxu0 %v4766
    %4791 = vmatprep.subr.bf16.mxu0 0
    %4792 = vmatpush1.bf16.xpose.msra.mxu0 %v4769
    %4793 = vmatprep.subr.bf16.mxu0 0
    %4794 = vmatpush1.bf16.xpose.msra.mxu0 %v4772
    %4795 = vmatprep.subr.bf16.mxu0 0
    %4796 = vmatpush1.bf16.xpose.msra.mxu0 %v4775
    %4797 = vmatprep.subr.bf16.mxu0 0
    %4798 = vmatpush1.bf16.xpose.msra.mxu0 %v4778
    %4799 = vmatprep.subr.bf16.mxu0 0
    %4800 = vmatpush1.bf16.xpose.msra.mxu0 %v4781
    %4801 = vmatprep.subr.bf16.mxu0 0
    %4802 = vmatpush1.bf16.xpose.msra.mxu0 %v4784
    %4803 = vmatprep.subr.bf16.mxu0 0
    %4804 = vmatpush1.bf16.xpose.msra.mxu0 %v4787
    %4805 = vmatprep.subr.bf16.mxu0 0
    %4806 = vmatpush1.bf16.xpose.msra.mxu0 0
    %4807 = vmatprep.subr.bf16.mxu0 0
    %4808 = vmatpush1.bf16.xpose.msra.mxu0 0
    %4809 = vmatprep.subr.bf16.mxu0 0
    %4810 = vmatpush1.bf16.xpose.msra.mxu0 0
    %4811 = vmatprep.subr.bf16.mxu0 0
    %4812 = vmatpush1.bf16.xpose.msra.mxu0 0
    %4813 = vmatprep.subr.bf16.mxu0 0
    %4814 = vmatpush1.bf16.xpose.msra.mxu0 0
    %4815 = vmatprep.subr.bf16.mxu0 0
    %4816 = vmatpush1.bf16.xpose.msra.mxu0 0
    %4817 = vmatprep.subr.bf16.mxu0 0
    %4818 = vmatpush1.bf16.xpose.msra.mxu0 0
    %4819 = vmatprep.subr.bf16.mxu0 0
    %4820 = vmatpush1.bf16.xpose.msra.mxu0 0
    %4821 = vmatprep.mubr.bf16.mxu0 0
    %4822 = vmatmul.mubr.bf16.gmra.mrb[0].mxu0 %v4742
    %v4823 = vpop.f32.mrb[0].mxu0
    %v4824 = vadd.f32 0.0, %v4823
    %v4825 = vpop.f32.mrb[0].mxu0
    %v4826 = vpop.f32.mrb[0].mxu0
    %v4827 = vadd.f32 0.0, %v4826
    %v4828 = vpop.f32.mrb[0].mxu0
    %4829 = vmatprep.mubr.bf16.mxu0 0
    %4830 = vmatmul.mubr.bf16.gmra.mrb[0].mxu0 %v4745
    %v4831 = vpop.f32.mrb[0].mxu0
    %v4832 = vadd.f32 0.0, %v4831
    %v4833 = vpop.f32.mrb[0].mxu0
    %v4834 = vpop.f32.mrb[0].mxu0
    %v4835 = vadd.f32 0.0, %v4834
    %v4836 = vpop.f32.mrb[0].mxu0
    %4837 = vmatprep.mubr.bf16.mxu0 0
    %4838 = vmatmul.mubr.bf16.gmra.mrb[0].mxu0 %v4748
    %v4839 = vpop.f32.mrb[0].mxu0
    %v4840 = vadd.f32 0.0, %v4839
    %v4841 = vpop.f32.mrb[0].mxu0
    %v4842 = vpop.f32.mrb[0].mxu0
    %v4843 = vadd.f32 0.0, %v4842
    %v4844 = vpop.f32.mrb[0].mxu0
    %4845 = vmatprep.mubr.bf16.mxu0 0
    %4846 = vmatmul.mubr.bf16.gmra.mrb[0].mxu0 %v4751
    %v4847 = vpop.f32.mrb[0].mxu0
    %v4848 = vadd.f32 0.0, %v4847
    %v4849 = vpop.f32.mrb[0].mxu0
    %v4850 = vpop.f32.mrb[0].mxu0
    %v4851 = vadd.f32 0.0, %v4850
    %v4852 = vpop.f32.mrb[0].mxu0
    %4853 = vmatprep.mubr.bf16.mxu0 0
    %4854 = vmatmul.mubr.bf16.gmra.mrb[0].mxu0 %v4754
    %v4855 = vpop.f32.mrb[0].mxu0
    %v4856 = vadd.f32 0.0, %v4855
    %v4857 = vpop.f32.mrb[0].mxu0
    %v4858 = vpop.f32.mrb[0].mxu0
    %v4859 = vadd.f32 0.0, %v4858
    %v4860 = vpop.f32.mrb[0].mxu0
    %4861 = vmatprep.mubr.bf16.mxu0 0
    %4862 = vmatmul.mubr.bf16.gmra.mrb[0].mxu0 %v4757
    %v4863 = vpop.f32.mrb[0].mxu0
    %v4864 = vadd.f32 0.0, %v4863
    %v4865 = vpop.f32.mrb[0].mxu0
    %v4866 = vpop.f32.mrb[0].mxu0
    %v4867 = vadd.f32 0.0, %v4866
    %v4868 = vpop.f32.mrb[0].mxu0
    %4869 = vmatprep.mubr.bf16.mxu0 0
    %4870 = vmatmul.mubr.bf16.gmra.mrb[0].mxu0 %v4760
    %v4871 = vpop.f32.mrb[0].mxu0
    %v4872 = vadd.f32 0.0, %v4871
    %v4873 = vpop.f32.mrb[0].mxu0
    %v4874 = vpop.f32.mrb[0].mxu0
    %v4875 = vadd.f32 0.0, %v4874
    %v4876 = vpop.f32.mrb[0].mxu0
    %4877 = vmatprep.mubr.bf16.mxu0 0
    %4878 = vmatmul.mubr.bf16.gmra.mrb[0].mxu0 %v4763
    %v4879 = vpop.f32.mrb[0].mxu0
    %v4880 = vadd.f32 0.0, %v4879
    %v4881 = vpop.f32.mrb[0].mxu0
    %v4882 = vpop.f32.mrb[0].mxu0
    %v4883 = vadd.f32 0.0, %v4882
    %v4884 = vpop.f32.mrb[0].mxu0
    %4885 = vdwg.mxu0
    %4886 = vmax.xlane.f32.xlu0 %v4824
    %v4887 = vpop.xlane.xlu0 %4886
    %4888 = vmax.xlane.f32.xlu0 %v4827
    %v4889 = vpop.xlane.xlu0 %4888
    %4890 = vmax.xlane.f32.xlu0 %v4832
    %v4891 = vpop.xlane.xlu0 %4890
    %4892 = vmax.xlane.f32.xlu0 %v4835
    %v4893 = vpop.xlane.xlu0 %4892
    %4894 = vmax.xlane.f32.xlu0 %v4840
    %v4895 = vpop.xlane.xlu0 %4894
    %4896 = vmax.xlane.f32.xlu0 %v4843
    %v4897 = vpop.xlane.xlu0 %4896
    %4898 = vmax.xlane.f32.xlu0 %v4848
    %v4899 = vpop.xlane.xlu0 %4898
    %4900 = vmax.xlane.f32.xlu0 %v4851
    %v4901 = vpop.xlane.xlu0 %4900
    %4902 = vmax.xlane.f32.xlu0 %v4856
    %v4903 = vpop.xlane.xlu0 %4902
    %4904 = vmax.xlane.f32.xlu0 %v4859
    %v4905 = vpop.xlane.xlu0 %4904
    %4906 = vmax.xlane.f32.xlu0 %v4864
    %v4907 = vpop.xlane.xlu0 %4906
    %4908 = vmax.xlane.f32.xlu0 %v4867
    %v4909 = vpop.xlane.xlu0 %4908
    %4910 = vmax.xlane.f32.xlu0 %v4872
    %v4911 = vpop.xlane.xlu0 %4910
    %4912 = vmax.xlane.f32.xlu0 %v4875
    %v4913 = vpop.xlane.xlu0 %4912
    %4914 = vmax.xlane.f32.xlu0 %v4880
    %v4915 = vpop.xlane.xlu0 %4914
    %4916 = vmax.xlane.f32.xlu0 %v4883
    %v4917 = vpop.xlane.xlu0 %4916
    %v4918 = vsub.f32 %v4824, %v4887
    %v4919 = vsub.f32 %v4827, %v4889
    %v4920 = vsub.f32 %v4832, %v4891
    %v4921 = vsub.f32 %v4835, %v4893
    %v4922 = vsub.f32 %v4840, %v4895
    %v4923 = vsub.f32 %v4843, %v4897
    %v4924 = vsub.f32 %v4848, %v4899
    %v4925 = vsub.f32 %v4851, %v4901
    %v4926 = vsub.f32 %v4856, %v4903
    %v4927 = vsub.f32 %v4859, %v4905
    %v4928 = vsub.f32 %v4864, %v4907
    %v4929 = vsub.f32 %v4867, %v4909
    %v4930 = vsub.f32 %v4872, %v4911
    %v4931 = vsub.f32 %v4875, %v4913
    %v4932 = vsub.f32 %v4880, %v4915
    %v4933 = vsub.f32 %v4883, %v4917
    %v4934 = vmul.f32 %v4918, 1.442695
    %v4935 = vpow.pop %v4934
    %v4936 = vmul.f32 %v4919, 1.442695
    %v4937 = vpow.pop %v4936
    %v4938 = vmul.f32 %v4920, 1.442695
    %v4939 = vpow.pop %v4938
    %v4940 = vmul.f32 %v4921, 1.442695
    %v4941 = vpow.pop %v4940
    %v4942 = vmul.f32 %v4922, 1.442695
    %v4943 = vpow.pop %v4942
    %v4944 = vmul.f32 %v4923, 1.442695
    %v4945 = vpow.pop %v4944
    %v4946 = vmul.f32 %v4924, 1.442695
    %v4947 = vpow.pop %v4946
    %v4948 = vmul.f32 %v4925, 1.442695
    %v4949 = vpow.pop %v4948
    %v4950 = vmul.f32 %v4926, 1.442695
    %v4951 = vpow.pop %v4950
    %v4952 = vmul.f32 %v4927, 1.442695
    %v4953 = vpow.pop %v4952
    %v4954 = vmul.f32 %v4928, 1.442695
    %v4955 = vpow.pop %v4954
    %v4956 = vmul.f32 %v4929, 1.442695
    %v4957 = vpow.pop %v4956
    %v4958 = vmul.f32 %v4930, 1.442695
    %v4959 = vpow.pop %v4958
    %v4960 = vmul.f32 %v4931, 1.442695
    %v4961 = vpow.pop %v4960
    %v4962 = vmul.f32 %v4932, 1.442695
    %v4963 = vpow.pop %v4962
    %v4964 = vmul.f32 %v4933, 1.442695
    %v4965 = vpow.pop %v4964
    %4966 = vadd.xlane.f32.xlu0 %v4935
    %v4967 = vpop.xlane.xlu0 %4966
    %4968 = vadd.xlane.f32.xlu0 %v4937
    %v4969 = vpop.xlane.xlu0 %4968
    %4970 = vadd.xlane.f32.xlu0 %v4939
    %v4971 = vpop.xlane.xlu0 %4970
    %4972 = vadd.xlane.f32.xlu0 %v4941
    %v4973 = vpop.xlane.xlu0 %4972
    %4974 = vadd.xlane.f32.xlu0 %v4943
    %v4975 = vpop.xlane.xlu0 %4974
    %4976 = vadd.xlane.f32.xlu0 %v4945
    %v4977 = vpop.xlane.xlu0 %4976
    %4978 = vadd.xlane.f32.xlu0 %v4947
    %v4979 = vpop.xlane.xlu0 %4978
    %4980 = vadd.xlane.f32.xlu0 %v4949
    %v4981 = vpop.xlane.xlu0 %4980
    %4982 = vadd.xlane.f32.xlu0 %v4951
    %v4983 = vpop.xlane.xlu0 %4982
    %4984 = vadd.xlane.f32.xlu0 %v4953
    %v4985 = vpop.xlane.xlu0 %4984
    %4986 = vadd.xlane.f32.xlu0 %v4955
    %v4987 = vpop.xlane.xlu0 %4986
    %4988 = vadd.xlane.f32.xlu0 %v4957
    %v4989 = vpop.xlane.xlu0 %4988
    %4990 = vadd.xlane.f32.xlu0 %v4959
    %v4991 = vpop.xlane.xlu0 %4990
    %4992 = vadd.xlane.f32.xlu0 %v4961
    %v4993 = vpop.xlane.xlu0 %4992
    %4994 = vadd.xlane.f32.xlu0 %v4963
    %v4995 = vpop.xlane.xlu0 %4994
    %4996 = vadd.xlane.f32.xlu0 %v4965
    %v4997 = vpop.xlane.xlu0 %4996
    %v4998 = vrcp.pop %v4967
    %v4999 = vrcp.pop %v4969
    %v5000 = vrcp.pop %v4971
    %v5001 = vrcp.pop %v4973
    %v5002 = vrcp.pop %v4975
    %v5003 = vrcp.pop %v4977
    %v5004 = vrcp.pop %v4979
    %v5005 = vrcp.pop %v4981
    %v5006 = vrcp.pop %v4983
    %v5007 = vrcp.pop %v4985
    %v5008 = vrcp.pop %v4987
    %v5009 = vrcp.pop %v4989
    %v5010 = vrcp.pop %v4991
    %v5011 = vrcp.pop %v4993
    %v5012 = vrcp.pop %v4995
    %v5013 = vrcp.pop %v4997
    %v5014 = vmul.f32 %v4935, %v4998
    %v5015 = vmul.f32 %v4937, %v4999
    %v5016 = vmul.f32 %v4939, %v5000
    %v5017 = vmul.f32 %v4941, %v5001
    %v5018 = vmul.f32 %v4943, %v5002
    %v5019 = vmul.f32 %v4945, %v5003
    %v5020 = vmul.f32 %v4947, %v5004
    %v5021 = vmul.f32 %v4949, %v5005
    %v5022 = vmul.f32 %v4951, %v5006
    %v5023 = vmul.f32 %v4953, %v5007
    %v5024 = vmul.f32 %v4955, %v5008
    %v5025 = vmul.f32 %v4957, %v5009
    %v5026 = vmul.f32 %v4959, %v5010
    %v5027 = vmul.f32 %v4961, %v5011
    %v5028 = vmul.f32 %v4963, %v5012
    %v5029 = vmul.f32 %v4965, %v5013
    %v5030 = vpack.c.bf16 %v5015, %v5014
    %v5031 = vpack.c.bf16 %v5017, %v5016
    %v5032 = vpack.c.bf16 %v5019, %v5018
    %v5033 = vpack.c.bf16 %v5021, %v5020
    %v5034 = vpack.c.bf16 %v5023, %v5022
    %v5035 = vpack.c.bf16 %v5025, %v5024
    %v5036 = vpack.c.bf16 %v5027, %v5026
    %v5037 = vpack.c.bf16 %v5029, %v5028
    %5038 = vrot.lane.b32.xlu0 %v3383, 32
    %v5039 = vpop.permute.xlu0 %5038
    %5040 = vrot.lane.b32.xlu0 %v3384, 32
    %v5041 = vpop.permute.xlu0 %5040
    %5042 = vrot.lane.b32.xlu0 %v3385, 32
    %v5043 = vpop.permute.xlu0 %5042
    %5044 = vrot.lane.b32.xlu0 %v3386, 32
    %v5045 = vpop.permute.xlu0 %5044
    %5046 = vrot.lane.b32.xlu0 %v3387, 32
    %v5047 = vpop.permute.xlu0 %5046
    %5048 = vrot.lane.b32.xlu0 %v3388, 32
    %v5049 = vpop.permute.xlu0 %5048
    %5050 = vrot.lane.b32.xlu0 %v3389, 32
    %v5051 = vpop.permute.xlu0 %5050
    %5052 = vrot.lane.b32.xlu0 %v3390, 32
    %v5053 = vpop.permute.xlu0 %5052
    %5062 = vmatprep.subr.bf16.mxu0 0
    %5063 = vmatpush1.bf16.msra.mxu0 %v5039
    %5064 = vmatprep.subr.bf16.mxu0 0
    %5065 = vmatpush1.bf16.msra.mxu0 %v5041
    %5066 = vmatprep.subr.bf16.mxu0 0
    %5067 = vmatpush1.bf16.msra.mxu0 %v5043
    %5068 = vmatprep.subr.bf16.mxu0 0
    %5069 = vmatpush1.bf16.msra.mxu0 %v5045
    %5070 = vmatprep.subr.bf16.mxu0 0
    %5071 = vmatpush1.bf16.msra.mxu0 %v5047
    %5072 = vmatprep.subr.bf16.mxu0 0
    %5073 = vmatpush1.bf16.msra.mxu0 %v5049
    %5074 = vmatprep.subr.bf16.mxu0 0
    %5075 = vmatpush1.bf16.msra.mxu0 %v5051
    %5076 = vmatprep.subr.bf16.mxu0 0
    %5077 = vmatpush1.bf16.msra.mxu0 %v5053
    %5078 = vmatprep.subr.bf16.mxu0 0
    %5079 = vmatpush1.bf16.msra.mxu0 0
    %5080 = vmatprep.subr.bf16.mxu0 0
    %5081 = vmatpush1.bf16.msra.mxu0 0
    %5082 = vmatprep.subr.bf16.mxu0 0
    %5083 = vmatpush1.bf16.msra.mxu0 0
    %5084 = vmatprep.subr.bf16.mxu0 0
    %5085 = vmatpush1.bf16.msra.mxu0 0
    %5086 = vmatprep.subr.bf16.mxu0 0
    %5087 = vmatpush1.bf16.msra.mxu0 0
    %5088 = vmatprep.subr.bf16.mxu0 0
    %5089 = vmatpush1.bf16.msra.mxu0 0
    %5090 = vmatprep.subr.bf16.mxu0 0
    %5091 = vmatpush1.bf16.msra.mxu0 0
    %5092 = vmatprep.subr.bf16.mxu0 0
    %5093 = vmatpush1.bf16.msra.mxu0 0
    %5094 = vmatprep.mubr.bf16.mxu0 0
    %5095 = vmatmul.mubr.bf16.gmra.mrb[0].mxu0 %v5030
    %v5096 = vpop.f32.mrb[0].mxu0
    %v5097 = vadd.f32 0.0, %v5096
    %v5098 = vpop.f32.mrb[0].mxu0
    %v5099 = vpop.f32.mrb[0].mxu0
    %v5100 = vadd.f32 0.0, %v5099
    %v5101 = vpop.f32.mrb[0].mxu0
    %5102 = vmatprep.mubr.bf16.mxu0 0
    %5103 = vmatmul.mubr.bf16.gmra.mrb[0].mxu0 %v5031
    %v5104 = vpop.f32.mrb[0].mxu0
    %v5105 = vadd.f32 0.0, %v5104
    %v5106 = vpop.f32.mrb[0].mxu0
    %v5107 = vpop.f32.mrb[0].mxu0
    %v5108 = vadd.f32 0.0, %v5107
    %v5109 = vpop.f32.mrb[0].mxu0
    %5110 = vmatprep.mubr.bf16.mxu0 0
    %5111 = vmatmul.mubr.bf16.gmra.mrb[0].mxu0 %v5032
    %v5112 = vpop.f32.mrb[0].mxu0
    %v5113 = vadd.f32 0.0, %v5112
    %v5114 = vpop.f32.mrb[0].mxu0
    %v5115 = vpop.f32.mrb[0].mxu0
    %v5116 = vadd.f32 0.0, %v5115
    %v5117 = vpop.f32.mrb[0].mxu0
    %5118 = vmatprep.mubr.bf16.mxu0 0
    %5119 = vmatmul.mubr.bf16.gmra.mrb[0].mxu0 %v5033
    %v5120 = vpop.f32.mrb[0].mxu0
    %v5121 = vadd.f32 0.0, %v5120
    %v5122 = vpop.f32.mrb[0].mxu0
    %v5123 = vpop.f32.mrb[0].mxu0
    %v5124 = vadd.f32 0.0, %v5123
    %v5125 = vpop.f32.mrb[0].mxu0
    %5126 = vmatprep.mubr.bf16.mxu0 0
    %5127 = vmatmul.mubr.bf16.gmra.mrb[0].mxu0 %v5034
    %v5128 = vpop.f32.mrb[0].mxu0
    %v5129 = vadd.f32 0.0, %v5128
    %v5130 = vpop.f32.mrb[0].mxu0
    %v5131 = vpop.f32.mrb[0].mxu0
    %v5132 = vadd.f32 0.0, %v5131
    %v5133 = vpop.f32.mrb[0].mxu0
    %5134 = vmatprep.mubr.bf16.mxu0 0
    %5135 = vmatmul.mubr.bf16.gmra.mrb[0].mxu0 %v5035
    %v5136 = vpop.f32.mrb[0].mxu0
    %v5137 = vadd.f32 0.0, %v5136
    %v5138 = vpop.f32.mrb[0].mxu0
    %v5139 = vpop.f32.mrb[0].mxu0
    %v5140 = vadd.f32 0.0, %v5139
    %v5141 = vpop.f32.mrb[0].mxu0
    %5142 = vmatprep.mubr.bf16.mxu0 0
    %5143 = vmatmul.mubr.bf16.gmra.mrb[0].mxu0 %v5036
    %v5144 = vpop.f32.mrb[0].mxu0
    %v5145 = vadd.f32 0.0, %v5144
    %v5146 = vpop.f32.mrb[0].mxu0
    %v5147 = vpop.f32.mrb[0].mxu0
    %v5148 = vadd.f32 0.0, %v5147
    %v5149 = vpop.f32.mrb[0].mxu0
    %5150 = vmatprep.mubr.bf16.mxu0 0
    %5151 = vmatmul.mubr.bf16.gmra.mrb[0].mxu0 %v5037
    %v5152 = vpop.f32.mrb[0].mxu0
    %v5153 = vadd.f32 0.0, %v5152
    %v5154 = vpop.f32.mrb[0].mxu0
    %v5155 = vpop.f32.mrb[0].mxu0
    %v5156 = vadd.f32 0.0, %v5155
    %v5157 = vpop.f32.mrb[0].mxu0
    %5158 = vdwg.mxu0
    %5175 = vrot.lane.b32.xlu0 %v4197, 32
    %v5176 = vpop.permute.xlu0 %5175
    %5177 = vrot.lane.b32.xlu0 %v4200, 32
    %v5178 = vpop.permute.xlu0 %5177
    %5179 = vrot.lane.b32.xlu0 %v4205, 32
    %v5180 = vpop.permute.xlu0 %5179
    %5181 = vrot.lane.b32.xlu0 %v4208, 32
    %v5182 = vpop.permute.xlu0 %5181
    %5183 = vrot.lane.b32.xlu0 %v4213, 32
    %v5184 = vpop.permute.xlu0 %5183
    %5185 = vrot.lane.b32.xlu0 %v4216, 32
    %v5186 = vpop.permute.xlu0 %5185
    %5187 = vrot.lane.b32.xlu0 %v4221, 32
    %v5188 = vpop.permute.xlu0 %5187
    %5189 = vrot.lane.b32.xlu0 %v4224, 32
    %v5190 = vpop.permute.xlu0 %5189
    %5191 = vrot.lane.b32.xlu0 %v4229, 32
    %v5192 = vpop.permute.xlu0 %5191
    %5193 = vrot.lane.b32.xlu0 %v4232, 32
    %v5194 = vpop.permute.xlu0 %5193
    %5195 = vrot.lane.b32.xlu0 %v4237, 32
    %v5196 = vpop.permute.xlu0 %5195
    %5197 = vrot.lane.b32.xlu0 %v4240, 32
    %v5198 = vpop.permute.xlu0 %5197
    %5199 = vrot.lane.b32.xlu0 %v4245, 32
    %v5200 = vpop.permute.xlu0 %5199
    %5201 = vrot.lane.b32.xlu0 %v4248, 32
    %v5202 = vpop.permute.xlu0 %5201
    %5203 = vrot.lane.b32.xlu0 %v4253, 32
    %v5204 = vpop.permute.xlu0 %5203
    %5205 = vrot.lane.b32.xlu0 %v4256, 32
    %v5206 = vpop.permute.xlu0 %5205
    %5239 = vrot.lane.b32.xlu0 %v4647, 64
    %v5240 = vpop.permute.xlu0 %5239
    %5241 = vrot.lane.b32.xlu0 %v4650, 64
    %v5242 = vpop.permute.xlu0 %5241
    %5243 = vrot.lane.b32.xlu0 %v4655, 64
    %v5244 = vpop.permute.xlu0 %5243
    %5245 = vrot.lane.b32.xlu0 %v4658, 64
    %v5246 = vpop.permute.xlu0 %5245
    %5247 = vrot.lane.b32.xlu0 %v4663, 64
    %v5248 = vpop.permute.xlu0 %5247
    %5249 = vrot.lane.b32.xlu0 %v4666, 64
    %v5250 = vpop.permute.xlu0 %5249
    %5251 = vrot.lane.b32.xlu0 %v4671, 64
    %v5252 = vpop.permute.xlu0 %5251
    %5253 = vrot.lane.b32.xlu0 %v4674, 64
    %v5254 = vpop.permute.xlu0 %5253
    %5255 = vrot.lane.b32.xlu0 %v4679, 64
    %v5256 = vpop.permute.xlu0 %5255
    %5257 = vrot.lane.b32.xlu0 %v4682, 64
    %v5258 = vpop.permute.xlu0 %5257
    %5259 = vrot.lane.b32.xlu0 %v4687, 64
    %v5260 = vpop.permute.xlu0 %5259
    %5261 = vrot.lane.b32.xlu0 %v4690, 64
    %v5262 = vpop.permute.xlu0 %5261
    %5263 = vrot.lane.b32.xlu0 %v4695, 64
    %v5264 = vpop.permute.xlu0 %5263
    %5265 = vrot.lane.b32.xlu0 %v4698, 64
    %v5266 = vpop.permute.xlu0 %5265
    %5267 = vrot.lane.b32.xlu0 %v4703, 64
    %v5268 = vpop.permute.xlu0 %5267
    %5269 = vrot.lane.b32.xlu0 %v4706, 64
    %v5270 = vpop.permute.xlu0 %5269
    %5303 = vrot.lane.b32.xlu0 %v5097, 96
    %v5304 = vpop.permute.xlu0 %5303
    %5305 = vrot.lane.b32.xlu0 %v5100, 96
    %v5306 = vpop.permute.xlu0 %5305
    %5307 = vrot.lane.b32.xlu0 %v5105, 96
    %v5308 = vpop.permute.xlu0 %5307
    %5309 = vrot.lane.b32.xlu0 %v5108, 96
    %v5310 = vpop.permute.xlu0 %5309
    %5311 = vrot.lane.b32.xlu0 %v5113, 96
    %v5312 = vpop.permute.xlu0 %5311
    %5313 = vrot.lane.b32.xlu0 %v5116, 96
    %v5314 = vpop.permute.xlu0 %5313
    %5315 = vrot.lane.b32.xlu0 %v5121, 96
    %v5316 = vpop.permute.xlu0 %5315
    %5317 = vrot.lane.b32.xlu0 %v5124, 96
    %v5318 = vpop.permute.xlu0 %5317
    %5319 = vrot.lane.b32.xlu0 %v5129, 96
    %v5320 = vpop.permute.xlu0 %5319
    %5321 = vrot.lane.b32.xlu0 %v5132, 96
    %v5322 = vpop.permute.xlu0 %5321
    %5323 = vrot.lane.b32.xlu0 %v5137, 96
    %v5324 = vpop.permute.xlu0 %5323
    %5325 = vrot.lane.b32.xlu0 %v5140, 96
    %v5326 = vpop.permute.xlu0 %5325
    %5327 = vrot.lane.b32.xlu0 %v5145, 96
    %v5328 = vpop.permute.xlu0 %5327
    %5329 = vrot.lane.b32.xlu0 %v5148, 96
    %v5330 = vpop.permute.xlu0 %5329
    %5331 = vrot.lane.b32.xlu0 %v5153, 96
    %v5332 = vpop.permute.xlu0 %5331
    %5333 = vrot.lane.b32.xlu0 %v5156, 96
    %v5334 = vpop.permute.xlu0 %5333
    %v5351 = vsel %vm727, %v3723, %v5176
    %v5352 = vsel %vm727, %v3726, %v5178
    %v5353 = vsel %vm727, %v3731, %v5180
    %v5354 = vsel %vm727, %v3734, %v5182
    %v5355 = vsel %vm727, %v3739, %v5184
    %v5356 = vsel %vm727, %v3742, %v5186
    %v5357 = vsel %vm727, %v3747, %v5188
    %v5358 = vsel %vm727, %v3750, %v5190
    %v5359 = vsel %vm727, %v3755, %v5192
    %v5360 = vsel %vm727, %v3758, %v5194
    %v5361 = vsel %vm727, %v3763, %v5196
    %v5362 = vsel %vm727, %v3766, %v5198
    %v5363 = vsel %vm727, %v3771, %v5200
    %v5364 = vsel %vm727, %v3774, %v5202
    %v5365 = vsel %vm727, %v3779, %v5204
    %v5366 = vsel %vm727, %v3782, %v5206
    %v5367 = vsel %vm2704, %v5351, %v5240
    %v5368 = vsel %vm2704, %v5352, %v5242
    %v5369 = vsel %vm2704, %v5353, %v5244
    %v5370 = vsel %vm2704, %v5354, %v5246
    %v5371 = vsel %vm2704, %v5355, %v5248
    %v5372 = vsel %vm2704, %v5356, %v5250
    %v5373 = vsel %vm2704, %v5357, %v5252
    %v5374 = vsel %vm2704, %v5358, %v5254
    %v5375 = vsel %vm2704, %v5359, %v5256
    %v5376 = vsel %vm2704, %v5360, %v5258
    %v5377 = vsel %vm2704, %v5361, %v5260
    %v5378 = vsel %vm2704, %v5362, %v5262
    %v5379 = vsel %vm2704, %v5363, %v5264
    %v5380 = vsel %vm2704, %v5364, %v5266
    %v5381 = vsel %vm2704, %v5365, %v5268
    %v5382 = vsel %vm2704, %v5366, %v5270
    %v5383 = vsel %vm2721, %v5367, %v5304
    %v5384 = vsel %vm2721, %v5368, %v5306
    %v5385 = vsel %vm2721, %v5369, %v5308
    %v5386 = vsel %vm2721, %v5370, %v5310
    %v5387 = vsel %vm2721, %v5371, %v5312
    %v5388 = vsel %vm2721, %v5372, %v5314
    %v5389 = vsel %vm2721, %v5373, %v5316
    %v5390 = vsel %vm2721, %v5374, %v5318
    %v5391 = vsel %vm2721, %v5375, %v5320
    %v5392 = vsel %vm2721, %v5376, %v5322
    %v5393 = vsel %vm2721, %v5377, %v5324
    %v5394 = vsel %vm2721, %v5378, %v5326
    %v5395 = vsel %vm2721, %v5379, %v5328
    %v5396 = vsel %vm2721, %v5380, %v5330
    %v5397 = vsel %vm2721, %v5381, %v5332
    %v5398 = vsel %vm2721, %v5382, %v5334
    %v5399 = vpack.c.bf16 %v5384, %v5383
    %v5400 = vpack.c.bf16 %v5386, %v5385
    %v5401 = vpack.c.bf16 %v5388, %v5387
    %v5402 = vpack.c.bf16 %v5390, %v5389
    %v5403 = vpack.c.bf16 %v5392, %v5391
    %v5404 = vpack.c.bf16 %v5394, %v5393
    %v5405 = vpack.c.bf16 %v5396, %v5395
    %v5406 = vpack.c.bf16 %v5398, %v5397
    %v5407 = vld [vmem:[%s5] sm:$0xf]
    %v5408 = vld [vmem:[%s5 + $0x4] sm:$0xf]
    %v5409 = vld [vmem:[%s5 + $0x8] sm:$0xf]
    %v5410 = vld [vmem:[%s5 + $0xc] sm:$0xf]
    %v5411 = vld [vmem:[%s5 + $0x10] sm:$0xf]
    %v5412 = vld [vmem:[%s5 + $0x14] sm:$0xf]
    %v5413 = vld [vmem:[%s5 + $0x18] sm:$0xf]
    %v5414 = vld [vmem:[%s5 + $0x1c] sm:$0xf]
    %v5415 = vld [vmem:[%s5 + $0x20] sm:$0xf]
    %v5416 = vld [vmem:[%s5 + $0x24] sm:$0xf]
    %v5417 = vld [vmem:[%s5 + $0x28] sm:$0xf]
    %v5418 = vld [vmem:[%s5 + $0x2c] sm:$0xf]
    %v5419 = vld [vmem:[%s5 + $0x30] sm:$0xf]
    %v5420 = vld [vmem:[%s5 + $0x34] sm:$0xf]
    %v5421 = vld [vmem:[%s5 + $0x38] sm:$0xf]
    %v5422 = vld [vmem:[%s5 + $0x3c] sm:$0xf]
    %v5423 = vld [vmem:[%s6] sm:$0x1]
    %v5425 = vlaneseq
    %v5426 = vshrl.u32 %v5425, 7
    %v5427 = vsub.s32 0, %v5426
    %v5428 = vrot.slane %v5423, %v5427
    %v5446 = vunpack.c.l.b16 %v5407
    %v5447 = vunpack.c.l.b16 %v5408
    %v5448 = vunpack.c.l.b16 %v5409
    %v5449 = vunpack.c.l.b16 %v5410
    %v5450 = vunpack.c.l.b16 %v5411
    %v5451 = vunpack.c.l.b16 %v5412
    %v5452 = vunpack.c.l.b16 %v5413
    %v5453 = vunpack.c.l.b16 %v5414
    %v5454 = vunpack.c.l.b16 %v5415
    %v5455 = vunpack.c.l.b16 %v5416
    %v5456 = vunpack.c.l.b16 %v5417
    %v5457 = vunpack.c.l.b16 %v5418
    %v5458 = vunpack.c.l.b16 %v5419
    %v5459 = vunpack.c.l.b16 %v5420
    %v5460 = vunpack.c.l.b16 %v5421
    %v5461 = vunpack.c.l.b16 %v5422
    %v5462 = vpack.c.b16 %v5447, %v5446
    %v5463 = vpack.c.b16 %v5449, %v5448
    %v5464 = vpack.c.b16 %v5451, %v5450
    %v5465 = vpack.c.b16 %v5453, %v5452
    %v5466 = vpack.c.b16 %v5455, %v5454
    %v5467 = vpack.c.b16 %v5457, %v5456
    %v5468 = vpack.c.b16 %v5459, %v5458
    %v5469 = vpack.c.b16 %v5461, %v5460
    %5478 = vmatprep.subr.bf16.mxu0 0
    %5479 = vmatpush1.bf16.msra.mxu0 %v5462
    %5480 = vmatprep.subr.bf16.mxu0 0
    %5481 = vmatpush1.bf16.msra.mxu0 %v5463
    %5482 = vmatprep.subr.bf16.mxu0 0
    %5483 = vmatpush1.bf16.msra.mxu0 %v5464
    %5484 = vmatprep.subr.bf16.mxu0 0
    %5485 = vmatpush1.bf16.msra.mxu0 %v5465
    %5486 = vmatprep.subr.bf16.mxu0 0
    %5487 = vmatpush1.bf16.msra.mxu0 %v5466
    %5488 = vmatprep.subr.bf16.mxu0 0
    %5489 = vmatpush1.bf16.msra.mxu0 %v5467
    %5490 = vmatprep.subr.bf16.mxu0 0
    %5491 = vmatpush1.bf16.msra.mxu0 %v5468
    %5492 = vmatprep.subr.bf16.mxu0 0
    %5493 = vmatpush1.bf16.msra.mxu0 %v5469
    %5494 = vmatprep.subr.bf16.mxu0 0
    %5495 = vmatpush1.bf16.msra.mxu0 0
    %5496 = vmatprep.subr.bf16.mxu0 0
    %5497 = vmatpush1.bf16.msra.mxu0 0
    %5498 = vmatprep.subr.bf16.mxu0 0
    %5499 = vmatpush1.bf16.msra.mxu0 0
    %5500 = vmatprep.subr.bf16.mxu0 0
    %5501 = vmatpush1.bf16.msra.mxu0 0
    %5502 = vmatprep.subr.bf16.mxu0 0
    %5503 = vmatpush1.bf16.msra.mxu0 0
    %5504 = vmatprep.subr.bf16.mxu0 0
    %5505 = vmatpush1.bf16.msra.mxu0 0
    %5506 = vmatprep.subr.bf16.mxu0 0
    %5507 = vmatpush1.bf16.msra.mxu0 0
    %5508 = vmatprep.subr.bf16.mxu0 0
    %5509 = vmatpush1.bf16.msra.mxu0 0
    %5510 = vmatprep.mubr.bf16.mxu0 0
    %5511 = vmatmul.mubr.bf16.gmra.mrb[0].mxu0 %v5399
    %v5512 = vpop.f32.mrb[0].mxu0
    %v5513 = vadd.f32 %v5428, %v5512
    %v5514 = vpop.f32.mrb[0].mxu0
    %v5515 = vpop.f32.mrb[0].mxu0
    %v5516 = vadd.f32 %v5428, %v5515
    %v5517 = vpop.f32.mrb[0].mxu0
    %5518 = vmatprep.mubr.bf16.mxu0 0
    %5519 = vmatmul.mubr.bf16.gmra.mrb[0].mxu0 %v5400
    %v5520 = vpop.f32.mrb[0].mxu0
    %v5521 = vadd.f32 %v5428, %v5520
    %v5522 = vpop.f32.mrb[0].mxu0
    %v5523 = vpop.f32.mrb[0].mxu0
    %v5524 = vadd.f32 %v5428, %v5523
    %v5525 = vpop.f32.mrb[0].mxu0
    %5526 = vmatprep.mubr.bf16.mxu0 0
    %5527 = vmatmul.mubr.bf16.gmra.mrb[0].mxu0 %v5401
    %v5528 = vpop.f32.mrb[0].mxu0
    %v5529 = vadd.f32 %v5428, %v5528
    %v5530 = vpop.f32.mrb[0].mxu0
    %v5531 = vpop.f32.mrb[0].mxu0
    %v5532 = vadd.f32 %v5428, %v5531
    %v5533 = vpop.f32.mrb[0].mxu0
    %5534 = vmatprep.mubr.bf16.mxu0 0
    %5535 = vmatmul.mubr.bf16.gmra.mrb[0].mxu0 %v5402
    %v5536 = vpop.f32.mrb[0].mxu0
    %v5537 = vadd.f32 %v5428, %v5536
    %v5538 = vpop.f32.mrb[0].mxu0
    %v5539 = vpop.f32.mrb[0].mxu0
    %v5540 = vadd.f32 %v5428, %v5539
    %v5541 = vpop.f32.mrb[0].mxu0
    %5542 = vmatprep.mubr.bf16.mxu0 0
    %5543 = vmatmul.mubr.bf16.gmra.mrb[0].mxu0 %v5403
    %v5544 = vpop.f32.mrb[0].mxu0
    %v5545 = vadd.f32 %v5428, %v5544
    %v5546 = vpop.f32.mrb[0].mxu0
    %v5547 = vpop.f32.mrb[0].mxu0
    %v5548 = vadd.f32 %v5428, %v5547
    %v5549 = vpop.f32.mrb[0].mxu0
    %5550 = vmatprep.mubr.bf16.mxu0 0
    %5551 = vmatmul.mubr.bf16.gmra.mrb[0].mxu0 %v5404
    %v5552 = vpop.f32.mrb[0].mxu0
    %v5553 = vadd.f32 %v5428, %v5552
    %v5554 = vpop.f32.mrb[0].mxu0
    %v5555 = vpop.f32.mrb[0].mxu0
    %v5556 = vadd.f32 %v5428, %v5555
    %v5557 = vpop.f32.mrb[0].mxu0
    %5558 = vmatprep.mubr.bf16.mxu0 0
    %5559 = vmatmul.mubr.bf16.gmra.mrb[0].mxu0 %v5405
    %v5560 = vpop.f32.mrb[0].mxu0
    %v5561 = vadd.f32 %v5428, %v5560
    %v5562 = vpop.f32.mrb[0].mxu0
    %v5563 = vpop.f32.mrb[0].mxu0
    %v5564 = vadd.f32 %v5428, %v5563
    %v5565 = vpop.f32.mrb[0].mxu0
    %5566 = vmatprep.mubr.bf16.mxu0 0
    %5567 = vmatmul.mubr.bf16.gmra.mrb[0].mxu0 %v5406
    %v5568 = vpop.f32.mrb[0].mxu0
    %v5569 = vadd.f32 %v5428, %v5568
    %v5570 = vpop.f32.mrb[0].mxu0
    %v5571 = vpop.f32.mrb[0].mxu0
    %v5572 = vadd.f32 %v5428, %v5571
    %v5573 = vpop.f32.mrb[0].mxu0
    %5574 = vdwg.mxu0
    %s5575 = scalar_lea.vmem %s1, 128
    %v5576 = vld [vmem:[%s5575] sm:$0xff]
    %v5577 = vld [vmem:[%s5575 + $0x8] sm:$0xff]
    %v5578 = vld [vmem:[%s5575 + $0x10] sm:$0xff]
    %v5579 = vld [vmem:[%s5575 + $0x18] sm:$0xff]
    %v5580 = vld [vmem:[%s5575 + $0x20] sm:$0xff]
    %v5581 = vld [vmem:[%s5575 + $0x28] sm:$0xff]
    %v5582 = vld [vmem:[%s5575 + $0x30] sm:$0xff]
    %v5583 = vld [vmem:[%s5575 + $0x38] sm:$0xff]
    %v5584 = vld [vmem:[%s5575 + $0x40] sm:$0xff]
    %v5585 = vld [vmem:[%s5575 + $0x48] sm:$0xff]
    %v5586 = vld [vmem:[%s5575 + $0x50] sm:$0xff]
    %v5587 = vld [vmem:[%s5575 + $0x58] sm:$0xff]
    %v5588 = vld [vmem:[%s5575 + $0x60] sm:$0xff]
    %v5589 = vld [vmem:[%s5575 + $0x68] sm:$0xff]
    %v5590 = vld [vmem:[%s5575 + $0x70] sm:$0xff]
    %v5591 = vld [vmem:[%s5575 + $0x78] sm:$0xff]
    %v5592 = vadd.f32 %v5576, 1e-08
    %v5593 = vadd.f32 %v5577, 1e-08
    %v5594 = vadd.f32 %v5578, 1e-08
    %v5595 = vadd.f32 %v5579, 1e-08
    %v5596 = vadd.f32 %v5580, 1e-08
    %v5597 = vadd.f32 %v5581, 1e-08
    %v5598 = vadd.f32 %v5582, 1e-08
    %v5599 = vadd.f32 %v5583, 1e-08
    %v5600 = vadd.f32 %v5584, 1e-08
    %v5601 = vadd.f32 %v5585, 1e-08
    %v5602 = vadd.f32 %v5586, 1e-08
    %v5603 = vadd.f32 %v5587, 1e-08
    %v5604 = vadd.f32 %v5588, 1e-08
    %v5605 = vadd.f32 %v5589, 1e-08
    %v5606 = vadd.f32 %v5590, 1e-08
    %v5607 = vadd.f32 %v5591, 1e-08
    %v5608 = vlog2.pop %v5592
    %v5609 = vmul.f32 %v5608, 0.6931472
    %v5610 = vlog2.pop %v5593
    %v5611 = vmul.f32 %v5610, 0.6931472
    %v5612 = vlog2.pop %v5594
    %v5613 = vmul.f32 %v5612, 0.6931472
    %v5614 = vlog2.pop %v5595
    %v5615 = vmul.f32 %v5614, 0.6931472
    %v5616 = vlog2.pop %v5596
    %v5617 = vmul.f32 %v5616, 0.6931472
    %v5618 = vlog2.pop %v5597
    %v5619 = vmul.f32 %v5618, 0.6931472
    %v5620 = vlog2.pop %v5598
    %v5621 = vmul.f32 %v5620, 0.6931472
    %v5622 = vlog2.pop %v5599
    %v5623 = vmul.f32 %v5622, 0.6931472
    %v5624 = vlog2.pop %v5600
    %v5625 = vmul.f32 %v5624, 0.6931472
    %v5626 = vlog2.pop %v5601
    %v5627 = vmul.f32 %v5626, 0.6931472
    %v5628 = vlog2.pop %v5602
    %v5629 = vmul.f32 %v5628, 0.6931472
    %v5630 = vlog2.pop %v5603
    %v5631 = vmul.f32 %v5630, 0.6931472
    %v5632 = vlog2.pop %v5604
    %v5633 = vmul.f32 %v5632, 0.6931472
    %v5634 = vlog2.pop %v5605
    %v5635 = vmul.f32 %v5634, 0.6931472
    %v5636 = vlog2.pop %v5606
    %v5637 = vmul.f32 %v5636, 0.6931472
    %v5638 = vlog2.pop %v5607
    %v5639 = vmul.f32 %v5638, 0.6931472
    %v5640 = vadd.f32 %v5609, %v5513
    %v5641 = vadd.f32 %v5611, %v5516
    %v5642 = vadd.f32 %v5613, %v5521
    %v5643 = vadd.f32 %v5615, %v5524
    %v5644 = vadd.f32 %v5617, %v5529
    %v5645 = vadd.f32 %v5619, %v5532
    %v5646 = vadd.f32 %v5621, %v5537
    %v5647 = vadd.f32 %v5623, %v5540
    %v5648 = vadd.f32 %v5625, %v5545
    %v5649 = vadd.f32 %v5627, %v5548
    %v5650 = vadd.f32 %v5629, %v5553
    %v5651 = vadd.f32 %v5631, %v5556
    %v5652 = vadd.f32 %v5633, %v5561
    %v5653 = vadd.f32 %v5635, %v5564
    %v5654 = vadd.f32 %v5637, %v5569
    %v5655 = vadd.f32 %v5639, %v5572
    %v5656 = vsel %vm2994, %v5640, -inf
    %5657 = vmax.xlane.f32.xlu0 %v5656
    %v5658 = vpop.xlane.xlu0 %5657
    %v5659 = vsel %vm2994, %v5641, -inf
    %5660 = vmax.xlane.f32.xlu0 %v5659
    %v5661 = vpop.xlane.xlu0 %5660
    %v5662 = vsel %vm2994, %v5642, -inf
    %5663 = vmax.xlane.f32.xlu0 %v5662
    %v5664 = vpop.xlane.xlu0 %5663
    %v5665 = vsel %vm2994, %v5643, -inf
    %5666 = vmax.xlane.f32.xlu0 %v5665
    %v5667 = vpop.xlane.xlu0 %5666
    %v5668 = vsel %vm2994, %v5644, -inf
    %5669 = vmax.xlane.f32.xlu0 %v5668
    %v5670 = vpop.xlane.xlu0 %5669
    %v5671 = vsel %vm2994, %v5645, -inf
    %5672 = vmax.xlane.f32.xlu0 %v5671
    %v5673 = vpop.xlane.xlu0 %5672
    %v5674 = vsel %vm2994, %v5646, -inf
    %5675 = vmax.xlane.f32.xlu0 %v5674
    %v5676 = vpop.xlane.xlu0 %5675
    %v5677 = vsel %vm2994, %v5647, -inf
    %5678 = vmax.xlane.f32.xlu0 %v5677
    %v5679 = vpop.xlane.xlu0 %5678
    %v5680 = vsel %vm2994, %v5648, -inf
    %5681 = vmax.xlane.f32.xlu0 %v5680
    %v5682 = vpop.xlane.xlu0 %5681
    %v5683 = vsel %vm2994, %v5649, -inf
    %5684 = vmax.xlane.f32.xlu0 %v5683
    %v5685 = vpop.xlane.xlu0 %5684
    %v5686 = vsel %vm2994, %v5650, -inf
    %5687 = vmax.xlane.f32.xlu0 %v5686
    %v5688 = vpop.xlane.xlu0 %5687
    %v5689 = vsel %vm2994, %v5651, -inf
    %5690 = vmax.xlane.f32.xlu0 %v5689
    %v5691 = vpop.xlane.xlu0 %5690
    %v5692 = vsel %vm2994, %v5652, -inf
    %5693 = vmax.xlane.f32.xlu0 %v5692
    %v5694 = vpop.xlane.xlu0 %5693
    %v5695 = vsel %vm2994, %v5653, -inf
    %5696 = vmax.xlane.f32.xlu0 %v5695
    %v5697 = vpop.xlane.xlu0 %5696
    %v5698 = vsel %vm2994, %v5654, -inf
    %5699 = vmax.xlane.f32.xlu0 %v5698
    %v5700 = vpop.xlane.xlu0 %5699
    %v5701 = vsel %vm2994, %v5655, -inf
    %5702 = vmax.xlane.f32.xlu0 %v5701
    %v5703 = vpop.xlane.xlu0 %5702
    %v5704 = vsub.f32 %v5640, %v5658
    %v5705 = vsub.f32 %v5641, %v5661
    %v5706 = vsub.f32 %v5642, %v5664
    %v5707 = vsub.f32 %v5643, %v5667
    %v5708 = vsub.f32 %v5644, %v5670
    %v5709 = vsub.f32 %v5645, %v5673
    %v5710 = vsub.f32 %v5646, %v5676
    %v5711 = vsub.f32 %v5647, %v5679
    %v5712 = vsub.f32 %v5648, %v5682
    %v5713 = vsub.f32 %v5649, %v5685
    %v5714 = vsub.f32 %v5650, %v5688
    %v5715 = vsub.f32 %v5651, %v5691
    %v5716 = vsub.f32 %v5652, %v5694
    %v5717 = vsub.f32 %v5653, %v5697
    %v5718 = vsub.f32 %v5654, %v5700
    %v5719 = vsub.f32 %v5655, %v5703
    %v5720 = vmul.f32 %v5704, 1.442695
    %v5721 = vpow.pop %v5720
    %v5722 = vmul.f32 %v5705, 1.442695
    %v5723 = vpow.pop %v5722
    %v5724 = vmul.f32 %v5706, 1.442695
    %v5725 = vpow.pop %v5724
    %v5726 = vmul.f32 %v5707, 1.442695
    %v5727 = vpow.pop %v5726
    %v5728 = vmul.f32 %v5708, 1.442695
    %v5729 = vpow.pop %v5728
    %v5730 = vmul.f32 %v5709, 1.442695
    %v5731 = vpow.pop %v5730
    %v5732 = vmul.f32 %v5710, 1.442695
    %v5733 = vpow.pop %v5732
    %v5734 = vmul.f32 %v5711, 1.442695
    %v5735 = vpow.pop %v5734
    %v5736 = vmul.f32 %v5712, 1.442695
    %v5737 = vpow.pop %v5736
    %v5738 = vmul.f32 %v5713, 1.442695
    %v5739 = vpow.pop %v5738
    %v5740 = vmul.f32 %v5714, 1.442695
    %v5741 = vpow.pop %v5740
    %v5742 = vmul.f32 %v5715, 1.442695
    %v5743 = vpow.pop %v5742
    %v5744 = vmul.f32 %v5716, 1.442695
    %v5745 = vpow.pop %v5744
    %v5746 = vmul.f32 %v5717, 1.442695
    %v5747 = vpow.pop %v5746
    %v5748 = vmul.f32 %v5718, 1.442695
    %v5749 = vpow.pop %v5748
    %v5750 = vmul.f32 %v5719, 1.442695
    %v5751 = vpow.pop %v5750
    %v5752 = vsel %vm2994, %v5721, 0.0
    %5753 = vadd.xlane.f32.xlu0 %v5752
    %v5754 = vpop.xlane.xlu0 %5753
    %v5755 = vsel %vm2994, %v5723, 0.0
    %5756 = vadd.xlane.f32.xlu0 %v5755
    %v5757 = vpop.xlane.xlu0 %5756
    %v5758 = vsel %vm2994, %v5725, 0.0
    %5759 = vadd.xlane.f32.xlu0 %v5758
    %v5760 = vpop.xlane.xlu0 %5759
    %v5761 = vsel %vm2994, %v5727, 0.0
    %5762 = vadd.xlane.f32.xlu0 %v5761
    %v5763 = vpop.xlane.xlu0 %5762
    %v5764 = vsel %vm2994, %v5729, 0.0
    %5765 = vadd.xlane.f32.xlu0 %v5764
    %v5766 = vpop.xlane.xlu0 %5765
    %v5767 = vsel %vm2994, %v5731, 0.0
    %5768 = vadd.xlane.f32.xlu0 %v5767
    %v5769 = vpop.xlane.xlu0 %5768
    %v5770 = vsel %vm2994, %v5733, 0.0
    %5771 = vadd.xlane.f32.xlu0 %v5770
    %v5772 = vpop.xlane.xlu0 %5771
    %v5773 = vsel %vm2994, %v5735, 0.0
    %5774 = vadd.xlane.f32.xlu0 %v5773
    %v5775 = vpop.xlane.xlu0 %5774
    %v5776 = vsel %vm2994, %v5737, 0.0
    %5777 = vadd.xlane.f32.xlu0 %v5776
    %v5778 = vpop.xlane.xlu0 %5777
    %v5779 = vsel %vm2994, %v5739, 0.0
    %5780 = vadd.xlane.f32.xlu0 %v5779
    %v5781 = vpop.xlane.xlu0 %5780
    %v5782 = vsel %vm2994, %v5741, 0.0
    %5783 = vadd.xlane.f32.xlu0 %v5782
    %v5784 = vpop.xlane.xlu0 %5783
    %v5785 = vsel %vm2994, %v5743, 0.0
    %5786 = vadd.xlane.f32.xlu0 %v5785
    %v5787 = vpop.xlane.xlu0 %5786
    %v5788 = vsel %vm2994, %v5745, 0.0
    %5789 = vadd.xlane.f32.xlu0 %v5788
    %v5790 = vpop.xlane.xlu0 %5789
    %v5791 = vsel %vm2994, %v5747, 0.0
    %5792 = vadd.xlane.f32.xlu0 %v5791
    %v5793 = vpop.xlane.xlu0 %5792
    %v5794 = vsel %vm2994, %v5749, 0.0
    %5795 = vadd.xlane.f32.xlu0 %v5794
    %v5796 = vpop.xlane.xlu0 %5795
    %v5797 = vsel %vm2994, %v5751, 0.0
    %5798 = vadd.xlane.f32.xlu0 %v5797
    %v5799 = vpop.xlane.xlu0 %5798
    %v5800 = vrcp.pop %v5754
    %v5801 = vmul.f32 %v5721, %v5800
    %v5802 = vrcp.pop %v5757
    %v5803 = vmul.f32 %v5723, %v5802
    %v5804 = vrcp.pop %v5760
    %v5805 = vmul.f32 %v5725, %v5804
    %v5806 = vrcp.pop %v5763
    %v5807 = vmul.f32 %v5727, %v5806
    %v5808 = vrcp.pop %v5766
    %v5809 = vmul.f32 %v5729, %v5808
    %v5810 = vrcp.pop %v5769
    %v5811 = vmul.f32 %v5731, %v5810
    %v5812 = vrcp.pop %v5772
    %v5813 = vmul.f32 %v5733, %v5812
    %v5814 = vrcp.pop %v5775
    %v5815 = vmul.f32 %v5735, %v5814
    %v5816 = vrcp.pop %v5778
    %v5817 = vmul.f32 %v5737, %v5816
    %v5818 = vrcp.pop %v5781
    %v5819 = vmul.f32 %v5739, %v5818
    %v5820 = vrcp.pop %v5784
    %v5821 = vmul.f32 %v5741, %v5820
    %v5822 = vrcp.pop %v5787
    %v5823 = vmul.f32 %v5743, %v5822
    %v5824 = vrcp.pop %v5790
    %v5825 = vmul.f32 %v5745, %v5824
    %v5826 = vrcp.pop %v5793
    %v5827 = vmul.f32 %v5747, %v5826
    %v5828 = vrcp.pop %v5796
    %v5829 = vmul.f32 %v5749, %v5828
    %v5830 = vrcp.pop %v5799
    %v5831 = vmul.f32 %v5751, %v5830
    %s5832 = scalar_lea.vmem %s2, 128
    %v5833 = vld [vmem:[%s5832] sm:$0xff]
    %v5834 = vld [vmem:[%s5832 + $0x8] sm:$0xff]
    %v5835 = vld [vmem:[%s5832 + $0x10] sm:$0xff]
    %v5836 = vld [vmem:[%s5832 + $0x18] sm:$0xff]
    %v5837 = vld [vmem:[%s5832 + $0x20] sm:$0xff]
    %v5838 = vld [vmem:[%s5832 + $0x28] sm:$0xff]
    %v5839 = vld [vmem:[%s5832 + $0x30] sm:$0xff]
    %v5840 = vld [vmem:[%s5832 + $0x38] sm:$0xff]
    %v5841 = vld [vmem:[%s5832 + $0x40] sm:$0xff]
    %v5842 = vld [vmem:[%s5832 + $0x48] sm:$0xff]
    %v5843 = vld [vmem:[%s5832 + $0x50] sm:$0xff]
    %v5844 = vld [vmem:[%s5832 + $0x58] sm:$0xff]
    %v5845 = vld [vmem:[%s5832 + $0x60] sm:$0xff]
    %v5846 = vld [vmem:[%s5832 + $0x68] sm:$0xff]
    %v5847 = vld [vmem:[%s5832 + $0x70] sm:$0xff]
    %v5848 = vld [vmem:[%s5832 + $0x78] sm:$0xff]
    %5850 = vset.pattern.permute.xlu0 0
    %5851 = vperm.xlu0 %5850, %v5833
    %v5852 = vpop.permute.xlu0 %5851
    %5855 = vset.pattern.permute.xlu0 0
    %5856 = vperm.xlu0 %5855, %v5834
    %v5857 = vpop.permute.xlu0 %5856
    %5860 = vset.pattern.permute.xlu0 0
    %5861 = vperm.xlu0 %5860, %v5835
    %v5862 = vpop.permute.xlu0 %5861
    %5865 = vset.pattern.permute.xlu0 0
    %5866 = vperm.xlu0 %5865, %v5836
    %v5867 = vpop.permute.xlu0 %5866
    %5870 = vset.pattern.permute.xlu0 0
    %5871 = vperm.xlu0 %5870, %v5837
    %v5872 = vpop.permute.xlu0 %5871
    %5875 = vset.pattern.permute.xlu0 0
    %5876 = vperm.xlu0 %5875, %v5838
    %v5877 = vpop.permute.xlu0 %5876
    %5880 = vset.pattern.permute.xlu0 0
    %5881 = vperm.xlu0 %5880, %v5839
    %v5882 = vpop.permute.xlu0 %5881
    %5885 = vset.pattern.permute.xlu0 0
    %5886 = vperm.xlu0 %5885, %v5840
    %v5887 = vpop.permute.xlu0 %5886
    %5890 = vset.pattern.permute.xlu0 0
    %5891 = vperm.xlu0 %5890, %v5841
    %v5892 = vpop.permute.xlu0 %5891
    %5895 = vset.pattern.permute.xlu0 0
    %5896 = vperm.xlu0 %5895, %v5842
    %v5897 = vpop.permute.xlu0 %5896
    %5900 = vset.pattern.permute.xlu0 0
    %5901 = vperm.xlu0 %5900, %v5843
    %v5902 = vpop.permute.xlu0 %5901
    %5905 = vset.pattern.permute.xlu0 0
    %5906 = vperm.xlu0 %5905, %v5844
    %v5907 = vpop.permute.xlu0 %5906
    %5910 = vset.pattern.permute.xlu0 0
    %5911 = vperm.xlu0 %5910, %v5845
    %v5912 = vpop.permute.xlu0 %5911
    %5915 = vset.pattern.permute.xlu0 0
    %5916 = vperm.xlu0 %5915, %v5846
    %v5917 = vpop.permute.xlu0 %5916
    %5920 = vset.pattern.permute.xlu0 0
    %5921 = vperm.xlu0 %5920, %v5847
    %v5922 = vpop.permute.xlu0 %5921
    %5925 = vset.pattern.permute.xlu0 0
    %5926 = vperm.xlu0 %5925, %v5848
    %v5927 = vpop.permute.xlu0 %5926
    %v5929 = vmul.f32 %v5801, %v5852
    %v5930 = vmul.f32 %v5803, %v5857
    %v5931 = vmul.f32 %v5805, %v5862
    %v5932 = vmul.f32 %v5807, %v5867
    %v5933 = vmul.f32 %v5809, %v5872
    %v5934 = vmul.f32 %v5811, %v5877
    %v5935 = vmul.f32 %v5813, %v5882
    %v5936 = vmul.f32 %v5815, %v5887
    %v5937 = vmul.f32 %v5817, %v5892
    %v5938 = vmul.f32 %v5819, %v5897
    %v5939 = vmul.f32 %v5821, %v5902
    %v5940 = vmul.f32 %v5823, %v5907
    %v5941 = vmul.f32 %v5825, %v5912
    %v5942 = vmul.f32 %v5827, %v5917
    %v5943 = vmul.f32 %v5829, %v5922
    %v5944 = vmul.f32 %v5831, %v5927
    %v5945 = vsel %vm2994, %v5929, 0.0
    %v5946 = vsel %vm2994, %v5930, 0.0
    %v5947 = vadd.f32 %v5945, %v5946
    %v5948 = vsel %vm2994, %v5931, 0.0
    %v5949 = vadd.f32 %v5947, %v5948
    %v5950 = vsel %vm2994, %v5932, 0.0
    %v5951 = vadd.f32 %v5949, %v5950
    %v5952 = vsel %vm2994, %v5933, 0.0
    %v5953 = vadd.f32 %v5951, %v5952
    %v5954 = vsel %vm2994, %v5934, 0.0
    %v5955 = vadd.f32 %v5953, %v5954
    %v5956 = vsel %vm2994, %v5935, 0.0
    %v5957 = vadd.f32 %v5955, %v5956
    %v5958 = vsel %vm2994, %v5936, 0.0
    %v5959 = vadd.f32 %v5957, %v5958
    %v5960 = vsel %vm2994, %v5937, 0.0
    %v5961 = vadd.f32 %v5959, %v5960
    %v5962 = vsel %vm2994, %v5938, 0.0
    %v5963 = vadd.f32 %v5961, %v5962
    %v5964 = vsel %vm2994, %v5939, 0.0
    %v5965 = vadd.f32 %v5963, %v5964
    %v5966 = vsel %vm2994, %v5940, 0.0
    %v5967 = vadd.f32 %v5965, %v5966
    %v5968 = vsel %vm2994, %v5941, 0.0
    %v5969 = vadd.f32 %v5967, %v5968
    %v5970 = vsel %vm2994, %v5942, 0.0
    %v5971 = vadd.f32 %v5969, %v5970
    %v5972 = vsel %vm2994, %v5943, 0.0
    %v5973 = vadd.f32 %v5971, %v5972
    %v5974 = vsel %vm2994, %v5944, 0.0
    %v5975 = vadd.f32 %v5973, %v5974
    %v5976 = vrot.slane %v5975, 4
    %v5977 = vadd.f32 %v5975, %v5976
    %v5978 = vrot.slane %v5977, 2
    %v5979 = vadd.f32 %v5977, %v5978
    %v5980 = vrot.slane %v5979, 1
    %v5981 = vadd.f32 %v5979, %v5980
    %v5982 = vsel %vm3320, %v5833, 0.0
    %v5983 = vsel %vm3320, %v5834, 0.0
    %v5984 = vadd.f32 %v5982, %v5983
    %v5985 = vsel %vm3320, %v5835, 0.0
    %v5986 = vadd.f32 %v5984, %v5985
    %v5987 = vsel %vm3320, %v5836, 0.0
    %v5988 = vadd.f32 %v5986, %v5987
    %v5989 = vsel %vm3320, %v5837, 0.0
    %v5990 = vadd.f32 %v5988, %v5989
    %v5991 = vsel %vm3320, %v5838, 0.0
    %v5992 = vadd.f32 %v5990, %v5991
    %v5993 = vsel %vm3320, %v5839, 0.0
    %v5994 = vadd.f32 %v5992, %v5993
    %v5995 = vsel %vm3320, %v5840, 0.0
    %v5996 = vadd.f32 %v5994, %v5995
    %v5997 = vsel %vm3320, %v5841, 0.0
    %v5998 = vadd.f32 %v5996, %v5997
    %v5999 = vsel %vm3320, %v5842, 0.0
    %v6000 = vadd.f32 %v5998, %v5999
    %v6001 = vsel %vm3320, %v5843, 0.0
    %v6002 = vadd.f32 %v6000, %v6001
    %v6003 = vsel %vm3320, %v5844, 0.0
    %v6004 = vadd.f32 %v6002, %v6003
    %v6005 = vsel %vm3320, %v5845, 0.0
    %v6006 = vadd.f32 %v6004, %v6005
    %v6007 = vsel %vm3320, %v5846, 0.0
    %v6008 = vadd.f32 %v6006, %v6007
    %v6009 = vsel %vm3320, %v5847, 0.0
    %v6010 = vadd.f32 %v6008, %v6009
    %v6011 = vsel %vm3320, %v5848, 0.0
    %v6012 = vadd.f32 %v6010, %v6011
    %v6013 = vrot.slane %v6012, 4
    %v6014 = vadd.f32 %v6012, %v6013
    %v6015 = vrot.slane %v6014, 2
    %v6016 = vadd.f32 %v6014, %v6015
    %v6017 = vrot.slane %v6016, 1
    %v6018 = vadd.f32 %v6016, %v6017
    %6020 = vset.pattern.permute.xlu0 0
    %6021 = vperm.xlu0 %6020, %v6018
    %v6022 = vpop.permute.xlu0 %6021
    %v6024 = vrcp.pop %v6022
    %v6025 = vmul.f32 %v5981, %v6024
    %s6026 = scalar_lea.vmem [#allocation3], 1
    %6027 = vst.msk [vmem:[%s6026] sm:$0x1] %vm3365, %v6025
    // Predicated region
    $region30: #{tpu_custom_call.1} parent=1 // pred_check
      _
    $region31: #{tpu_custom_call.1} parent=1 // pred_check_branch
      %6029 = sbr.rel (0) target = $region33
    $region32: #{tpu_custom_call.1} parent=1 // pred_region
      %s6031 = ssub.s32 32, 32
      %6032 = vsyncadd [#allocation4], %s6031
      %s6033 = sshll.u32 [#allocation3], 4
      %s6034 = int_to_ptr.vmem [resolvable:$true] %s6033
      %6039 = dma.vmem_to_hbm [thread:$0]  %s6034, 32, %s7, [#allocation4], 16, 16, 1
    $region33: #{tpu_custom_call.1} parent=1 // pred_fallthru
      _
    // Predicated region
    $region34: #{tpu_custom_call.1} parent=1 // pred_check
      _
    $region35: #{tpu_custom_call.1} parent=1 // pred_check_branch
      %6041 = sbr.rel (0) target = $region37
    $region36: #{tpu_custom_call.1} parent=1 // pred_region
      %6042 = dma.done [#allocation4], 32
    $region37: #{tpu_custom_call.1} parent=1 // pred_fallthru
      _
    %6043 = vsyncpa [#allocation4], 1

</llo_original>
